<compile_context>
chip_gen: v7x
topology: tpu7x:2x2x1
jax: 0.10.0
libtpu: 0.0.40
codegen_flags: <defaults>
</compile_context>

<pallas_src>
import functools

import jax
import jax.numpy as jnp
from jax.experimental import pallas as pl
from jax.experimental.pallas import tpu as pltpu

# Logical layer dims (matches the PyTorch module).
ENC_DIMS = [784, 512, 256, 128, 3]
DEC_DIMS = [3, 128, 256, 512, 784]

# Lane-dense padded (in, out) shapes for the 8 Linear layers, in forward order.
PADDED_DIMS = [
    (896, 512), (512, 256), (256, 128), (128, 128),   # encoder
    (128, 128), (128, 256), (256, 512), (512, 896),   # decoder
]

D_IN_PAD = 896     # 784 padded to 7*128
LATENT_PAD = 128   # 3 padded to 128
D_OUT_PAD = 896    # 784 padded to 7*128


def _round_up(n, m):
    return ((n + m - 1) // m) * m


def _pad2d(a, rows, cols):
    r, c = a.shape
    if r == rows and c == cols:
        return a
    return jnp.zeros((rows, cols), a.dtype).at[:r, :c].set(a)


def _use_bf16_elementwise():
    """bf16 EUP/VPU exists on v6e (Trillium) and v7x; not on v5e and older."""
    try:
        kind = jax.devices()[0].device_kind.lower()
    except Exception:
        return False
    return any(tag in kind for tag in ("v6", "v7", "tpu7", "7x"))


def _autoencoder_kernel(x_ref,
                        we1, be1, we2, be2, we3, be3, we4, be4,
                        wd1, bd1, wd2, bd2, wd3, bd3, wd4, bd4,
                        enc_ref, dec_ref, *, bf16_elementwise):
    """Full forward pass for one batch tile, entirely in VMEM.

    Weights + input tile + inter-layer activations are bf16; MXU accumulates in
    f32; bias add stays f32.  Transcendentals run in bf16 only when
    bf16_elementwise is True (v6e / v7x), except the latent tanh (always f32).
    """
    act_dtype = jnp.bfloat16 if bf16_elementwise else jnp.float32

    def dense(h_bf16, w_ref, b_ref):
        # bf16 x bf16 MXU matmul with f32 accumulation; f32 bias add on VPU.
        return jnp.dot(h_bf16, w_ref[...],
                       preferred_element_type=jnp.float32) + b_ref[...]

    def hidden(h_bf16, w_ref, b_ref):
        pre = dense(h_bf16, w_ref, b_ref)
        # tanh in bf16 on bf16-EUP chips, f32 elsewhere; the result is carried
        # as bf16 either way (next matmul operand, halved VMEM intermediates).
        return jnp.tanh(pre.astype(act_dtype)).astype(jnp.bfloat16)

    h = x_ref[...]                        # (tile, 896) bf16, cols 784.. are zero

    # ---- encoder ----
    h = hidden(h, we1, be1)
    h = hidden(h, we2, be2)
    h = hidden(h, we3, be3)
    enc = jnp.tanh(dense(h, we4, be4))    # latent tanh kept in f32 (sensitive)
    enc_ref[...] = enc.astype(enc_ref.dtype)          # (tile, 128); cols 3.. = 0

    # ---- decoder ----
    d = hidden(enc.astype(jnp.bfloat16), wd1, bd1)    # zero wd1 rows kill padding
    d = hidden(d, wd2, bd2)
    d = hidden(d, wd3, bd3)
    logits = dense(d, wd4, bd4)                       # (tile, 896) f32
    dec_ref[...] = jax.nn.sigmoid(logits.astype(act_dtype)).astype(dec_ref.dtype)


def autoencoder_forward(x, params, *, batch_tile=512):
    """x: (B, 784).  params: list of 8 (W, b) with W as (in, out), f32.

    Returns (encoder_out (B, 3), decoder_out (B, 784)) in float32.
    """
    B, d_in = x.shape
    assert d_in == ENC_DIMS[0]

    # Pick a batch tile: multiple of 8, never larger than the (rounded) batch.
    tile = min(batch_tile, _round_up(B, 8))
    tile = max(8, _round_up(tile, 8))
    B_pad = _round_up(B, tile)
    # Guarantee >= 2 grid steps when the batch allows it, so the ("parallel",)
    # batch axis can shard across both TensorCores on v7x.
    if B_pad // tile < 2 and tile >= 16:
        tile = _round_up(tile // 2, 8)
        B_pad = _round_up(B, tile)
    grid = (B_pad // tile,)

    # Pad input: batch -> B_pad, features 784 -> 896, and cast to bf16 here so
    # the largest inbound DMA is half-width (kernel used bf16 anyway).
    x_pad = jnp.zeros((B_pad, D_IN_PAD), jnp.bfloat16).at[:B, :d_in].set(
        x.astype(jnp.bfloat16))

    # Pad + cast weights (bf16) and biases (f32 rows) into kernel argument order.
    flat_args = []
    weight_specs = []
    for (w, b), (din, dout) in zip(params, PADDED_DIMS):
        wp = _pad2d(w.astype(jnp.float32), din, dout).astype(jnp.bfloat16)
        bp = _pad2d(b.reshape(1, -1).astype(jnp.float32), 1, dout)
        flat_args.append(wp)
        flat_args.append(bp)
        # Full-array blocks; constant across the grid (index_map -> (0, 0)).
        weight_specs.append(pl.BlockSpec((din, dout), lambda i: (0, 0)))
        weight_specs.append(pl.BlockSpec((1, dout), lambda i: (0, 0)))

    out_shapes = (
        jax.ShapeDtypeStruct((B_pad, LATENT_PAD), jnp.float32),   # padded latent
        jax.ShapeDtypeStruct((B_pad, D_OUT_PAD), jnp.bfloat16),   # padded decoder
    )

    in_specs = [pl.BlockSpec((tile, D_IN_PAD), lambda i: (i, 0))] + weight_specs
    out_specs = (
        pl.BlockSpec((tile, LATENT_PAD), lambda i: (i, 0)),
        pl.BlockSpec((tile, D_OUT_PAD), lambda i: (i, 0)),
    )

    # Computed VMEM footprint: double-buffered weights/biases + I/O tiles plus
    # a few f32 intermediates the compiler keeps live; 1.5x headroom, clamped.
    weight_bytes = sum(din * dout * 2 + dout * 4 for din, dout in PADDED_DIMS)
    io_bytes = tile * D_IN_PAD * 2 + tile * D_OUT_PAD * 2 + tile * LATENT_PAD * 4
    vmem_est = 2 * (weight_bytes + io_bytes) + 6 * tile * 512 * 4
    vmem_limit = int(min(max(vmem_est * 3 // 2, 16 << 20), 56 << 20))

    kernel = functools.partial(_autoencoder_kernel,
                               bf16_elementwise=_use_bf16_elementwise())

    fn = pl.pallas_call(
        kernel,
        out_shape=out_shapes,
        grid_spec=pltpu.PrefetchScalarGridSpec(
            num_scalar_prefetch=0,
            grid=grid,
            in_specs=in_specs,
            out_specs=out_specs,
        ),
        compiler_params=pltpu.CompilerParams(
            dimension_semantics=("parallel",),
            vmem_limit_bytes=vmem_limit,
        ),
    )
    enc_pad, dec_pad = fn(x_pad, *flat_args)

    # Slice the lane/batch padding back off; upcast decoder bf16 -> f32.
    enc = enc_pad[:B, :ENC_DIMS[-1]]
    dec = dec_pad[:B, :DEC_DIMS[-1]].astype(jnp.float32)
    return enc, dec


def init_params(key):
    """Deterministic init mimicking PyTorch Linear default (uniform +-1/sqrt(fan_in)).

    Weights are generated directly in (in_features, out_features) layout, f32.
    """
    params = []
    dims_chain = (list(zip(ENC_DIMS[:-1], ENC_DIMS[1:]))
                  + list(zip(DEC_DIMS[:-1], DEC_DIMS[1:])))
    for (din, dout) in dims_chain:
        key, kw, kb = jax.random.split(key, 3)
        bound = 1.0 / (din ** 0.5)
        w = jax.random.uniform(kw, (din, dout), jnp.float32, -bound, bound)
        b = jax.random.uniform(kb, (dout,), jnp.float32, -bound, bound)
        params.append((w, b))
    return params


def reference_forward(x, params):
    """Pure-JAX f32 reference for correctness checking."""
    h = x
    for (w, b) in params[:4]:
        h = jnp.tanh(h @ w + b)
    enc = h
    d = enc
    for idx, (w, b) in enumerate(params[4:]):
        pre = d @ w + b
        d = jax.nn.sigmoid(pre) if idx == 3 else jnp.tanh(pre)
    return enc, d


if __name__ == "__main__":
    key = jax.random.PRNGKey(0)
    key, kx = jax.random.split(key)

    B = 64
    x = jax.random.normal(kx, (B, 784), jnp.float32)

    params = init_params(key)

    # Default tile logic shrinks 512 -> 32 for B=64 and yields a 2-step
    # "parallel" grid (exercises 2-TC sharding on v7x).
    enc, dec = autoencoder_forward(x, params)
    enc = jax.block_until_ready(enc)
    dec = jax.block_until_ready(dec)

    enc_ref, dec_ref = reference_forward(x, params)
    assert enc.shape == (B, 3) and dec.shape == (B, 784)
    # bf16 matmul inputs / bf16 activation carry / bf16 EUP on v6e+ and bf16
    # decoder output -> loosened tolerance vs the f32 reference.
    assert jnp.allclose(enc, enc_ref, atol=3e-2, rtol=0), \
        float(jnp.max(jnp.abs(enc - enc_ref)))
    assert jnp.allclose(dec, dec_ref, atol=3e-2, rtol=0), \
        float(jnp.max(jnp.abs(dec - dec_ref)))

    print("KERNEL_OK")
</pallas_src>

<mosaic_0001>
module attributes {stable_mosaic.version = 11 : i64} {
  func.func @_autoencoder_kernel(%arg0: i32, %arg1: memref<32x896xbf16, #tpu.memory_space<vmem>>, %arg2: memref<896x512xbf16, #tpu.memory_space<vmem>>, %arg3: memref<1x512xf32, #tpu.memory_space<vmem>>, %arg4: memref<512x256xbf16, #tpu.memory_space<vmem>>, %arg5: memref<1x256xf32, #tpu.memory_space<vmem>>, %arg6: memref<256x128xbf16, #tpu.memory_space<vmem>>, %arg7: memref<1x128xf32, #tpu.memory_space<vmem>>, %arg8: memref<128x128xbf16, #tpu.memory_space<vmem>>, %arg9: memref<1x128xf32, #tpu.memory_space<vmem>>, %arg10: memref<128x128xbf16, #tpu.memory_space<vmem>>, %arg11: memref<1x128xf32, #tpu.memory_space<vmem>>, %arg12: memref<128x256xbf16, #tpu.memory_space<vmem>>, %arg13: memref<1x256xf32, #tpu.memory_space<vmem>>, %arg14: memref<256x512xbf16, #tpu.memory_space<vmem>>, %arg15: memref<1x512xf32, #tpu.memory_space<vmem>>, %arg16: memref<512x896xbf16, #tpu.memory_space<vmem>>, %arg17: memref<1x896xf32, #tpu.memory_space<vmem>>, %arg18: memref<32x128xf32, #tpu.memory_space<vmem>>, %arg19: memref<32x896xbf16, #tpu.memory_space<vmem>>) attributes {dimension_semantics = [#tpu.dimension_semantics<parallel>], iteration_bounds = array<i64: 2>, scalar_prefetch = 0 : i64, scratch_operands = 0 : i64, tpu.core_type = #tpu.core_type<tc>, window_params = [{transform_indices = @transform_0, window_bounds = array<i64: 32, 896>}, {pipeline_mode = #tpu.pipeline_mode<synchronous>, transform_indices = @transform_1, window_bounds = array<i64: 896, 512>}, {pipeline_mode = #tpu.pipeline_mode<synchronous>, transform_indices = @transform_2, window_bounds = array<i64: 1, 512>}, {pipeline_mode = #tpu.pipeline_mode<synchronous>, transform_indices = @transform_3, window_bounds = array<i64: 512, 256>}, {pipeline_mode = #tpu.pipeline_mode<synchronous>, transform_indices = @transform_4, window_bounds = array<i64: 1, 256>}, {pipeline_mode = #tpu.pipeline_mode<synchronous>, transform_indices = @transform_5, window_bounds = array<i64: 256, 128>}, {pipeline_mode = #tpu.pipeline_mode<synchronous>, transform_indices = @transform_6, window_bounds = array<i64: 1, 128>}, {pipeline_mode = #tpu.pipeline_mode<synchronous>, transform_indices = @transform_7, window_bounds = array<i64: 128, 128>}, {pipeline_mode = #tpu.pipeline_mode<synchronous>, transform_indices = @transform_8, window_bounds = array<i64: 1, 128>}, {pipeline_mode = #tpu.pipeline_mode<synchronous>, transform_indices = @transform_9, window_bounds = array<i64: 128, 128>}, {pipeline_mode = #tpu.pipeline_mode<synchronous>, transform_indices = @transform_10, window_bounds = array<i64: 1, 128>}, {pipeline_mode = #tpu.pipeline_mode<synchronous>, transform_indices = @transform_11, window_bounds = array<i64: 128, 256>}, {pipeline_mode = #tpu.pipeline_mode<synchronous>, transform_indices = @transform_12, window_bounds = array<i64: 1, 256>}, {pipeline_mode = #tpu.pipeline_mode<synchronous>, transform_indices = @transform_13, window_bounds = array<i64: 256, 512>}, {pipeline_mode = #tpu.pipeline_mode<synchronous>, transform_indices = @transform_14, window_bounds = array<i64: 1, 512>}, {pipeline_mode = #tpu.pipeline_mode<synchronous>, transform_indices = @transform_15, window_bounds = array<i64: 512, 896>}, {pipeline_mode = #tpu.pipeline_mode<synchronous>, transform_indices = @transform_16, window_bounds = array<i64: 1, 896>}, {transform_indices = @transform_17, window_bounds = array<i64: 32, 128>}, {transform_indices = @transform_18, window_bounds = array<i64: 32, 896>}]} {
    %c0 = arith.constant 0 : index
    %c0_0 = arith.constant 0 : index
    %0 = vector.load %arg1[%c0, %c0_0] : memref<32x896xbf16, #tpu.memory_space<vmem>>, vector<32x896xbf16>
    %c0_1 = arith.constant 0 : index
    %c0_2 = arith.constant 0 : index
    %1 = vector.load %arg2[%c0_1, %c0_2] : memref<896x512xbf16, #tpu.memory_space<vmem>>, vector<896x512xbf16>
    %cst = arith.constant dense<0.000000e+00> : vector<32x512xf32>
    %2 = tpu.matmul %0, %1, %cst {dimension_numbers = #tpu.dot_dimension_numbers<[1], [0], [0], [1], [0, 0, 1, 1], [], []>} : vector<32x896xbf16>, vector<896x512xbf16>, vector<32x512xf32> -> vector<32x512xf32>
    %c0_3 = arith.constant 0 : index
    %c0_4 = arith.constant 0 : index
    %3 = vector.load %arg3[%c0_3, %c0_4] : memref<1x512xf32, #tpu.memory_space<vmem>>, vector<1x512xf32>
    %4 = vector.broadcast %3 : vector<1x512xf32> to vector<32x512xf32>
    %5 = arith.addf %2, %4 : vector<32x512xf32>
    %6 = math.tanh %5 : vector<32x512xf32>
    %7 = arith.truncf %6 : vector<32x512xf32> to vector<32x512xbf16>
    %c0_5 = arith.constant 0 : index
    %c0_6 = arith.constant 0 : index
    %8 = vector.load %arg4[%c0_5, %c0_6] : memref<512x256xbf16, #tpu.memory_space<vmem>>, vector<512x256xbf16>
    %cst_7 = arith.constant dense<0.000000e+00> : vector<32x256xf32>
    %9 = tpu.matmul %7, %8, %cst_7 {dimension_numbers = #tpu.dot_dimension_numbers<[1], [0], [0], [1], [0, 0, 1, 1], [], []>} : vector<32x512xbf16>, vector<512x256xbf16>, vector<32x256xf32> -> vector<32x256xf32>
    %c0_8 = arith.constant 0 : index
    %c0_9 = arith.constant 0 : index
    %10 = vector.load %arg5[%c0_8, %c0_9] : memref<1x256xf32, #tpu.memory_space<vmem>>, vector<1x256xf32>
    %11 = vector.broadcast %10 : vector<1x256xf32> to vector<32x256xf32>
    %12 = arith.addf %9, %11 : vector<32x256xf32>
    %13 = math.tanh %12 : vector<32x256xf32>
    %14 = arith.truncf %13 : vector<32x256xf32> to vector<32x256xbf16>
    %c0_10 = arith.constant 0 : index
    %c0_11 = arith.constant 0 : index
    %15 = vector.load %arg6[%c0_10, %c0_11] : memref<256x128xbf16, #tpu.memory_space<vmem>>, vector<256x128xbf16>
    %cst_12 = arith.constant dense<0.000000e+00> : vector<32x128xf32>
    %16 = tpu.matmul %14, %15, %cst_12 {dimension_numbers = #tpu.dot_dimension_numbers<[1], [0], [0], [1], [0, 0, 1, 1], [], []>} : vector<32x256xbf16>, vector<256x128xbf16>, vector<32x128xf32> -> vector<32x128xf32>
    %c0_13 = arith.constant 0 : index
    %c0_14 = arith.constant 0 : index
    %17 = vector.load %arg7[%c0_13, %c0_14] : memref<1x128xf32, #tpu.memory_space<vmem>>, vector<1x128xf32>
    %18 = vector.broadcast %17 : vector<1x128xf32> to vector<32x128xf32>
    %19 = arith.addf %16, %18 : vector<32x128xf32>
    %20 = math.tanh %19 : vector<32x128xf32>
    %21 = arith.truncf %20 : vector<32x128xf32> to vector<32x128xbf16>
    %c0_15 = arith.constant 0 : index
    %c0_16 = arith.constant 0 : index
    %22 = vector.load %arg8[%c0_15, %c0_16] : memref<128x128xbf16, #tpu.memory_space<vmem>>, vector<128x128xbf16>
    %cst_17 = arith.constant dense<0.000000e+00> : vector<32x128xf32>
    %23 = tpu.matmul %21, %22, %cst_17 {dimension_numbers = #tpu.dot_dimension_numbers<[1], [0], [0], [1], [0, 0, 1, 1], [], []>} : vector<32x128xbf16>, vector<128x128xbf16>, vector<32x128xf32> -> vector<32x128xf32>
    %c0_18 = arith.constant 0 : index
    %c0_19 = arith.constant 0 : index
    %24 = vector.load %arg9[%c0_18, %c0_19] : memref<1x128xf32, #tpu.memory_space<vmem>>, vector<1x128xf32>
    %25 = vector.broadcast %24 : vector<1x128xf32> to vector<32x128xf32>
    %26 = arith.addf %23, %25 : vector<32x128xf32>
    %27 = math.tanh %26 : vector<32x128xf32>
    %c0_20 = arith.constant 0 : index
    %c0_21 = arith.constant 0 : index
    %28 = vector.load %arg18[%c0_20, %c0_21] : memref<32x128xf32, #tpu.memory_space<vmem>>, vector<32x128xf32>
    tpu.vector_store %arg18[%c0_20, %c0_21], %27 {strides = array<i32>} : memref<32x128xf32, #tpu.memory_space<vmem>>, vector<32x128xf32>,
    %29 = arith.truncf %27 : vector<32x128xf32> to vector<32x128xbf16>
    %c0_22 = arith.constant 0 : index
    %c0_23 = arith.constant 0 : index
    %30 = vector.load %arg10[%c0_22, %c0_23] : memref<128x128xbf16, #tpu.memory_space<vmem>>, vector<128x128xbf16>
    %cst_24 = arith.constant dense<0.000000e+00> : vector<32x128xf32>
    %31 = tpu.matmul %29, %30, %cst_24 {dimension_numbers = #tpu.dot_dimension_numbers<[1], [0], [0], [1], [0, 0, 1, 1], [], []>} : vector<32x128xbf16>, vector<128x128xbf16>, vector<32x128xf32> -> vector<32x128xf32>
    %c0_25 = arith.constant 0 : index
    %c0_26 = arith.constant 0 : index
    %32 = vector.load %arg11[%c0_25, %c0_26] : memref<1x128xf32, #tpu.memory_space<vmem>>, vector<1x128xf32>
    %33 = vector.broadcast %32 : vector<1x128xf32> to vector<32x128xf32>
    %34 = arith.addf %31, %33 : vector<32x128xf32>
    %35 = math.tanh %34 : vector<32x128xf32>
    %36 = arith.truncf %35 : vector<32x128xf32> to vector<32x128xbf16>
    %c0_27 = arith.constant 0 : index
    %c0_28 = arith.constant 0 : index
    %37 = vector.load %arg12[%c0_27, %c0_28] : memref<128x256xbf16, #tpu.memory_space<vmem>>, vector<128x256xbf16>
    %cst_29 = arith.constant dense<0.000000e+00> : vector<32x256xf32>
    %38 = tpu.matmul %36, %37, %cst_29 {dimension_numbers = #tpu.dot_dimension_numbers<[1], [0], [0], [1], [0, 0, 1, 1], [], []>} : vector<32x128xbf16>, vector<128x256xbf16>, vector<32x256xf32> -> vector<32x256xf32>
    %c0_30 = arith.constant 0 : index
    %c0_31 = arith.constant 0 : index
    %39 = vector.load %arg13[%c0_30, %c0_31] : memref<1x256xf32, #tpu.memory_space<vmem>>, vector<1x256xf32>
    %40 = vector.broadcast %39 : vector<1x256xf32> to vector<32x256xf32>
    %41 = arith.addf %38, %40 : vector<32x256xf32>
    %42 = math.tanh %41 : vector<32x256xf32>
    %43 = arith.truncf %42 : vector<32x256xf32> to vector<32x256xbf16>
    %c0_32 = arith.constant 0 : index
    %c0_33 = arith.constant 0 : index
    %44 = vector.load %arg14[%c0_32, %c0_33] : memref<256x512xbf16, #tpu.memory_space<vmem>>, vector<256x512xbf16>
    %cst_34 = arith.constant dense<0.000000e+00> : vector<32x512xf32>
    %45 = tpu.matmul %43, %44, %cst_34 {dimension_numbers = #tpu.dot_dimension_numbers<[1], [0], [0], [1], [0, 0, 1, 1], [], []>} : vector<32x256xbf16>, vector<256x512xbf16>, vector<32x512xf32> -> vector<32x512xf32>
    %c0_35 = arith.constant 0 : index
    %c0_36 = arith.constant 0 : index
    %46 = vector.load %arg15[%c0_35, %c0_36] : memref<1x512xf32, #tpu.memory_space<vmem>>, vector<1x512xf32>
    %47 = vector.broadcast %46 : vector<1x512xf32> to vector<32x512xf32>
    %48 = arith.addf %45, %47 : vector<32x512xf32>
    %49 = math.tanh %48 : vector<32x512xf32>
    %50 = arith.truncf %49 : vector<32x512xf32> to vector<32x512xbf16>
    %c0_37 = arith.constant 0 : index
    %c0_38 = arith.constant 0 : index
    %51 = vector.load %arg16[%c0_37, %c0_38] : memref<512x896xbf16, #tpu.memory_space<vmem>>, vector<512x896xbf16>
    %cst_39 = arith.constant dense<0.000000e+00> : vector<32x896xf32>
    %52 = tpu.matmul %50, %51, %cst_39 {dimension_numbers = #tpu.dot_dimension_numbers<[1], [0], [0], [1], [0, 0, 1, 1], [], []>} : vector<32x512xbf16>, vector<512x896xbf16>, vector<32x896xf32> -> vector<32x896xf32>
    %c0_40 = arith.constant 0 : index
    %c0_41 = arith.constant 0 : index
    %53 = vector.load %arg17[%c0_40, %c0_41] : memref<1x896xf32, #tpu.memory_space<vmem>>, vector<1x896xf32>
    %54 = vector.broadcast %53 : vector<1x896xf32> to vector<32x896xf32>
    %55 = arith.addf %52, %54 : vector<32x896xf32>
    %56 = arith.negf %55 : vector<32x896xf32>
    %57 = math.exp %56 : vector<32x896xf32>
    %cst_42 = arith.constant 1.000000e+00 : f32
    %58 = vector.broadcast %cst_42 : f32 to vector<32x896xf32>
    %59 = arith.addf %58, %57 : vector<32x896xf32>
    %60 = arith.divf %58, %59 : vector<32x896xf32>
    %61 = arith.truncf %60 : vector<32x896xf32> to vector<32x896xbf16>
    %c0_43 = arith.constant 0 : index
    %c0_44 = arith.constant 0 : index
    %62 = vector.load %arg19[%c0_43, %c0_44] : memref<32x896xbf16, #tpu.memory_space<vmem>>, vector<32x896xbf16>
    tpu.vector_store %arg19[%c0_43, %c0_44], %61 {strides = array<i32>} : memref<32x896xbf16, #tpu.memory_space<vmem>>, vector<32x896xbf16>,
    return
  }
  func.func @transform_0(%arg0: i32) -> (i32, i32) {
    %c0_i32 = arith.constant 0 : i32
    %c0_i32_0 = arith.constant 0 : i32
    return %arg0, %c0_i32 : i32, i32
  }
  func.func @transform_1(%arg0: i32) -> (i32, i32) {
    %c0_i32 = arith.constant 0 : i32
    %c0_i32_0 = arith.constant 0 : i32
    %c0_i32_1 = arith.constant 0 : i32
    return %c0_i32, %c0_i32_0 : i32, i32
  }
  func.func @transform_2(%arg0: i32) -> (i32, i32) {
    %c0_i32 = arith.constant 0 : i32
    %c0_i32_0 = arith.constant 0 : i32
    %c0_i32_1 = arith.constant 0 : i32
    return %c0_i32, %c0_i32_0 : i32, i32
  }
  func.func @transform_3(%arg0: i32) -> (i32, i32) {
    %c0_i32 = arith.constant 0 : i32
    %c0_i32_0 = arith.constant 0 : i32
    %c0_i32_1 = arith.constant 0 : i32
    return %c0_i32, %c0_i32_0 : i32, i32
  }
  func.func @transform_4(%arg0: i32) -> (i32, i32) {
    %c0_i32 = arith.constant 0 : i32
    %c0_i32_0 = arith.constant 0 : i32
    %c0_i32_1 = arith.constant 0 : i32
    return %c0_i32, %c0_i32_0 : i32, i32
  }
  func.func @transform_5(%arg0: i32) -> (i32, i32) {
    %c0_i32 = arith.constant 0 : i32
    %c0_i32_0 = arith.constant 0 : i32
    %c0_i32_1 = arith.constant 0 : i32
    return %c0_i32, %c0_i32_0 : i32, i32
  }
  func.func @transform_6(%arg0: i32) -> (i32, i32) {
    %c0_i32 = arith.constant 0 : i32
    %c0_i32_0 = arith.constant 0 : i32
    %c0_i32_1 = arith.constant 0 : i32
    return %c0_i32, %c0_i32_0 : i32, i32
  }
  func.func @transform_7(%arg0: i32) -> (i32, i32) {
    %c0_i32 = arith.constant 0 : i32
    %c0_i32_0 = arith.constant 0 : i32
    %c0_i32_1 = arith.constant 0 : i32
    return %c0_i32, %c0_i32_0 : i32, i32
  }
  func.func @transform_8(%arg0: i32) -> (i32, i32) {
    %c0_i32 = arith.constant 0 : i32
    %c0_i32_0 = arith.constant 0 : i32
    %c0_i32_1 = arith.constant 0 : i32
    return %c0_i32, %c0_i32_0 : i32, i32
  }
  func.func @transform_9(%arg0: i32) -> (i32, i32) {
    %c0_i32 = arith.constant 0 : i32
    %c0_i32_0 = arith.constant 0 : i32
    %c0_i32_1 = arith.constant 0 : i32
    return %c0_i32, %c0_i32_0 : i32, i32
  }
  func.func @transform_10(%arg0: i32) -> (i32, i32) {
    %c0_i32 = arith.constant 0 : i32
    %c0_i32_0 = arith.constant 0 : i32
    %c0_i32_1 = arith.constant 0 : i32
    return %c0_i32, %c0_i32_0 : i32, i32
  }
  func.func @transform_11(%arg0: i32) -> (i32, i32) {
    %c0_i32 = arith.constant 0 : i32
    %c0_i32_0 = arith.constant 0 : i32
    %c0_i32_1 = arith.constant 0 : i32
    return %c0_i32, %c0_i32_0 : i32, i32
  }
  func.func @transform_12(%arg0: i32) -> (i32, i32) {
    %c0_i32 = arith.constant 0 : i32
    %c0_i32_0 = arith.constant 0 : i32
    %c0_i32_1 = arith.constant 0 : i32
    return %c0_i32, %c0_i32_0 : i32, i32
  }
  func.func @transform_13(%arg0: i32) -> (i32, i32) {
    %c0_i32 = arith.constant 0 : i32
    %c0_i32_0 = arith.constant 0 : i32
    %c0_i32_1 = arith.constant 0 : i32
    return %c0_i32, %c0_i32_0 : i32, i32
  }
  func.func @transform_14(%arg0: i32) -> (i32, i32) {
    %c0_i32 = arith.constant 0 : i32
    %c0_i32_0 = arith.constant 0 : i32
    %c0_i32_1 = arith.constant 0 : i32
    return %c0_i32, %c0_i32_0 : i32, i32
  }
  func.func @transform_15(%arg0: i32) -> (i32, i32) {
    %c0_i32 = arith.constant 0 : i32
    %c0_i32_0 = arith.constant 0 : i32
    %c0_i32_1 = arith.constant 0 : i32
    return %c0_i32, %c0_i32_0 : i32, i32
  }
  func.func @transform_16(%arg0: i32) -> (i32, i32) {
    %c0_i32 = arith.constant 0 : i32
    %c0_i32_0 = arith.constant 0 : i32
    %c0_i32_1 = arith.constant 0 : i32
    return %c0_i32, %c0_i32_0 : i32, i32
  }
  func.func @transform_17(%arg0: i32) -> (i32, i32) {
    %c0_i32 = arith.constant 0 : i32
    %c0_i32_0 = arith.constant 0 : i32
    return %arg0, %c0_i32 : i32, i32
  }
  func.func @transform_18(%arg0: i32) -> (i32, i32) {
    %c0_i32 = arith.constant 0 : i32
    %c0_i32_0 = arith.constant 0 : i32
    return %arg0, %c0_i32 : i32, i32
  }
}

</mosaic_0001>

<llo_original>
// kernel: tpu_custom_call.1
$region0: #{tpu_custom_call.1}
  #allocation0 [shape = 'u32[]', space=smem, size = 0x4, offset = 0x4, fixed_abs, tag = 'smem constant byte address 0x4 - core index']
  #allocation1 [shape = 'u32[144,128]{1,0:T(1,128)}', space=vmem, size = 0x12000, scoped, tag = 'internal scratch']
  %s0 = inlined_call_operand.hbm [shape: bf16[64,896], index: 0, kind: input, shape index: {}]
  %s1 = inlined_call_operand.hbm [shape: bf16[896,512], index: 1, kind: input, shape index: {}]
  %s2 = inlined_call_operand.vmem [shape: f32[1,512], index: 2, kind: input, shape index: {}]
  %s3 = inlined_call_operand.hbm [shape: bf16[512,256], index: 3, kind: input, shape index: {}]
  %s4 = inlined_call_operand.hbm [shape: f32[1,256], index: 4, kind: input, shape index: {}]
  %s5 = inlined_call_operand.hbm [shape: bf16[256,128], index: 5, kind: input, shape index: {}]
  %s6 = inlined_call_operand.vmem [shape: f32[1,128], index: 6, kind: input, shape index: {}]
  %s7 = inlined_call_operand.hbm [shape: bf16[128,128], index: 7, kind: input, shape index: {}]
  %s8 = inlined_call_operand.vmem [shape: f32[1,128], index: 8, kind: input, shape index: {}]
  %s9 = inlined_call_operand.hbm [shape: bf16[128,128], index: 9, kind: input, shape index: {}]
  %s10 = inlined_call_operand.vmem [shape: f32[1,128], index: 10, kind: input, shape index: {}]
  %s11 = inlined_call_operand.hbm [shape: bf16[128,256], index: 11, kind: input, shape index: {}]
  %s12 = inlined_call_operand.vmem [shape: f32[1,256], index: 12, kind: input, shape index: {}]
  %s13 = inlined_call_operand.hbm [shape: bf16[256,512], index: 13, kind: input, shape index: {}]
  %s14 = inlined_call_operand.vmem [shape: f32[1,512], index: 14, kind: input, shape index: {}]
  %s15 = inlined_call_operand.hbm [shape: bf16[512,896], index: 15, kind: input, shape index: {}]
  %s16 = inlined_call_operand.vmem [shape: f32[1,896], index: 16, kind: input, shape index: {}]
  %s17 = inlined_call_operand.hbm [shape: f32[64,128], index: 17, kind: output, shape index: {0}]
  %s18 = inlined_call_operand.hbm [shape: bf16[64,896], index: 18, kind: output, shape index: {1}]
  %19 = xla_tuple %s17, %s18
  %s20 = sld [smem:[#allocation0]]
  $region149: #{tpu_custom_call.1} parent=0
    _
  %s22 = ssub.s32 1, %s20
  %s23 = scalar_select 0, %s22, %s20
  $region1: #{tpu_custom_call.1} parent=0
    #allocation2 [shape = 'u8[114688]{0}', space=vmem, size = 0x1c000, scoped, tag = 'input window, operand 0']
    #allocation3 [shape = 's32[2]{0}', space=sflag, size = 0x8, scoped, tag = 'scoped memory for tpu_custom_call.1']
    #allocation4 [shape = 's32[2]{0}', space=sflag, size = 0x8, scoped, tag = 'scoped memory for tpu_custom_call.1']
    #allocation5 [shape = 'u8[917504]{0}', space=vmem, size = 0xe0000, scoped, tag = 'input window, operand 1, single buffered']
    #allocation6 [shape = 's32[1]{0}', space=sflag, size = 0x4, scoped, tag = 'scoped memory for tpu_custom_call.1']
    #allocation7 [shape = 'u8[262144]{0}', space=vmem, size = 0x40000, scoped, tag = 'input window, operand 3, single buffered']
    #allocation8 [shape = 'u8[1024]{0}', space=vmem, size = 0x400, scoped, tag = 'input window, operand 4, single buffered']
    #allocation9 [shape = 's32[1]{0}', space=sflag, size = 0x4, scoped, tag = 'scoped memory for tpu_custom_call.1']
    #allocation10 [shape = 'u8[65536]{0}', space=vmem, size = 0x10000, scoped, tag = 'input window, operand 5, single buffered']
    #allocation11 [shape = 'u8[32768]{0}', space=vmem, size = 0x8000, scoped, tag = 'input window, operand 7, single buffered']
    #allocation12 [shape = 's32[1]{0}', space=sflag, size = 0x4, scoped, tag = 'scoped memory for tpu_custom_call.1']
    #allocation13 [shape = 'u8[32768]{0}', space=vmem, size = 0x8000, scoped, tag = 'input window, operand 9, single buffered']
    #allocation14 [shape = 'u8[65536]{0}', space=vmem, size = 0x10000, scoped, tag = 'input window, operand 11, single buffered']
    #allocation15 [shape = 's32[1]{0}', space=sflag, size = 0x4, scoped, tag = 'scoped memory for tpu_custom_call.1']
    #allocation16 [shape = 'u8[262144]{0}', space=vmem, size = 0x40000, scoped, tag = 'input window, operand 13, single buffered']
    #allocation17 [shape = 'u8[917504]{0}', space=vmem, size = 0xe0000, scoped, tag = 'input window, operand 15, single buffered']
    #allocation18 [shape = 's32[1]{0}', space=sflag, size = 0x4, scoped, tag = 'scoped memory for tpu_custom_call.1']
    #allocation19 [shape = 'u8[32768]{0}', space=vmem, size = 0x8000, scoped, tag = 'output window, operand 0']
    #allocation20 [shape = 'u8[114688]{0}', space=vmem, size = 0x1c000, scoped, tag = 'output window, operand 1']
    #allocation21 [shape = 's32[2]{0}', space=sflag, size = 0x8, scoped, tag = 'scoped memory for tpu_custom_call.1']
    %24 = vsyncpa [#allocation3], 0
    %s25 = scalar_lea.sflag [#allocation3], 1
    %26 = vsyncpa %s25, 0
    %27 = vsyncpa [#allocation6], 0
    %28 = vsyncpa [#allocation9], 0
    %29 = vsyncpa [#allocation12], 0
    %30 = vsyncpa [#allocation15], 0
    %31 = vsyncpa [#allocation18], 0
    %32 = vsyncpa [#allocation4], 0
    %s33 = scalar_lea.sflag [#allocation4], 1
    %34 = vsyncpa %s33, 0
    %35 = vsyncpa [#allocation21], 0
    %s36 = scalar_lea.sflag [#allocation21], 1
    %37 = vsyncpa %s36, 0
    loop: start=0, step=1, limit=4
    $region2: #{tpu_custom_call.1} parent=1 // loop_pre_header
      _
    $region3: #{tpu_custom_call.1} parent=1 // loop_header
      %s39 = sphi 0, %s43
      %p40 = scmp.ge.s32.totalorder %s39, 4
      %s49 = sphi 0, %s51
      %s52 = sphi 0, %s49
      %s53 = sphi 0, %s52
      %s69 = sphi 0, %s53
      %s73 = sphi 0, %s73
      %s75 = sphi 0, %s73
      %s76 = sphi 0, %s75
      %s90 = sphi 0, %s76
      %s94 = sphi 0, %s94
      %s96 = sphi 0, %s94
      %s97 = sphi 0, %s96
      %s111 = sphi 0, %s97
      %s115 = sphi 0, %s115
      %s117 = sphi 0, %s115
      %s118 = sphi 0, %s117
      %s132 = sphi 0, %s118
      %s136 = sphi 0, %s136
      %s138 = sphi 0, %s136
      %s139 = sphi 0, %s138
      %s153 = sphi 0, %s139
      %s157 = sphi 0, %s157
      %s159 = sphi 0, %s157
      %s160 = sphi 0, %s159
      %s174 = sphi 0, %s160
      %s178 = sphi 0, %s178
      %s180 = sphi 0, %s178
      %s181 = sphi 0, %s180
      %s195 = sphi 0, %s181
      %s199 = sphi 0, %s199
      %s201 = sphi 0, %s199
      %s202 = sphi 0, %s201
      %s216 = sphi 0, %s202
      %s220 = sphi 0, %s220
      %s222 = sphi 0, %s220
      %s223 = sphi 0, %s222
      %s237 = sphi 0, %s223
      %s241 = sphi 0, %s241
      %s243 = sphi 0, %s241
      %s244 = sphi 0, %s243
      %s258 = sphi 0, %s244
      %s262 = sphi 0, %s262
      %s264 = sphi 0, %s262
      %s265 = sphi 0, %s264
      %s279 = sphi 0, %s265
      %s283 = sphi 0, %s283
      %s285 = sphi 0, %s283
      %s286 = sphi 0, %s285
      %s300 = sphi 0, %s286
      %s304 = sphi 0, %s304
      %s306 = sphi 0, %s304
      %s307 = sphi 0, %s306
      %s321 = sphi 0, %s307
      %s325 = sphi 0, %s325
      %s327 = sphi 0, %s325
      %s328 = sphi 0, %s327
      %s342 = sphi 0, %s328
      %s346 = sphi 0, %s346
      %s348 = sphi 0, %s346
      %s349 = sphi 0, %s348
      %s363 = sphi 0, %s349
      %s367 = sphi 0, %s367
      %s369 = sphi 0, %s367
      %s370 = sphi 0, %s369
      %s384 = sphi 0, %s370
      %s388 = sphi 0, %s388
      %s390 = sphi 0, %s388
      %s391 = sphi 0, %s390
      %s405 = sphi 0, %s391
      %s411 = sphi 0, %s413
      %s414 = sphi 0, %s411
      %s415 = sphi 0, %s414
      %s431 = sphi 0, %s415
      %s437 = sphi 0, %s439
      %s440 = sphi 0, %s437
      %s441 = sphi 0, %s440
      %s457 = sphi 0, %s441
    $region4: #{tpu_custom_call.1} parent=1 // loop_header_branch
      %42 = sbr.rel (%p40) target = $region8
    $region5: #{tpu_custom_call.1} parent=1 // loop_body
      %s44 = ssub.s32 %s39, 1
      %s45 = ssub.s32 %s39, 2
      %s46 = sadd.s32 %s39, 1
      %s47 = ssub.s32 %s39, %s46
      %p48 = scmp.eq.s32.totalorder %s47, 0
      %s50 = sadd.s32 %s49, 1
      %s51 = scalar_select %p48, %s49, %s50
      %p54 = pneg %p48
      %p55 = scmp.eq.s32.totalorder %s39, 1
      %p56 = por %p54, %p55
      %p57 = scmp.ne.s32.totalorder %s49, %s52
      %p58 = scmp.eq.s32.totalorder %s39, 0
      %p59 = por %p57, %p58
      %p60 = scmp.ne.s32.totalorder %s49, %s52
      %p61 = scmp.eq.s32.totalorder %s44, 1
      %p62 = por %p60, %p61
      %p63 = scmp.ne.s32.totalorder %s52, %s53
      %p64 = scmp.eq.s32.totalorder %s44, 0
      %p65 = por %p63, %p64
      %p66 = scmp.ne.s32.totalorder %s52, %s53
      %p67 = scmp.eq.s32.totalorder %s45, 1
      %p68 = por %p66, %p67
      %p70 = scmp.ne.s32.totalorder %s53, %s69
      %p71 = scmp.eq.s32.totalorder %s45, 0
      %p72 = por %p70, %p71
      %s74 = sadd.s32 %s73, 1
      %p77 = scmp.eq.s32.totalorder %s39, 1
      %p78 = scmp.ne.s32.totalorder %s73, %s75
      %p79 = scmp.eq.s32.totalorder %s39, 0
      %p80 = por %p78, %p79
      %p81 = scmp.ne.s32.totalorder %s73, %s75
      %p82 = scmp.eq.s32.totalorder %s44, 1
      %p83 = por %p81, %p82
      %p84 = scmp.ne.s32.totalorder %s75, %s76
      %p85 = scmp.eq.s32.totalorder %s44, 0
      %p86 = por %p84, %p85
      %p87 = scmp.ne.s32.totalorder %s75, %s76
      %p88 = scmp.eq.s32.totalorder %s45, 1
      %p89 = por %p87, %p88
      %p91 = scmp.ne.s32.totalorder %s76, %s90
      %p92 = scmp.eq.s32.totalorder %s45, 0
      %p93 = por %p91, %p92
      %s95 = sadd.s32 %s94, 1
      %p98 = scmp.eq.s32.totalorder %s39, 1
      %p99 = scmp.ne.s32.totalorder %s94, %s96
      %p100 = scmp.eq.s32.totalorder %s39, 0
      %p101 = por %p99, %p100
      %p102 = scmp.ne.s32.totalorder %s94, %s96
      %p103 = scmp.eq.s32.totalorder %s44, 1
      %p104 = por %p102, %p103
      %p105 = scmp.ne.s32.totalorder %s96, %s97
      %p106 = scmp.eq.s32.totalorder %s44, 0
      %p107 = por %p105, %p106
      %p108 = scmp.ne.s32.totalorder %s96, %s97
      %p109 = scmp.eq.s32.totalorder %s45, 1
      %p110 = por %p108, %p109
      %p112 = scmp.ne.s32.totalorder %s97, %s111
      %p113 = scmp.eq.s32.totalorder %s45, 0
      %p114 = por %p112, %p113
      %s116 = sadd.s32 %s115, 1
      %p119 = scmp.eq.s32.totalorder %s39, 1
      %p120 = scmp.ne.s32.totalorder %s115, %s117
      %p121 = scmp.eq.s32.totalorder %s39, 0
      %p122 = por %p120, %p121
      %p123 = scmp.ne.s32.totalorder %s115, %s117
      %p124 = scmp.eq.s32.totalorder %s44, 1
      %p125 = por %p123, %p124
      %p126 = scmp.ne.s32.totalorder %s117, %s118
      %p127 = scmp.eq.s32.totalorder %s44, 0
      %p128 = por %p126, %p127
      %p129 = scmp.ne.s32.totalorder %s117, %s118
      %p130 = scmp.eq.s32.totalorder %s45, 1
      %p131 = por %p129, %p130
      %p133 = scmp.ne.s32.totalorder %s118, %s132
      %p134 = scmp.eq.s32.totalorder %s45, 0
      %p135 = por %p133, %p134
      %s137 = sadd.s32 %s136, 1
      %p140 = scmp.eq.s32.totalorder %s39, 1
      %p141 = scmp.ne.s32.totalorder %s136, %s138
      %p142 = scmp.eq.s32.totalorder %s39, 0
      %p143 = por %p141, %p142
      %p144 = scmp.ne.s32.totalorder %s136, %s138
      %p145 = scmp.eq.s32.totalorder %s44, 1
      %p146 = por %p144, %p145
      %p147 = scmp.ne.s32.totalorder %s138, %s139
      %p148 = scmp.eq.s32.totalorder %s44, 0
      %p149 = por %p147, %p148
      %p150 = scmp.ne.s32.totalorder %s138, %s139
      %p151 = scmp.eq.s32.totalorder %s45, 1
      %p152 = por %p150, %p151
      %p154 = scmp.ne.s32.totalorder %s139, %s153
      %p155 = scmp.eq.s32.totalorder %s45, 0
      %p156 = por %p154, %p155
      %s158 = sadd.s32 %s157, 1
      %p161 = scmp.eq.s32.totalorder %s39, 1
      %p162 = scmp.ne.s32.totalorder %s157, %s159
      %p163 = scmp.eq.s32.totalorder %s39, 0
      %p164 = por %p162, %p163
      %p165 = scmp.ne.s32.totalorder %s157, %s159
      %p166 = scmp.eq.s32.totalorder %s44, 1
      %p167 = por %p165, %p166
      %p168 = scmp.ne.s32.totalorder %s159, %s160
      %p169 = scmp.eq.s32.totalorder %s44, 0
      %p170 = por %p168, %p169
      %p171 = scmp.ne.s32.totalorder %s159, %s160
      %p172 = scmp.eq.s32.totalorder %s45, 1
      %p173 = por %p171, %p172
      %p175 = scmp.ne.s32.totalorder %s160, %s174
      %p176 = scmp.eq.s32.totalorder %s45, 0
      %p177 = por %p175, %p176
      %s179 = sadd.s32 %s178, 1
      %p182 = scmp.eq.s32.totalorder %s39, 1
      %p183 = scmp.ne.s32.totalorder %s178, %s180
      %p184 = scmp.eq.s32.totalorder %s39, 0
      %p185 = por %p183, %p184
      %p186 = scmp.ne.s32.totalorder %s178, %s180
      %p187 = scmp.eq.s32.totalorder %s44, 1
      %p188 = por %p186, %p187
      %p189 = scmp.ne.s32.totalorder %s180, %s181
      %p190 = scmp.eq.s32.totalorder %s44, 0
      %p191 = por %p189, %p190
      %p192 = scmp.ne.s32.totalorder %s180, %s181
      %p193 = scmp.eq.s32.totalorder %s45, 1
      %p194 = por %p192, %p193
      %p196 = scmp.ne.s32.totalorder %s181, %s195
      %p197 = scmp.eq.s32.totalorder %s45, 0
      %p198 = por %p196, %p197
      %s200 = sadd.s32 %s199, 1
      %p203 = scmp.eq.s32.totalorder %s39, 1
      %p204 = scmp.ne.s32.totalorder %s199, %s201
      %p205 = scmp.eq.s32.totalorder %s39, 0
      %p206 = por %p204, %p205
      %p207 = scmp.ne.s32.totalorder %s199, %s201
      %p208 = scmp.eq.s32.totalorder %s44, 1
      %p209 = por %p207, %p208
      %p210 = scmp.ne.s32.totalorder %s201, %s202
      %p211 = scmp.eq.s32.totalorder %s44, 0
      %p212 = por %p210, %p211
      %p213 = scmp.ne.s32.totalorder %s201, %s202
      %p214 = scmp.eq.s32.totalorder %s45, 1
      %p215 = por %p213, %p214
      %p217 = scmp.ne.s32.totalorder %s202, %s216
      %p218 = scmp.eq.s32.totalorder %s45, 0
      %p219 = por %p217, %p218
      %s221 = sadd.s32 %s220, 1
      %p224 = scmp.eq.s32.totalorder %s39, 1
      %p225 = scmp.ne.s32.totalorder %s220, %s222
      %p226 = scmp.eq.s32.totalorder %s39, 0
      %p227 = por %p225, %p226
      %p228 = scmp.ne.s32.totalorder %s220, %s222
      %p229 = scmp.eq.s32.totalorder %s44, 1
      %p230 = por %p228, %p229
      %p231 = scmp.ne.s32.totalorder %s222, %s223
      %p232 = scmp.eq.s32.totalorder %s44, 0
      %p233 = por %p231, %p232
      %p234 = scmp.ne.s32.totalorder %s222, %s223
      %p235 = scmp.eq.s32.totalorder %s45, 1
      %p236 = por %p234, %p235
      %p238 = scmp.ne.s32.totalorder %s223, %s237
      %p239 = scmp.eq.s32.totalorder %s45, 0
      %p240 = por %p238, %p239
      %s242 = sadd.s32 %s241, 1
      %p245 = scmp.eq.s32.totalorder %s39, 1
      %p246 = scmp.ne.s32.totalorder %s241, %s243
      %p247 = scmp.eq.s32.totalorder %s39, 0
      %p248 = por %p246, %p247
      %p249 = scmp.ne.s32.totalorder %s241, %s243
      %p250 = scmp.eq.s32.totalorder %s44, 1
      %p251 = por %p249, %p250
      %p252 = scmp.ne.s32.totalorder %s243, %s244
      %p253 = scmp.eq.s32.totalorder %s44, 0
      %p254 = por %p252, %p253
      %p255 = scmp.ne.s32.totalorder %s243, %s244
      %p256 = scmp.eq.s32.totalorder %s45, 1
      %p257 = por %p255, %p256
      %p259 = scmp.ne.s32.totalorder %s244, %s258
      %p260 = scmp.eq.s32.totalorder %s45, 0
      %p261 = por %p259, %p260
      %s263 = sadd.s32 %s262, 1
      %p266 = scmp.eq.s32.totalorder %s39, 1
      %p267 = scmp.ne.s32.totalorder %s262, %s264
      %p268 = scmp.eq.s32.totalorder %s39, 0
      %p269 = por %p267, %p268
      %p270 = scmp.ne.s32.totalorder %s262, %s264
      %p271 = scmp.eq.s32.totalorder %s44, 1
      %p272 = por %p270, %p271
      %p273 = scmp.ne.s32.totalorder %s264, %s265
      %p274 = scmp.eq.s32.totalorder %s44, 0
      %p275 = por %p273, %p274
      %p276 = scmp.ne.s32.totalorder %s264, %s265
      %p277 = scmp.eq.s32.totalorder %s45, 1
      %p278 = por %p276, %p277
      %p280 = scmp.ne.s32.totalorder %s265, %s279
      %p281 = scmp.eq.s32.totalorder %s45, 0
      %p282 = por %p280, %p281
      %s284 = sadd.s32 %s283, 1
      %p287 = scmp.eq.s32.totalorder %s39, 1
      %p288 = scmp.ne.s32.totalorder %s283, %s285
      %p289 = scmp.eq.s32.totalorder %s39, 0
      %p290 = por %p288, %p289
      %p291 = scmp.ne.s32.totalorder %s283, %s285
      %p292 = scmp.eq.s32.totalorder %s44, 1
      %p293 = por %p291, %p292
      %p294 = scmp.ne.s32.totalorder %s285, %s286
      %p295 = scmp.eq.s32.totalorder %s44, 0
      %p296 = por %p294, %p295
      %p297 = scmp.ne.s32.totalorder %s285, %s286
      %p298 = scmp.eq.s32.totalorder %s45, 1
      %p299 = por %p297, %p298
      %p301 = scmp.ne.s32.totalorder %s286, %s300
      %p302 = scmp.eq.s32.totalorder %s45, 0
      %p303 = por %p301, %p302
      %s305 = sadd.s32 %s304, 1
      %p308 = scmp.eq.s32.totalorder %s39, 1
      %p309 = scmp.ne.s32.totalorder %s304, %s306
      %p310 = scmp.eq.s32.totalorder %s39, 0
      %p311 = por %p309, %p310
      %p312 = scmp.ne.s32.totalorder %s304, %s306
      %p313 = scmp.eq.s32.totalorder %s44, 1
      %p314 = por %p312, %p313
      %p315 = scmp.ne.s32.totalorder %s306, %s307
      %p316 = scmp.eq.s32.totalorder %s44, 0
      %p317 = por %p315, %p316
      %p318 = scmp.ne.s32.totalorder %s306, %s307
      %p319 = scmp.eq.s32.totalorder %s45, 1
      %p320 = por %p318, %p319
      %p322 = scmp.ne.s32.totalorder %s307, %s321
      %p323 = scmp.eq.s32.totalorder %s45, 0
      %p324 = por %p322, %p323
      %s326 = sadd.s32 %s325, 1
      %p329 = scmp.eq.s32.totalorder %s39, 1
      %p330 = scmp.ne.s32.totalorder %s325, %s327
      %p331 = scmp.eq.s32.totalorder %s39, 0
      %p332 = por %p330, %p331
      %p333 = scmp.ne.s32.totalorder %s325, %s327
      %p334 = scmp.eq.s32.totalorder %s44, 1
      %p335 = por %p333, %p334
      %p336 = scmp.ne.s32.totalorder %s327, %s328
      %p337 = scmp.eq.s32.totalorder %s44, 0
      %p338 = por %p336, %p337
      %p339 = scmp.ne.s32.totalorder %s327, %s328
      %p340 = scmp.eq.s32.totalorder %s45, 1
      %p341 = por %p339, %p340
      %p343 = scmp.ne.s32.totalorder %s328, %s342
      %p344 = scmp.eq.s32.totalorder %s45, 0
      %p345 = por %p343, %p344
      %s347 = sadd.s32 %s346, 1
      %p350 = scmp.eq.s32.totalorder %s39, 1
      %p351 = scmp.ne.s32.totalorder %s346, %s348
      %p352 = scmp.eq.s32.totalorder %s39, 0
      %p353 = por %p351, %p352
      %p354 = scmp.ne.s32.totalorder %s346, %s348
      %p355 = scmp.eq.s32.totalorder %s44, 1
      %p356 = por %p354, %p355
      %p357 = scmp.ne.s32.totalorder %s348, %s349
      %p358 = scmp.eq.s32.totalorder %s44, 0
      %p359 = por %p357, %p358
      %p360 = scmp.ne.s32.totalorder %s348, %s349
      %p361 = scmp.eq.s32.totalorder %s45, 1
      %p362 = por %p360, %p361
      %p364 = scmp.ne.s32.totalorder %s349, %s363
      %p365 = scmp.eq.s32.totalorder %s45, 0
      %p366 = por %p364, %p365
      %s368 = sadd.s32 %s367, 1
      %p371 = scmp.eq.s32.totalorder %s39, 1
      %p372 = scmp.ne.s32.totalorder %s367, %s369
      %p373 = scmp.eq.s32.totalorder %s39, 0
      %p374 = por %p372, %p373
      %p375 = scmp.ne.s32.totalorder %s367, %s369
      %p376 = scmp.eq.s32.totalorder %s44, 1
      %p377 = por %p375, %p376
      %p378 = scmp.ne.s32.totalorder %s369, %s370
      %p379 = scmp.eq.s32.totalorder %s44, 0
      %p380 = por %p378, %p379
      %p381 = scmp.ne.s32.totalorder %s369, %s370
      %p382 = scmp.eq.s32.totalorder %s45, 1
      %p383 = por %p381, %p382
      %p385 = scmp.ne.s32.totalorder %s370, %s384
      %p386 = scmp.eq.s32.totalorder %s45, 0
      %p387 = por %p385, %p386
      %s389 = sadd.s32 %s388, 1
      %p392 = scmp.eq.s32.totalorder %s39, 1
      %p393 = scmp.ne.s32.totalorder %s388, %s390
      %p394 = scmp.eq.s32.totalorder %s39, 0
      %p395 = por %p393, %p394
      %p396 = scmp.ne.s32.totalorder %s388, %s390
      %p397 = scmp.eq.s32.totalorder %s44, 1
      %p398 = por %p396, %p397
      %p399 = scmp.ne.s32.totalorder %s390, %s391
      %p400 = scmp.eq.s32.totalorder %s44, 0
      %p401 = por %p399, %p400
      %p402 = scmp.ne.s32.totalorder %s390, %s391
      %p403 = scmp.eq.s32.totalorder %s45, 1
      %p404 = por %p402, %p403
      %p406 = scmp.ne.s32.totalorder %s391, %s405
      %p407 = scmp.eq.s32.totalorder %s45, 0
      %p408 = por %p406, %p407
      %s409 = ssub.s32 %s39, %s46
      %p410 = scmp.eq.s32.totalorder %s409, 0
      %s412 = sadd.s32 %s411, 1
      %s413 = scalar_select %p410, %s411, %s412
      %p416 = pneg %p410
      %p417 = scmp.eq.s32.totalorder %s39, 1
      %p418 = por %p416, %p417
      %p419 = scmp.ne.s32.totalorder %s411, %s414
      %p420 = scmp.eq.s32.totalorder %s39, 0
      %p421 = por %p419, %p420
      %p422 = scmp.ne.s32.totalorder %s411, %s414
      %p423 = scmp.eq.s32.totalorder %s44, 1
      %p424 = por %p422, %p423
      %p425 = scmp.ne.s32.totalorder %s414, %s415
      %p426 = scmp.eq.s32.totalorder %s44, 0
      %p427 = por %p425, %p426
      %p428 = scmp.ne.s32.totalorder %s414, %s415
      %p429 = scmp.eq.s32.totalorder %s45, 1
      %p430 = por %p428, %p429
      %p432 = scmp.ne.s32.totalorder %s415, %s431
      %p433 = scmp.eq.s32.totalorder %s45, 0
      %p434 = por %p432, %p433
      %s435 = ssub.s32 %s39, %s46
      %p436 = scmp.eq.s32.totalorder %s435, 0
      %s438 = sadd.s32 %s437, 1
      %s439 = scalar_select %p436, %s437, %s438
      %p442 = pneg %p436
      %p443 = scmp.eq.s32.totalorder %s39, 1
      %p444 = por %p442, %p443
      %p445 = scmp.ne.s32.totalorder %s437, %s440
      %p446 = scmp.eq.s32.totalorder %s39, 0
      %p447 = por %p445, %p446
      %p448 = scmp.ne.s32.totalorder %s437, %s440
      %p449 = scmp.eq.s32.totalorder %s44, 1
      %p450 = por %p448, %p449
      %p451 = scmp.ne.s32.totalorder %s440, %s441
      %p452 = scmp.eq.s32.totalorder %s44, 0
      %p453 = por %p451, %p452
      %p454 = scmp.ne.s32.totalorder %s440, %s441
      %p455 = scmp.eq.s32.totalorder %s45, 1
      %p456 = por %p454, %p455
      %p458 = scmp.ne.s32.totalorder %s441, %s457
      %p459 = scmp.eq.s32.totalorder %s45, 0
      %p460 = por %p458, %p459
      %p461 = scmp.le.s32.totalorder 1, %s39
      %p462 = scmp.lt.s32.totalorder %s39, 3
      %p463 = pnand %p461, %p462
      %p464 = pneg %p463
      // Predicated region
      $region9: #{tpu_custom_call.1} parent=5 // pred_check
        _
      $region10: #{tpu_custom_call.1} parent=5 // pred_check_branch
        %466 = sbr.rel (%p463) target = $region12
      $region11: #{tpu_custom_call.1} parent=5 // pred_region
        %s467 = ssub.s32 %s39, 1
        // Predicated region
        $region13: #{tpu_custom_call.1} parent=11 // pred_check
          %p468 = pneg %p86
        $region14: #{tpu_custom_call.1} parent=11 // pred_check_branch
          %470 = sbr.rel (%p468) target = $region16
        $region15: #{tpu_custom_call.1} parent=11 // pred_region
          %s472 = ssub.s32 28672, 28672
          %473 = vsyncadd [#allocation6], %s472
          %s474 = sshll.u32 [#allocation5], 4
          %s475 = int_to_ptr.vmem [resolvable:$true] %s474
          %480 = dma.hbm_to_vmem [thread:$0]  %s1, 28672, %s475, [#allocation6], 256, 256, 16
        $region16: #{tpu_custom_call.1} parent=11 // pred_fallthru
          _
        // Predicated region
        $region17: #{tpu_custom_call.1} parent=11 // pred_check
          %p481 = pneg %p107
        $region18: #{tpu_custom_call.1} parent=11 // pred_check_branch
          %483 = sbr.rel (%p481) target = $region20
        $region19: #{tpu_custom_call.1} parent=11 // pred_region
          _
        $region20: #{tpu_custom_call.1} parent=11 // pred_fallthru
          _
        // Predicated region
        $region21: #{tpu_custom_call.1} parent=11 // pred_check
          %p484 = pneg %p128
        $region22: #{tpu_custom_call.1} parent=11 // pred_check_branch
          %486 = sbr.rel (%p484) target = $region24
        $region23: #{tpu_custom_call.1} parent=11 // pred_region
          %s488 = ssub.s32 8192, 8192
          %489 = vsyncadd [#allocation6], %s488
          %s490 = sshll.u32 [#allocation7], 4
          %s491 = int_to_ptr.vmem [resolvable:$true] %s490
          %496 = dma.hbm_to_vmem [thread:$0]  %s3, 8192, %s491, [#allocation6], 128, 128, 8
        $region24: #{tpu_custom_call.1} parent=11 // pred_fallthru
          _
        // Predicated region
        $region25: #{tpu_custom_call.1} parent=11 // pred_check
          %p497 = pneg %p149
        $region26: #{tpu_custom_call.1} parent=11 // pred_check_branch
          %499 = sbr.rel (%p497) target = $region28
        $region27: #{tpu_custom_call.1} parent=11 // pred_region
          %s501 = ssub.s32 32, 32
          %502 = vsyncadd [#allocation9], %s501
          %s504 = sshll.u32 [#allocation8], 4
          %s505 = int_to_ptr.vmem [resolvable:$true] %s504
          %507 = dma.hbm_to_vmem [thread:$0]  %s4, 32, %s505, [#allocation9]
        $region28: #{tpu_custom_call.1} parent=11 // pred_fallthru
          _
        // Predicated region
        $region29: #{tpu_custom_call.1} parent=11 // pred_check
          %p508 = pneg %p170
        $region30: #{tpu_custom_call.1} parent=11 // pred_check_branch
          %510 = sbr.rel (%p508) target = $region32
        $region31: #{tpu_custom_call.1} parent=11 // pred_region
          %s512 = ssub.s32 2048, 2048
          %513 = vsyncadd [#allocation9], %s512
          %s514 = sshll.u32 [#allocation10], 4
          %s515 = int_to_ptr.vmem [resolvable:$true] %s514
          %520 = dma.hbm_to_vmem [thread:$0]  %s5, 2048, %s515, [#allocation9], 64, 64, 4
        $region32: #{tpu_custom_call.1} parent=11 // pred_fallthru
          _
        // Predicated region
        $region33: #{tpu_custom_call.1} parent=11 // pred_check
          %p521 = pneg %p191
        $region34: #{tpu_custom_call.1} parent=11 // pred_check_branch
          %523 = sbr.rel (%p521) target = $region36
        $region35: #{tpu_custom_call.1} parent=11 // pred_region
          _
        $region36: #{tpu_custom_call.1} parent=11 // pred_fallthru
          _
        // Predicated region
        $region37: #{tpu_custom_call.1} parent=11 // pred_check
          %p524 = pneg %p212
        $region38: #{tpu_custom_call.1} parent=11 // pred_check_branch
          %526 = sbr.rel (%p524) target = $region40
        $region39: #{tpu_custom_call.1} parent=11 // pred_region
          %s528 = ssub.s32 1024, 1024
          %529 = vsyncadd [#allocation12], %s528
          %s530 = sshll.u32 [#allocation11], 4
          %s531 = int_to_ptr.vmem [resolvable:$true] %s530
          %536 = dma.hbm_to_vmem [thread:$0]  %s7, 1024, %s531, [#allocation12], 64, 64, 4
        $region40: #{tpu_custom_call.1} parent=11 // pred_fallthru
          _
        // Predicated region
        $region41: #{tpu_custom_call.1} parent=11 // pred_check
          %p537 = pneg %p233
        $region42: #{tpu_custom_call.1} parent=11 // pred_check_branch
          %539 = sbr.rel (%p537) target = $region44
        $region43: #{tpu_custom_call.1} parent=11 // pred_region
          _
        $region44: #{tpu_custom_call.1} parent=11 // pred_fallthru
          _
        // Predicated region
        $region45: #{tpu_custom_call.1} parent=11 // pred_check
          %p540 = pneg %p254
        $region46: #{tpu_custom_call.1} parent=11 // pred_check_branch
          %542 = sbr.rel (%p540) target = $region48
        $region47: #{tpu_custom_call.1} parent=11 // pred_region
          %s544 = ssub.s32 1024, 1024
          %545 = vsyncadd [#allocation12], %s544
          %s546 = sshll.u32 [#allocation13], 4
          %s547 = int_to_ptr.vmem [resolvable:$true] %s546
          %552 = dma.hbm_to_vmem [thread:$0]  %s9, 1024, %s547, [#allocation12], 64, 64, 4
        $region48: #{tpu_custom_call.1} parent=11 // pred_fallthru
          _
        // Predicated region
        $region49: #{tpu_custom_call.1} parent=11 // pred_check
          %p553 = pneg %p275
        $region50: #{tpu_custom_call.1} parent=11 // pred_check_branch
          %555 = sbr.rel (%p553) target = $region52
        $region51: #{tpu_custom_call.1} parent=11 // pred_region
          _
        $region52: #{tpu_custom_call.1} parent=11 // pred_fallthru
          _
        // Predicated region
        $region53: #{tpu_custom_call.1} parent=11 // pred_check
          %p556 = pneg %p296
        $region54: #{tpu_custom_call.1} parent=11 // pred_check_branch
          %558 = sbr.rel (%p556) target = $region56
        $region55: #{tpu_custom_call.1} parent=11 // pred_region
          %s560 = ssub.s32 2048, 2048
          %561 = vsyncadd [#allocation15], %s560
          %s562 = sshll.u32 [#allocation14], 4
          %s563 = int_to_ptr.vmem [resolvable:$true] %s562
          %568 = dma.hbm_to_vmem [thread:$0]  %s11, 2048, %s563, [#allocation15], 128, 128, 8
        $region56: #{tpu_custom_call.1} parent=11 // pred_fallthru
          _
        // Predicated region
        $region57: #{tpu_custom_call.1} parent=11 // pred_check
          %p569 = pneg %p317
        $region58: #{tpu_custom_call.1} parent=11 // pred_check_branch
          %571 = sbr.rel (%p569) target = $region60
        $region59: #{tpu_custom_call.1} parent=11 // pred_region
          _
        $region60: #{tpu_custom_call.1} parent=11 // pred_fallthru
          _
        // Predicated region
        $region61: #{tpu_custom_call.1} parent=11 // pred_check
          %p572 = pneg %p338
        $region62: #{tpu_custom_call.1} parent=11 // pred_check_branch
          %574 = sbr.rel (%p572) target = $region64
        $region63: #{tpu_custom_call.1} parent=11 // pred_region
          %s576 = ssub.s32 8192, 8192
          %577 = vsyncadd [#allocation15], %s576
          %s578 = sshll.u32 [#allocation16], 4
          %s579 = int_to_ptr.vmem [resolvable:$true] %s578
          %584 = dma.hbm_to_vmem [thread:$0]  %s13, 8192, %s579, [#allocation15], 256, 256, 16
        $region64: #{tpu_custom_call.1} parent=11 // pred_fallthru
          _
        // Predicated region
        $region65: #{tpu_custom_call.1} parent=11 // pred_check
          %p585 = pneg %p359
        $region66: #{tpu_custom_call.1} parent=11 // pred_check_branch
          %587 = sbr.rel (%p585) target = $region68
        $region67: #{tpu_custom_call.1} parent=11 // pred_region
          _
        $region68: #{tpu_custom_call.1} parent=11 // pred_fallthru
          _
        // Predicated region
        $region69: #{tpu_custom_call.1} parent=11 // pred_check
          %p588 = pneg %p380
        $region70: #{tpu_custom_call.1} parent=11 // pred_check_branch
          %590 = sbr.rel (%p588) target = $region72
        $region71: #{tpu_custom_call.1} parent=11 // pred_region
          %s592 = ssub.s32 28672, 28672
          %593 = vsyncadd [#allocation18], %s592
          %s594 = sshll.u32 [#allocation17], 4
          %s595 = int_to_ptr.vmem [resolvable:$true] %s594
          %600 = dma.hbm_to_vmem [thread:$0]  %s15, 28672, %s595, [#allocation18], 448, 448, 28
        $region72: #{tpu_custom_call.1} parent=11 // pred_fallthru
          _
        // Predicated region
        $region73: #{tpu_custom_call.1} parent=11 // pred_check
          %p601 = pneg %p401
        $region74: #{tpu_custom_call.1} parent=11 // pred_check_branch
          %603 = sbr.rel (%p601) target = $region76
        $region75: #{tpu_custom_call.1} parent=11 // pred_region
          _
        $region76: #{tpu_custom_call.1} parent=11 // pred_fallthru
          _
      $region12: #{tpu_custom_call.1} parent=5 // pred_fallthru
        _
      %p604 = scmp.lt.s32.totalorder %s39, 2
      // Predicated region
      $region77: #{tpu_custom_call.1} parent=5 // pred_check
        %p605 = pneg %p604
      $region78: #{tpu_custom_call.1} parent=5 // pred_check_branch
        %607 = sbr.rel (%p605) target = $region80
      $region79: #{tpu_custom_call.1} parent=5 // pred_region
        // Predicated region
        $region81: #{tpu_custom_call.1} parent=79 // pred_check
          %p608 = pneg %p59
        $region82: #{tpu_custom_call.1} parent=79 // pred_check_branch
          %610 = sbr.rel (%p608) target = $region84
        $region83: #{tpu_custom_call.1} parent=79 // pred_region
          %s611 = sand.u32 %s49, 1
          %s612 = scalar_lea.sflag [#allocation3], %s611
          %s613 = sand.u32 %s49, 1
          %s614 = smul.addr %s613, 112
          %s615 = scalar_lea.vmem [#allocation2], %s614
          %s616 = smul.u32 4, %s39
          %s618 = ssub.s32 1792, 1792
          %619 = vsyncadd %s612, %s618
          %s620 = smul.addr %s616, 7
          %s621 = smul.addr %s620, 64
          %s622 = scalar_lea.hbm %s0, %s621
          %s623 = sshll.u32 %s615, 4
          %s624 = int_to_ptr.vmem [resolvable:$true] %s623
          %629 = dma.hbm_to_vmem [thread:$0]  %s622, 1792, %s624, %s612, 448, 448, 28
        $region84: #{tpu_custom_call.1} parent=79 // pred_fallthru
          _
      $region80: #{tpu_custom_call.1} parent=5 // pred_fallthru
        _
      %p630 = scmp.le.s32.totalorder 1, %s39
      %p631 = scmp.lt.s32.totalorder %s39, 3
      %p632 = pnand %p630, %p631
      %p633 = pneg %p632
      // Predicated region
      $region85: #{tpu_custom_call.1} parent=5 // pred_check
        _
      $region86: #{tpu_custom_call.1} parent=5 // pred_check_branch
        %635 = sbr.rel (%p632) target = $region88
      $region87: #{tpu_custom_call.1} parent=5 // pred_region
        %s636 = ssub.s32 %s39, 1
        %s637 = sand.u32 %s52, 1
        %s638 = scalar_lea.sflag [#allocation3], %s637
        %s639 = sand.u32 %s52, 1
        %s640 = smul.addr %s639, 112
        %s641 = scalar_lea.vmem [#allocation2], %s640
        // Predicated region
        $region89: #{tpu_custom_call.1} parent=87 // pred_check
          %p642 = pneg %p65
        $region90: #{tpu_custom_call.1} parent=87 // pred_check_branch
          %644 = sbr.rel (%p642) target = $region92
        $region91: #{tpu_custom_call.1} parent=87 // pred_region
          %645 = dma.done %s638, 1792
        $region92: #{tpu_custom_call.1} parent=87 // pred_fallthru
          _
        // Predicated region
        $region93: #{tpu_custom_call.1} parent=87 // pred_check
          %p646 = pneg %p86
        $region94: #{tpu_custom_call.1} parent=87 // pred_check_branch
          %648 = sbr.rel (%p646) target = $region96
        $region95: #{tpu_custom_call.1} parent=87 // pred_region
          %649 = dma.done [#allocation6], 28672
        $region96: #{tpu_custom_call.1} parent=87 // pred_fallthru
          _
        // Predicated region
        $region97: #{tpu_custom_call.1} parent=87 // pred_check
          %p650 = pneg %p128
        $region98: #{tpu_custom_call.1} parent=87 // pred_check_branch
          %652 = sbr.rel (%p650) target = $region100
        $region99: #{tpu_custom_call.1} parent=87 // pred_region
          %653 = dma.done [#allocation6], 8192
        $region100: #{tpu_custom_call.1} parent=87 // pred_fallthru
          _
        // Predicated region
        $region101: #{tpu_custom_call.1} parent=87 // pred_check
          %p654 = pneg %p149
        $region102: #{tpu_custom_call.1} parent=87 // pred_check_branch
          %656 = sbr.rel (%p654) target = $region104
        $region103: #{tpu_custom_call.1} parent=87 // pred_region
          %657 = dma.done [#allocation9], 32
        $region104: #{tpu_custom_call.1} parent=87 // pred_fallthru
          _
        // Predicated region
        $region105: #{tpu_custom_call.1} parent=87 // pred_check
          %p658 = pneg %p170
        $region106: #{tpu_custom_call.1} parent=87 // pred_check_branch
          %660 = sbr.rel (%p658) target = $region108
        $region107: #{tpu_custom_call.1} parent=87 // pred_region
          %661 = dma.done [#allocation9], 2048
        $region108: #{tpu_custom_call.1} parent=87 // pred_fallthru
          _
        // Predicated region
        $region109: #{tpu_custom_call.1} parent=87 // pred_check
          %p662 = pneg %p212
        $region110: #{tpu_custom_call.1} parent=87 // pred_check_branch
          %664 = sbr.rel (%p662) target = $region112
        $region111: #{tpu_custom_call.1} parent=87 // pred_region
          %665 = dma.done [#allocation12], 1024
        $region112: #{tpu_custom_call.1} parent=87 // pred_fallthru
          _
        // Predicated region
        $region113: #{tpu_custom_call.1} parent=87 // pred_check
          %p666 = pneg %p254
        $region114: #{tpu_custom_call.1} parent=87 // pred_check_branch
          %668 = sbr.rel (%p666) target = $region116
        $region115: #{tpu_custom_call.1} parent=87 // pred_region
          %669 = dma.done [#allocation12], 1024
        $region116: #{tpu_custom_call.1} parent=87 // pred_fallthru
          _
        // Predicated region
        $region117: #{tpu_custom_call.1} parent=87 // pred_check
          %p670 = pneg %p296
        $region118: #{tpu_custom_call.1} parent=87 // pred_check_branch
          %672 = sbr.rel (%p670) target = $region120
        $region119: #{tpu_custom_call.1} parent=87 // pred_region
          %673 = dma.done [#allocation15], 2048
        $region120: #{tpu_custom_call.1} parent=87 // pred_fallthru
          _
        // Predicated region
        $region121: #{tpu_custom_call.1} parent=87 // pred_check
          %p674 = pneg %p338
        $region122: #{tpu_custom_call.1} parent=87 // pred_check_branch
          %676 = sbr.rel (%p674) target = $region124
        $region123: #{tpu_custom_call.1} parent=87 // pred_region
          %677 = dma.done [#allocation15], 8192
        $region124: #{tpu_custom_call.1} parent=87 // pred_fallthru
          _
        // Predicated region
        $region125: #{tpu_custom_call.1} parent=87 // pred_check
          %p678 = pneg %p380
        $region126: #{tpu_custom_call.1} parent=87 // pred_check_branch
          %680 = sbr.rel (%p678) target = $region128
        $region127: #{tpu_custom_call.1} parent=87 // pred_region
          %681 = dma.done [#allocation18], 28672
        $region128: #{tpu_custom_call.1} parent=87 // pred_fallthru
          _
        %s682 = sand.u32 %s52, 1
        %s683 = scalar_lea.sflag [#allocation3], %s682
        %s684 = sand.u32 %s52, 1
        %s685 = smul.addr %s684, 112
        %s686 = scalar_lea.vmem [#allocation2], %s685
        %p687 = pneg %p65
        %p688 = pneg %p62
        %p689 = pneg %p86
        %p690 = pneg %p83
        %p691 = pneg %p107
        %p692 = pneg %p104
        %p693 = pneg %p128
        %p694 = pneg %p125
        %p695 = pneg %p149
        %p696 = pneg %p146
        %p697 = pneg %p170
        %p698 = pneg %p167
        %p699 = pneg %p191
        %p700 = pneg %p188
        %p701 = pneg %p212
        %p702 = pneg %p209
        %p703 = pneg %p233
        %p704 = pneg %p230
        %p705 = pneg %p254
        %p706 = pneg %p251
        %p707 = pneg %p275
        %p708 = pneg %p272
        %p709 = pneg %p296
        %p710 = pneg %p293
        %p711 = pneg %p317
        %p712 = pneg %p314
        %p713 = pneg %p338
        %p714 = pneg %p335
        %p715 = pneg %p359
        %p716 = pneg %p356
        %p717 = pneg %p380
        %p718 = pneg %p377
        %p719 = pneg %p401
        %p720 = pneg %p398
        %p721 = pneg %p427
        %p722 = pneg %p424
        %s723 = sand.u32 %s414, 1
        %s724 = scalar_lea.sflag [#allocation4], %s723
        %s725 = sand.u32 %s414, 1
        %s726 = smul.addr %s725, 32
        %s727 = scalar_lea.vmem [#allocation19], %s726
        %p728 = pneg %p453
        %p729 = pneg %p450
        %s730 = sand.u32 %s440, 1
        %s731 = scalar_lea.sflag [#allocation21], %s730
        %s732 = sand.u32 %s440, 1
        %s733 = smul.addr %s732, 112
        %s734 = scalar_lea.vmem [#allocation20], %s733
        %s735 = smul.u32 4, %s44
        %s736 = smul.u32 4, %s44
        %s737 = smul.u32 4, %s44
        %v739 = vld [vmem:[%s641] sm:$0xff]
        %v740 = vld [vmem:[%s641 + $0x8] sm:$0xff]
        %v741 = vld [vmem:[%s641 + $0x10] sm:$0xff]
        %v742 = vld [vmem:[%s641 + $0x18] sm:$0xf]
        %v743 = vld [vmem:[%s641 + $0x1c] sm:$0xff]
        %v744 = vld [vmem:[%s641 + $0x24] sm:$0xff]
        %v745 = vld [vmem:[%s641 + $0x2c] sm:$0xff]
        %v746 = vld [vmem:[%s641 + $0x34] sm:$0xf]
        %v747 = vld [vmem:[%s641 + $0x38] sm:$0xff]
        %v748 = vld [vmem:[%s641 + $0x40] sm:$0xff]
        %v749 = vld [vmem:[%s641 + $0x48] sm:$0xff]
        %v750 = vld [vmem:[%s641 + $0x50] sm:$0xf]
        %v751 = vld [vmem:[%s641 + $0x54] sm:$0xff]
        %v752 = vld [vmem:[%s641 + $0x5c] sm:$0xff]
        %v753 = vld [vmem:[%s641 + $0x64] sm:$0xff]
        %v754 = vld [vmem:[%s641 + $0x6c] sm:$0xf]
        %v755 = vld [vmem:[#allocation5] sm:$0xff]
        %v756 = vld [vmem:[#allocation5 + $0x8] sm:$0xff]
        %v757 = vld [vmem:[#allocation5 + $0x10] sm:$0xff]
        %v758 = vld [vmem:[#allocation5 + $0x18] sm:$0xff]
        %v759 = vld [vmem:[#allocation5 + $0x20] sm:$0xff]
        %v760 = vld [vmem:[#allocation5 + $0x28] sm:$0xff]
        %v761 = vld [vmem:[#allocation5 + $0x30] sm:$0xff]
        %v762 = vld [vmem:[#allocation5 + $0x38] sm:$0xff]
        %v763 = vld [vmem:[#allocation5 + $0x40] sm:$0xff]
        %v764 = vld [vmem:[#allocation5 + $0x48] sm:$0xff]
        %v765 = vld [vmem:[#allocation5 + $0x50] sm:$0xff]
        %v766 = vld [vmem:[#allocation5 + $0x58] sm:$0xff]
        %v767 = vld [vmem:[#allocation5 + $0x60] sm:$0xff]
        %v768 = vld [vmem:[#allocation5 + $0x68] sm:$0xff]
        %v769 = vld [vmem:[#allocation5 + $0x70] sm:$0xff]
        %v770 = vld [vmem:[#allocation5 + $0x78] sm:$0xff]
        %v771 = vld [vmem:[#allocation5 + $0x80] sm:$0xff]
        %v772 = vld [vmem:[#allocation5 + $0x88] sm:$0xff]
        %v773 = vld [vmem:[#allocation5 + $0x90] sm:$0xff]
        %v774 = vld [vmem:[#allocation5 + $0x98] sm:$0xff]
        %v775 = vld [vmem:[#allocation5 + $0xa0] sm:$0xff]
        %v776 = vld [vmem:[#allocation5 + $0xa8] sm:$0xff]
        %v777 = vld [vmem:[#allocation5 + $0xb0] sm:$0xff]
        %v778 = vld [vmem:[#allocation5 + $0xb8] sm:$0xff]
        %v779 = vld [vmem:[#allocation5 + $0xc0] sm:$0xff]
        %v780 = vld [vmem:[#allocation5 + $0xc8] sm:$0xff]
        %v781 = vld [vmem:[#allocation5 + $0xd0] sm:$0xff]
        %v782 = vld [vmem:[#allocation5 + $0xd8] sm:$0xff]
        %v783 = vld [vmem:[#allocation5 + $0xe0] sm:$0xff]
        %v784 = vld [vmem:[#allocation5 + $0xe8] sm:$0xff]
        %v785 = vld [vmem:[#allocation5 + $0xf0] sm:$0xff]
        %v786 = vld [vmem:[#allocation5 + $0xf8] sm:$0xff]
        %v787 = vld [vmem:[#allocation5 + $0x100] sm:$0xff]
        %v788 = vld [vmem:[#allocation5 + $0x108] sm:$0xff]
        %v789 = vld [vmem:[#allocation5 + $0x110] sm:$0xff]
        %v790 = vld [vmem:[#allocation5 + $0x118] sm:$0xff]
        %v791 = vld [vmem:[#allocation5 + $0x120] sm:$0xff]
        %v792 = vld [vmem:[#allocation5 + $0x128] sm:$0xff]
        %v793 = vld [vmem:[#allocation5 + $0x130] sm:$0xff]
        %v794 = vld [vmem:[#allocation5 + $0x138] sm:$0xff]
        %v795 = vld [vmem:[#allocation5 + $0x140] sm:$0xff]
        %v796 = vld [vmem:[#allocation5 + $0x148] sm:$0xff]
        %v797 = vld [vmem:[#allocation5 + $0x150] sm:$0xff]
        %v798 = vld [vmem:[#allocation5 + $0x158] sm:$0xff]
        %v799 = vld [vmem:[#allocation5 + $0x160] sm:$0xff]
        %v800 = vld [vmem:[#allocation5 + $0x168] sm:$0xff]
        %v801 = vld [vmem:[#allocation5 + $0x170] sm:$0xff]
        %v802 = vld [vmem:[#allocation5 + $0x178] sm:$0xff]
        %v803 = vld [vmem:[#allocation5 + $0x180] sm:$0xff]
        %v804 = vld [vmem:[#allocation5 + $0x188] sm:$0xff]
        %v805 = vld [vmem:[#allocation5 + $0x190] sm:$0xff]
        %v806 = vld [vmem:[#allocation5 + $0x198] sm:$0xff]
        %v807 = vld [vmem:[#allocation5 + $0x1a0] sm:$0xff]
        %v808 = vld [vmem:[#allocation5 + $0x1a8] sm:$0xff]
        %v809 = vld [vmem:[#allocation5 + $0x1b0] sm:$0xff]
        %v810 = vld [vmem:[#allocation5 + $0x1b8] sm:$0xff]
        %v811 = vld [vmem:[#allocation5 + $0x1c0] sm:$0xff]
        %v812 = vld [vmem:[#allocation5 + $0x1c8] sm:$0xff]
        %v813 = vld [vmem:[#allocation5 + $0x1d0] sm:$0xff]
        %v814 = vld [vmem:[#allocation5 + $0x1d8] sm:$0xff]
        %v815 = vld [vmem:[#allocation5 + $0x1e0] sm:$0xff]
        %v816 = vld [vmem:[#allocation5 + $0x1e8] sm:$0xff]
        %v817 = vld [vmem:[#allocation5 + $0x1f0] sm:$0xff]
        %v818 = vld [vmem:[#allocation5 + $0x1f8] sm:$0xff]
        %v819 = vld [vmem:[#allocation5 + $0x200] sm:$0xff]
        %v820 = vld [vmem:[#allocation5 + $0x208] sm:$0xff]
        %v821 = vld [vmem:[#allocation5 + $0x210] sm:$0xff]
        %v822 = vld [vmem:[#allocation5 + $0x218] sm:$0xff]
        %v823 = vld [vmem:[#allocation5 + $0x220] sm:$0xff]
        %v824 = vld [vmem:[#allocation5 + $0x228] sm:$0xff]
        %v825 = vld [vmem:[#allocation5 + $0x230] sm:$0xff]
        %v826 = vld [vmem:[#allocation5 + $0x238] sm:$0xff]
        %v827 = vld [vmem:[#allocation5 + $0x240] sm:$0xff]
        %v828 = vld [vmem:[#allocation5 + $0x248] sm:$0xff]
        %v829 = vld [vmem:[#allocation5 + $0x250] sm:$0xff]
        %v830 = vld [vmem:[#allocation5 + $0x258] sm:$0xff]
        %v831 = vld [vmem:[#allocation5 + $0x260] sm:$0xff]
        %v832 = vld [vmem:[#allocation5 + $0x268] sm:$0xff]
        %v833 = vld [vmem:[#allocation5 + $0x270] sm:$0xff]
        %v834 = vld [vmem:[#allocation5 + $0x278] sm:$0xff]
        %v835 = vld [vmem:[#allocation5 + $0x280] sm:$0xff]
        %v836 = vld [vmem:[#allocation5 + $0x288] sm:$0xff]
        %v837 = vld [vmem:[#allocation5 + $0x290] sm:$0xff]
        %v838 = vld [vmem:[#allocation5 + $0x298] sm:$0xff]
        %v839 = vld [vmem:[#allocation5 + $0x2a0] sm:$0xff]
        %v840 = vld [vmem:[#allocation5 + $0x2a8] sm:$0xff]
        %v841 = vld [vmem:[#allocation5 + $0x2b0] sm:$0xff]
        %v842 = vld [vmem:[#allocation5 + $0x2b8] sm:$0xff]
        %v843 = vld [vmem:[#allocation5 + $0x2c0] sm:$0xff]
        %v844 = vld [vmem:[#allocation5 + $0x2c8] sm:$0xff]
        %v845 = vld [vmem:[#allocation5 + $0x2d0] sm:$0xff]
        %v846 = vld [vmem:[#allocation5 + $0x2d8] sm:$0xff]
        %v847 = vld [vmem:[#allocation5 + $0x2e0] sm:$0xff]
        %v848 = vld [vmem:[#allocation5 + $0x2e8] sm:$0xff]
        %v849 = vld [vmem:[#allocation5 + $0x2f0] sm:$0xff]
        %v850 = vld [vmem:[#allocation5 + $0x2f8] sm:$0xff]
        %v851 = vld [vmem:[#allocation5 + $0x300] sm:$0xff]
        %v852 = vld [vmem:[#allocation5 + $0x308] sm:$0xff]
        %v853 = vld [vmem:[#allocation5 + $0x310] sm:$0xff]
        %v854 = vld [vmem:[#allocation5 + $0x318] sm:$0xff]
        %v855 = vld [vmem:[#allocation5 + $0x320] sm:$0xff]
        %v856 = vld [vmem:[#allocation5 + $0x328] sm:$0xff]
        %v857 = vld [vmem:[#allocation5 + $0x330] sm:$0xff]
        %v858 = vld [vmem:[#allocation5 + $0x338] sm:$0xff]
        %v859 = vld [vmem:[#allocation5 + $0x340] sm:$0xff]
        %v860 = vld [vmem:[#allocation5 + $0x348] sm:$0xff]
        %v861 = vld [vmem:[#allocation5 + $0x350] sm:$0xff]
        %v862 = vld [vmem:[#allocation5 + $0x358] sm:$0xff]
        %v863 = vld [vmem:[#allocation5 + $0x360] sm:$0xff]
        %v864 = vld [vmem:[#allocation5 + $0x368] sm:$0xff]
        %v865 = vld [vmem:[#allocation5 + $0x370] sm:$0xff]
        %v866 = vld [vmem:[#allocation5 + $0x378] sm:$0xff]
        %v867 = vld [vmem:[#allocation5 + $0x380] sm:$0xff]
        %v868 = vld [vmem:[#allocation5 + $0x388] sm:$0xff]
        %v869 = vld [vmem:[#allocation5 + $0x390] sm:$0xff]
        %v870 = vld [vmem:[#allocation5 + $0x398] sm:$0xff]
        %v871 = vld [vmem:[#allocation5 + $0x3a0] sm:$0xff]
        %v872 = vld [vmem:[#allocation5 + $0x3a8] sm:$0xff]
        %v873 = vld [vmem:[#allocation5 + $0x3b0] sm:$0xff]
        %v874 = vld [vmem:[#allocation5 + $0x3b8] sm:$0xff]
        %v875 = vld [vmem:[#allocation5 + $0x3c0] sm:$0xff]
        %v876 = vld [vmem:[#allocation5 + $0x3c8] sm:$0xff]
        %v877 = vld [vmem:[#allocation5 + $0x3d0] sm:$0xff]
        %v878 = vld [vmem:[#allocation5 + $0x3d8] sm:$0xff]
        %v879 = vld [vmem:[#allocation5 + $0x3e0] sm:$0xff]
        %v880 = vld [vmem:[#allocation5 + $0x3e8] sm:$0xff]
        %v881 = vld [vmem:[#allocation5 + $0x3f0] sm:$0xff]
        %v882 = vld [vmem:[#allocation5 + $0x3f8] sm:$0xff]
        %v883 = vld [vmem:[#allocation5 + $0x400] sm:$0xff]
        %v884 = vld [vmem:[#allocation5 + $0x408] sm:$0xff]
        %v885 = vld [vmem:[#allocation5 + $0x410] sm:$0xff]
        %v886 = vld [vmem:[#allocation5 + $0x418] sm:$0xff]
        %v887 = vld [vmem:[#allocation5 + $0x420] sm:$0xff]
        %v888 = vld [vmem:[#allocation5 + $0x428] sm:$0xff]
        %v889 = vld [vmem:[#allocation5 + $0x430] sm:$0xff]
        %v890 = vld [vmem:[#allocation5 + $0x438] sm:$0xff]
        %v891 = vld [vmem:[#allocation5 + $0x440] sm:$0xff]
        %v892 = vld [vmem:[#allocation5 + $0x448] sm:$0xff]
        %v893 = vld [vmem:[#allocation5 + $0x450] sm:$0xff]
        %v894 = vld [vmem:[#allocation5 + $0x458] sm:$0xff]
        %v895 = vld [vmem:[#allocation5 + $0x460] sm:$0xff]
        %v896 = vld [vmem:[#allocation5 + $0x468] sm:$0xff]
        %v897 = vld [vmem:[#allocation5 + $0x470] sm:$0xff]
        %v898 = vld [vmem:[#allocation5 + $0x478] sm:$0xff]
        %v899 = vld [vmem:[#allocation5 + $0x480] sm:$0xff]
        %v900 = vld [vmem:[#allocation5 + $0x488] sm:$0xff]
        %v901 = vld [vmem:[#allocation5 + $0x490] sm:$0xff]
        %v902 = vld [vmem:[#allocation5 + $0x498] sm:$0xff]
        %v903 = vld [vmem:[#allocation5 + $0x4a0] sm:$0xff]
        %v904 = vld [vmem:[#allocation5 + $0x4a8] sm:$0xff]
        %v905 = vld [vmem:[#allocation5 + $0x4b0] sm:$0xff]
        %v906 = vld [vmem:[#allocation5 + $0x4b8] sm:$0xff]
        %v907 = vld [vmem:[#allocation5 + $0x4c0] sm:$0xff]
        %v908 = vld [vmem:[#allocation5 + $0x4c8] sm:$0xff]
        %v909 = vld [vmem:[#allocation5 + $0x4d0] sm:$0xff]
        %v910 = vld [vmem:[#allocation5 + $0x4d8] sm:$0xff]
        %v911 = vld [vmem:[#allocation5 + $0x4e0] sm:$0xff]
        %v912 = vld [vmem:[#allocation5 + $0x4e8] sm:$0xff]
        %v913 = vld [vmem:[#allocation5 + $0x4f0] sm:$0xff]
        %v914 = vld [vmem:[#allocation5 + $0x4f8] sm:$0xff]
        %v915 = vld [vmem:[#allocation5 + $0x500] sm:$0xff]
        %v916 = vld [vmem:[#allocation5 + $0x508] sm:$0xff]
        %v917 = vld [vmem:[#allocation5 + $0x510] sm:$0xff]
        %v918 = vld [vmem:[#allocation5 + $0x518] sm:$0xff]
        %v919 = vld [vmem:[#allocation5 + $0x520] sm:$0xff]
        %v920 = vld [vmem:[#allocation5 + $0x528] sm:$0xff]
        %v921 = vld [vmem:[#allocation5 + $0x530] sm:$0xff]
        %v922 = vld [vmem:[#allocation5 + $0x538] sm:$0xff]
        %v923 = vld [vmem:[#allocation5 + $0x540] sm:$0xff]
        %v924 = vld [vmem:[#allocation5 + $0x548] sm:$0xff]
        %v925 = vld [vmem:[#allocation5 + $0x550] sm:$0xff]
        %v926 = vld [vmem:[#allocation5 + $0x558] sm:$0xff]
        %v927 = vld [vmem:[#allocation5 + $0x560] sm:$0xff]
        %v928 = vld [vmem:[#allocation5 + $0x568] sm:$0xff]
        %v929 = vld [vmem:[#allocation5 + $0x570] sm:$0xff]
        %v930 = vld [vmem:[#allocation5 + $0x578] sm:$0xff]
        %v931 = vld [vmem:[#allocation5 + $0x580] sm:$0xff]
        %v932 = vld [vmem:[#allocation5 + $0x588] sm:$0xff]
        %v933 = vld [vmem:[#allocation5 + $0x590] sm:$0xff]
        %v934 = vld [vmem:[#allocation5 + $0x598] sm:$0xff]
        %v935 = vld [vmem:[#allocation5 + $0x5a0] sm:$0xff]
        %v936 = vld [vmem:[#allocation5 + $0x5a8] sm:$0xff]
        %v937 = vld [vmem:[#allocation5 + $0x5b0] sm:$0xff]
        %v938 = vld [vmem:[#allocation5 + $0x5b8] sm:$0xff]
        %v939 = vld [vmem:[#allocation5 + $0x5c0] sm:$0xff]
        %v940 = vld [vmem:[#allocation5 + $0x5c8] sm:$0xff]
        %v941 = vld [vmem:[#allocation5 + $0x5d0] sm:$0xff]
        %v942 = vld [vmem:[#allocation5 + $0x5d8] sm:$0xff]
        %v943 = vld [vmem:[#allocation5 + $0x5e0] sm:$0xff]
        %v944 = vld [vmem:[#allocation5 + $0x5e8] sm:$0xff]
        %v945 = vld [vmem:[#allocation5 + $0x5f0] sm:$0xff]
        %v946 = vld [vmem:[#allocation5 + $0x5f8] sm:$0xff]
        %v947 = vld [vmem:[#allocation5 + $0x600] sm:$0xff]
        %v948 = vld [vmem:[#allocation5 + $0x608] sm:$0xff]
        %v949 = vld [vmem:[#allocation5 + $0x610] sm:$0xff]
        %v950 = vld [vmem:[#allocation5 + $0x618] sm:$0xff]
        %v951 = vld [vmem:[#allocation5 + $0x620] sm:$0xff]
        %v952 = vld [vmem:[#allocation5 + $0x628] sm:$0xff]
        %v953 = vld [vmem:[#allocation5 + $0x630] sm:$0xff]
        %v954 = vld [vmem:[#allocation5 + $0x638] sm:$0xff]
        %v955 = vld [vmem:[#allocation5 + $0x640] sm:$0xff]
        %v956 = vld [vmem:[#allocation5 + $0x648] sm:$0xff]
        %v957 = vld [vmem:[#allocation5 + $0x650] sm:$0xff]
        %v958 = vld [vmem:[#allocation5 + $0x658] sm:$0xff]
        %v959 = vld [vmem:[#allocation5 + $0x660] sm:$0xff]
        %v960 = vld [vmem:[#allocation5 + $0x668] sm:$0xff]
        %v961 = vld [vmem:[#allocation5 + $0x670] sm:$0xff]
        %v962 = vld [vmem:[#allocation5 + $0x678] sm:$0xff]
        %v963 = vld [vmem:[#allocation5 + $0x680] sm:$0xff]
        %v964 = vld [vmem:[#allocation5 + $0x688] sm:$0xff]
        %v965 = vld [vmem:[#allocation5 + $0x690] sm:$0xff]
        %v966 = vld [vmem:[#allocation5 + $0x698] sm:$0xff]
        %v967 = vld [vmem:[#allocation5 + $0x6a0] sm:$0xff]
        %v968 = vld [vmem:[#allocation5 + $0x6a8] sm:$0xff]
        %v969 = vld [vmem:[#allocation5 + $0x6b0] sm:$0xff]
        %v970 = vld [vmem:[#allocation5 + $0x6b8] sm:$0xff]
        %v971 = vld [vmem:[#allocation5 + $0x6c0] sm:$0xff]
        %v972 = vld [vmem:[#allocation5 + $0x6c8] sm:$0xff]
        %v973 = vld [vmem:[#allocation5 + $0x6d0] sm:$0xff]
        %v974 = vld [vmem:[#allocation5 + $0x6d8] sm:$0xff]
        %v975 = vld [vmem:[#allocation5 + $0x6e0] sm:$0xff]
        %v976 = vld [vmem:[#allocation5 + $0x6e8] sm:$0xff]
        %v977 = vld [vmem:[#allocation5 + $0x6f0] sm:$0xff]
        %v978 = vld [vmem:[#allocation5 + $0x6f8] sm:$0xff]
        %v979 = vld [vmem:[%s2] sm:$0xf]
        %v981 = vlaneseq
        %v982 = vshrl.u32 %v981, 7
        %v983 = vsub.s32 0, %v982
        %v984 = vrot.slane %v979, %v983
        %v985 = vlaneseq
        %v986 = vshrl.u32 %v985, 7
        %v987 = vsub.s32 1, %v986
        %v988 = vrot.slane %v979, %v987
        %v989 = vlaneseq
        %v990 = vshrl.u32 %v989, 7
        %v991 = vsub.s32 2, %v990
        %v992 = vrot.slane %v979, %v991
        %v993 = vlaneseq
        %v994 = vshrl.u32 %v993, 7
        %v995 = vsub.s32 3, %v994
        %v996 = vrot.slane %v979, %v995
        %v1017 = vunpack.c.l.b16 %v739
        %v1018 = vunpack.c.h.b16 %v739
        %v1019 = vunpack.c.l.b16 %v740
        %v1020 = vunpack.c.h.b16 %v740
        %v1021 = vunpack.c.l.b16 %v741
        %v1022 = vunpack.c.h.b16 %v741
        %v1023 = vunpack.c.l.b16 %v742
        %v1024 = vunpack.c.l.b16 %v743
        %v1025 = vunpack.c.h.b16 %v743
        %v1026 = vunpack.c.l.b16 %v744
        %v1027 = vunpack.c.h.b16 %v744
        %v1028 = vunpack.c.l.b16 %v745
        %v1029 = vunpack.c.h.b16 %v745
        %v1030 = vunpack.c.l.b16 %v746
        %v1031 = vunpack.c.l.b16 %v747
        %v1032 = vunpack.c.h.b16 %v747
        %v1033 = vunpack.c.l.b16 %v748
        %v1034 = vunpack.c.h.b16 %v748
        %v1035 = vunpack.c.l.b16 %v749
        %v1036 = vunpack.c.h.b16 %v749
        %v1037 = vunpack.c.l.b16 %v750
        %v1038 = vunpack.c.l.b16 %v751
        %v1039 = vunpack.c.h.b16 %v751
        %v1040 = vunpack.c.l.b16 %v752
        %v1041 = vunpack.c.h.b16 %v752
        %v1042 = vunpack.c.l.b16 %v753
        %v1043 = vunpack.c.h.b16 %v753
        %v1044 = vunpack.c.l.b16 %v754
        %v1045 = vpack.c.b16 %v1024, %v1017
        %v1046 = vpack.c.b16 %v1025, %v1018
        %v1047 = vpack.c.b16 %v1026, %v1019
        %v1048 = vpack.c.b16 %v1027, %v1020
        %v1049 = vpack.c.b16 %v1028, %v1021
        %v1050 = vpack.c.b16 %v1029, %v1022
        %v1051 = vpack.c.b16 %v1030, %v1023
        %v1052 = vpack.c.b16 %v1038, %v1031
        %v1053 = vpack.c.b16 %v1039, %v1032
        %v1054 = vpack.c.b16 %v1040, %v1033
        %v1055 = vpack.c.b16 %v1041, %v1034
        %v1056 = vpack.c.b16 %v1042, %v1035
        %v1057 = vpack.c.b16 %v1043, %v1036
        %v1058 = vpack.c.b16 %v1044, %v1037
        %v1297 = vunpack.c.l.b16 %v755
        %v1298 = vunpack.c.h.b16 %v755
        %v1299 = vunpack.c.l.b16 %v756
        %v1300 = vunpack.c.h.b16 %v756
        %v1301 = vunpack.c.l.b16 %v757
        %v1302 = vunpack.c.h.b16 %v757
        %v1303 = vunpack.c.l.b16 %v758
        %v1304 = vunpack.c.h.b16 %v758
        %v1305 = vunpack.c.l.b16 %v759
        %v1306 = vunpack.c.h.b16 %v759
        %v1307 = vunpack.c.l.b16 %v760
        %v1308 = vunpack.c.h.b16 %v760
        %v1309 = vunpack.c.l.b16 %v761
        %v1310 = vunpack.c.h.b16 %v761
        %v1311 = vunpack.c.l.b16 %v762
        %v1312 = vunpack.c.h.b16 %v762
        %v1313 = vunpack.c.l.b16 %v763
        %v1314 = vunpack.c.h.b16 %v763
        %v1315 = vunpack.c.l.b16 %v764
        %v1316 = vunpack.c.h.b16 %v764
        %v1317 = vunpack.c.l.b16 %v765
        %v1318 = vunpack.c.h.b16 %v765
        %v1319 = vunpack.c.l.b16 %v766
        %v1320 = vunpack.c.h.b16 %v766
        %v1321 = vunpack.c.l.b16 %v767
        %v1322 = vunpack.c.h.b16 %v767
        %v1323 = vunpack.c.l.b16 %v768
        %v1324 = vunpack.c.h.b16 %v768
        %v1325 = vunpack.c.l.b16 %v769
        %v1326 = vunpack.c.h.b16 %v769
        %v1327 = vunpack.c.l.b16 %v770
        %v1328 = vunpack.c.h.b16 %v770
        %v1329 = vunpack.c.l.b16 %v771
        %v1330 = vunpack.c.h.b16 %v771
        %v1331 = vunpack.c.l.b16 %v772
        %v1332 = vunpack.c.h.b16 %v772
        %v1333 = vunpack.c.l.b16 %v773
        %v1334 = vunpack.c.h.b16 %v773
        %v1335 = vunpack.c.l.b16 %v774
        %v1336 = vunpack.c.h.b16 %v774
        %v1337 = vunpack.c.l.b16 %v775
        %v1338 = vunpack.c.h.b16 %v775
        %v1339 = vunpack.c.l.b16 %v776
        %v1340 = vunpack.c.h.b16 %v776
        %v1341 = vunpack.c.l.b16 %v777
        %v1342 = vunpack.c.h.b16 %v777
        %v1343 = vunpack.c.l.b16 %v778
        %v1344 = vunpack.c.h.b16 %v778
        %v1345 = vunpack.c.l.b16 %v779
        %v1346 = vunpack.c.h.b16 %v779
        %v1347 = vunpack.c.l.b16 %v780
        %v1348 = vunpack.c.h.b16 %v780
        %v1349 = vunpack.c.l.b16 %v781
        %v1350 = vunpack.c.h.b16 %v781
        %v1351 = vunpack.c.l.b16 %v782
        %v1352 = vunpack.c.h.b16 %v782
        %v1353 = vunpack.c.l.b16 %v783
        %v1354 = vunpack.c.h.b16 %v783
        %v1355 = vunpack.c.l.b16 %v784
        %v1356 = vunpack.c.h.b16 %v784
        %v1357 = vunpack.c.l.b16 %v785
        %v1358 = vunpack.c.h.b16 %v785
        %v1359 = vunpack.c.l.b16 %v786
        %v1360 = vunpack.c.h.b16 %v786
        %v1361 = vunpack.c.l.b16 %v787
        %v1362 = vunpack.c.h.b16 %v787
        %v1363 = vunpack.c.l.b16 %v788
        %v1364 = vunpack.c.h.b16 %v788
        %v1365 = vunpack.c.l.b16 %v789
        %v1366 = vunpack.c.h.b16 %v789
        %v1367 = vunpack.c.l.b16 %v790
        %v1368 = vunpack.c.h.b16 %v790
        %v1369 = vunpack.c.l.b16 %v791
        %v1370 = vunpack.c.h.b16 %v791
        %v1371 = vunpack.c.l.b16 %v792
        %v1372 = vunpack.c.h.b16 %v792
        %v1373 = vunpack.c.l.b16 %v793
        %v1374 = vunpack.c.h.b16 %v793
        %v1375 = vunpack.c.l.b16 %v794
        %v1376 = vunpack.c.h.b16 %v794
        %v1377 = vunpack.c.l.b16 %v795
        %v1378 = vunpack.c.h.b16 %v795
        %v1379 = vunpack.c.l.b16 %v796
        %v1380 = vunpack.c.h.b16 %v796
        %v1381 = vunpack.c.l.b16 %v797
        %v1382 = vunpack.c.h.b16 %v797
        %v1383 = vunpack.c.l.b16 %v798
        %v1384 = vunpack.c.h.b16 %v798
        %v1385 = vunpack.c.l.b16 %v799
        %v1386 = vunpack.c.h.b16 %v799
        %v1387 = vunpack.c.l.b16 %v800
        %v1388 = vunpack.c.h.b16 %v800
        %v1389 = vunpack.c.l.b16 %v801
        %v1390 = vunpack.c.h.b16 %v801
        %v1391 = vunpack.c.l.b16 %v802
        %v1392 = vunpack.c.h.b16 %v802
        %v1393 = vunpack.c.l.b16 %v803
        %v1394 = vunpack.c.h.b16 %v803
        %v1395 = vunpack.c.l.b16 %v804
        %v1396 = vunpack.c.h.b16 %v804
        %v1397 = vunpack.c.l.b16 %v805
        %v1398 = vunpack.c.h.b16 %v805
        %v1399 = vunpack.c.l.b16 %v806
        %v1400 = vunpack.c.h.b16 %v806
        %v1401 = vunpack.c.l.b16 %v807
        %v1402 = vunpack.c.h.b16 %v807
        %v1403 = vunpack.c.l.b16 %v808
        %v1404 = vunpack.c.h.b16 %v808
        %v1405 = vunpack.c.l.b16 %v809
        %v1406 = vunpack.c.h.b16 %v809
        %v1407 = vunpack.c.l.b16 %v810
        %v1408 = vunpack.c.h.b16 %v810
        %v1409 = vunpack.c.l.b16 %v811
        %v1410 = vunpack.c.h.b16 %v811
        %v1411 = vunpack.c.l.b16 %v812
        %v1412 = vunpack.c.h.b16 %v812
        %v1413 = vunpack.c.l.b16 %v813
        %v1414 = vunpack.c.h.b16 %v813
        %v1415 = vunpack.c.l.b16 %v814
        %v1416 = vunpack.c.h.b16 %v814
        %v1417 = vunpack.c.l.b16 %v815
        %v1418 = vunpack.c.h.b16 %v815
        %v1419 = vunpack.c.l.b16 %v816
        %v1420 = vunpack.c.h.b16 %v816
        %v1421 = vunpack.c.l.b16 %v817
        %v1422 = vunpack.c.h.b16 %v817
        %v1423 = vunpack.c.l.b16 %v818
        %v1424 = vunpack.c.h.b16 %v818
        %v1425 = vunpack.c.l.b16 %v819
        %v1426 = vunpack.c.h.b16 %v819
        %v1427 = vunpack.c.l.b16 %v820
        %v1428 = vunpack.c.h.b16 %v820
        %v1429 = vunpack.c.l.b16 %v821
        %v1430 = vunpack.c.h.b16 %v821
        %v1431 = vunpack.c.l.b16 %v822
        %v1432 = vunpack.c.h.b16 %v822
        %v1433 = vunpack.c.l.b16 %v823
        %v1434 = vunpack.c.h.b16 %v823
        %v1435 = vunpack.c.l.b16 %v824
        %v1436 = vunpack.c.h.b16 %v824
        %v1437 = vunpack.c.l.b16 %v825
        %v1438 = vunpack.c.h.b16 %v825
        %v1439 = vunpack.c.l.b16 %v826
        %v1440 = vunpack.c.h.b16 %v826
        %v1441 = vunpack.c.l.b16 %v827
        %v1442 = vunpack.c.h.b16 %v827
        %v1443 = vunpack.c.l.b16 %v828
        %v1444 = vunpack.c.h.b16 %v828
        %v1445 = vunpack.c.l.b16 %v829
        %v1446 = vunpack.c.h.b16 %v829
        %v1447 = vunpack.c.l.b16 %v830
        %v1448 = vunpack.c.h.b16 %v830
        %v1449 = vunpack.c.l.b16 %v831
        %v1450 = vunpack.c.h.b16 %v831
        %v1451 = vunpack.c.l.b16 %v832
        %v1452 = vunpack.c.h.b16 %v832
        %v1453 = vunpack.c.l.b16 %v833
        %v1454 = vunpack.c.h.b16 %v833
        %v1455 = vunpack.c.l.b16 %v834
        %v1456 = vunpack.c.h.b16 %v834
        %v1457 = vunpack.c.l.b16 %v835
        %v1458 = vunpack.c.h.b16 %v835
        %v1459 = vunpack.c.l.b16 %v836
        %v1460 = vunpack.c.h.b16 %v836
        %v1461 = vunpack.c.l.b16 %v837
        %v1462 = vunpack.c.h.b16 %v837
        %v1463 = vunpack.c.l.b16 %v838
        %v1464 = vunpack.c.h.b16 %v838
        %v1465 = vunpack.c.l.b16 %v839
        %v1466 = vunpack.c.h.b16 %v839
        %v1467 = vunpack.c.l.b16 %v840
        %v1468 = vunpack.c.h.b16 %v840
        %v1469 = vunpack.c.l.b16 %v841
        %v1470 = vunpack.c.h.b16 %v841
        %v1471 = vunpack.c.l.b16 %v842
        %v1472 = vunpack.c.h.b16 %v842
        %v1473 = vunpack.c.l.b16 %v843
        %v1474 = vunpack.c.h.b16 %v843
        %v1475 = vunpack.c.l.b16 %v844
        %v1476 = vunpack.c.h.b16 %v844
        %v1477 = vunpack.c.l.b16 %v845
        %v1478 = vunpack.c.h.b16 %v845
        %v1479 = vunpack.c.l.b16 %v846
        %v1480 = vunpack.c.h.b16 %v846
        %v1481 = vunpack.c.l.b16 %v847
        %v1482 = vunpack.c.h.b16 %v847
        %v1483 = vunpack.c.l.b16 %v848
        %v1484 = vunpack.c.h.b16 %v848
        %v1485 = vunpack.c.l.b16 %v849
        %v1486 = vunpack.c.h.b16 %v849
        %v1487 = vunpack.c.l.b16 %v850
        %v1488 = vunpack.c.h.b16 %v850
        %v1489 = vunpack.c.l.b16 %v851
        %v1490 = vunpack.c.h.b16 %v851
        %v1491 = vunpack.c.l.b16 %v852
        %v1492 = vunpack.c.h.b16 %v852
        %v1493 = vunpack.c.l.b16 %v853
        %v1494 = vunpack.c.h.b16 %v853
        %v1495 = vunpack.c.l.b16 %v854
        %v1496 = vunpack.c.h.b16 %v854
        %v1497 = vunpack.c.l.b16 %v855
        %v1498 = vunpack.c.h.b16 %v855
        %v1499 = vunpack.c.l.b16 %v856
        %v1500 = vunpack.c.h.b16 %v856
        %v1501 = vunpack.c.l.b16 %v857
        %v1502 = vunpack.c.h.b16 %v857
        %v1503 = vunpack.c.l.b16 %v858
        %v1504 = vunpack.c.h.b16 %v858
        %v1505 = vunpack.c.l.b16 %v859
        %v1506 = vunpack.c.h.b16 %v859
        %v1507 = vunpack.c.l.b16 %v860
        %v1508 = vunpack.c.h.b16 %v860
        %v1509 = vunpack.c.l.b16 %v861
        %v1510 = vunpack.c.h.b16 %v861
        %v1511 = vunpack.c.l.b16 %v862
        %v1512 = vunpack.c.h.b16 %v862
        %v1513 = vunpack.c.l.b16 %v863
        %v1514 = vunpack.c.h.b16 %v863
        %v1515 = vunpack.c.l.b16 %v864
        %v1516 = vunpack.c.h.b16 %v864
        %v1517 = vunpack.c.l.b16 %v865
        %v1518 = vunpack.c.h.b16 %v865
        %v1519 = vunpack.c.l.b16 %v866
        %v1520 = vunpack.c.h.b16 %v866
        %v1521 = vunpack.c.l.b16 %v867
        %v1522 = vunpack.c.h.b16 %v867
        %v1523 = vunpack.c.l.b16 %v868
        %v1524 = vunpack.c.h.b16 %v868
        %v1525 = vunpack.c.l.b16 %v869
        %v1526 = vunpack.c.h.b16 %v869
        %v1527 = vunpack.c.l.b16 %v870
        %v1528 = vunpack.c.h.b16 %v870
        %v1529 = vunpack.c.l.b16 %v871
        %v1530 = vunpack.c.h.b16 %v871
        %v1531 = vunpack.c.l.b16 %v872
        %v1532 = vunpack.c.h.b16 %v872
        %v1533 = vunpack.c.l.b16 %v873
        %v1534 = vunpack.c.h.b16 %v873
        %v1535 = vunpack.c.l.b16 %v874
        %v1536 = vunpack.c.h.b16 %v874
        %v1537 = vunpack.c.l.b16 %v875
        %v1538 = vunpack.c.h.b16 %v875
        %v1539 = vunpack.c.l.b16 %v876
        %v1540 = vunpack.c.h.b16 %v876
        %v1541 = vunpack.c.l.b16 %v877
        %v1542 = vunpack.c.h.b16 %v877
        %v1543 = vunpack.c.l.b16 %v878
        %v1544 = vunpack.c.h.b16 %v878
        %v1545 = vunpack.c.l.b16 %v879
        %v1546 = vunpack.c.h.b16 %v879
        %v1547 = vunpack.c.l.b16 %v880
        %v1548 = vunpack.c.h.b16 %v880
        %v1549 = vunpack.c.l.b16 %v881
        %v1550 = vunpack.c.h.b16 %v881
        %v1551 = vunpack.c.l.b16 %v882
        %v1552 = vunpack.c.h.b16 %v882
        %v1553 = vunpack.c.l.b16 %v883
        %v1554 = vunpack.c.h.b16 %v883
        %v1555 = vunpack.c.l.b16 %v884
        %v1556 = vunpack.c.h.b16 %v884
        %v1557 = vunpack.c.l.b16 %v885
        %v1558 = vunpack.c.h.b16 %v885
        %v1559 = vunpack.c.l.b16 %v886
        %v1560 = vunpack.c.h.b16 %v886
        %v1561 = vunpack.c.l.b16 %v887
        %v1562 = vunpack.c.h.b16 %v887
        %v1563 = vunpack.c.l.b16 %v888
        %v1564 = vunpack.c.h.b16 %v888
        %v1565 = vunpack.c.l.b16 %v889
        %v1566 = vunpack.c.h.b16 %v889
        %v1567 = vunpack.c.l.b16 %v890
        %v1568 = vunpack.c.h.b16 %v890
        %v1569 = vunpack.c.l.b16 %v891
        %v1570 = vunpack.c.h.b16 %v891
        %v1571 = vunpack.c.l.b16 %v892
        %v1572 = vunpack.c.h.b16 %v892
        %v1573 = vunpack.c.l.b16 %v893
        %v1574 = vunpack.c.h.b16 %v893
        %v1575 = vunpack.c.l.b16 %v894
        %v1576 = vunpack.c.h.b16 %v894
        %v1577 = vunpack.c.l.b16 %v895
        %v1578 = vunpack.c.h.b16 %v895
        %v1579 = vunpack.c.l.b16 %v896
        %v1580 = vunpack.c.h.b16 %v896
        %v1581 = vunpack.c.l.b16 %v897
        %v1582 = vunpack.c.h.b16 %v897
        %v1583 = vunpack.c.l.b16 %v898
        %v1584 = vunpack.c.h.b16 %v898
        %v1585 = vunpack.c.l.b16 %v899
        %v1586 = vunpack.c.h.b16 %v899
        %v1587 = vunpack.c.l.b16 %v900
        %v1588 = vunpack.c.h.b16 %v900
        %v1589 = vunpack.c.l.b16 %v901
        %v1590 = vunpack.c.h.b16 %v901
        %v1591 = vunpack.c.l.b16 %v902
        %v1592 = vunpack.c.h.b16 %v902
        %v1593 = vunpack.c.l.b16 %v903
        %v1594 = vunpack.c.h.b16 %v903
        %v1595 = vunpack.c.l.b16 %v904
        %v1596 = vunpack.c.h.b16 %v904
        %v1597 = vunpack.c.l.b16 %v905
        %v1598 = vunpack.c.h.b16 %v905
        %v1599 = vunpack.c.l.b16 %v906
        %v1600 = vunpack.c.h.b16 %v906
        %v1601 = vunpack.c.l.b16 %v907
        %v1602 = vunpack.c.h.b16 %v907
        %v1603 = vunpack.c.l.b16 %v908
        %v1604 = vunpack.c.h.b16 %v908
        %v1605 = vunpack.c.l.b16 %v909
        %v1606 = vunpack.c.h.b16 %v909
        %v1607 = vunpack.c.l.b16 %v910
        %v1608 = vunpack.c.h.b16 %v910
        %v1609 = vunpack.c.l.b16 %v911
        %v1610 = vunpack.c.h.b16 %v911
        %v1611 = vunpack.c.l.b16 %v912
        %v1612 = vunpack.c.h.b16 %v912
        %v1613 = vunpack.c.l.b16 %v913
        %v1614 = vunpack.c.h.b16 %v913
        %v1615 = vunpack.c.l.b16 %v914
        %v1616 = vunpack.c.h.b16 %v914
        %v1617 = vunpack.c.l.b16 %v915
        %v1618 = vunpack.c.h.b16 %v915
        %v1619 = vunpack.c.l.b16 %v916
        %v1620 = vunpack.c.h.b16 %v916
        %v1621 = vunpack.c.l.b16 %v917
        %v1622 = vunpack.c.h.b16 %v917
        %v1623 = vunpack.c.l.b16 %v918
        %v1624 = vunpack.c.h.b16 %v918
        %v1625 = vunpack.c.l.b16 %v919
        %v1626 = vunpack.c.h.b16 %v919
        %v1627 = vunpack.c.l.b16 %v920
        %v1628 = vunpack.c.h.b16 %v920
        %v1629 = vunpack.c.l.b16 %v921
        %v1630 = vunpack.c.h.b16 %v921
        %v1631 = vunpack.c.l.b16 %v922
        %v1632 = vunpack.c.h.b16 %v922
        %v1633 = vunpack.c.l.b16 %v923
        %v1634 = vunpack.c.h.b16 %v923
        %v1635 = vunpack.c.l.b16 %v924
        %v1636 = vunpack.c.h.b16 %v924
        %v1637 = vunpack.c.l.b16 %v925
        %v1638 = vunpack.c.h.b16 %v925
        %v1639 = vunpack.c.l.b16 %v926
        %v1640 = vunpack.c.h.b16 %v926
        %v1641 = vunpack.c.l.b16 %v927
        %v1642 = vunpack.c.h.b16 %v927
        %v1643 = vunpack.c.l.b16 %v928
        %v1644 = vunpack.c.h.b16 %v928
        %v1645 = vunpack.c.l.b16 %v929
        %v1646 = vunpack.c.h.b16 %v929
        %v1647 = vunpack.c.l.b16 %v930
        %v1648 = vunpack.c.h.b16 %v930
        %v1649 = vunpack.c.l.b16 %v931
        %v1650 = vunpack.c.h.b16 %v931
        %v1651 = vunpack.c.l.b16 %v932
        %v1652 = vunpack.c.h.b16 %v932
        %v1653 = vunpack.c.l.b16 %v933
        %v1654 = vunpack.c.h.b16 %v933
        %v1655 = vunpack.c.l.b16 %v934
        %v1656 = vunpack.c.h.b16 %v934
        %v1657 = vunpack.c.l.b16 %v935
        %v1658 = vunpack.c.h.b16 %v935
        %v1659 = vunpack.c.l.b16 %v936
        %v1660 = vunpack.c.h.b16 %v936
        %v1661 = vunpack.c.l.b16 %v937
        %v1662 = vunpack.c.h.b16 %v937
        %v1663 = vunpack.c.l.b16 %v938
        %v1664 = vunpack.c.h.b16 %v938
        %v1665 = vunpack.c.l.b16 %v939
        %v1666 = vunpack.c.h.b16 %v939
        %v1667 = vunpack.c.l.b16 %v940
        %v1668 = vunpack.c.h.b16 %v940
        %v1669 = vunpack.c.l.b16 %v941
        %v1670 = vunpack.c.h.b16 %v941
        %v1671 = vunpack.c.l.b16 %v942
        %v1672 = vunpack.c.h.b16 %v942
        %v1673 = vunpack.c.l.b16 %v943
        %v1674 = vunpack.c.h.b16 %v943
        %v1675 = vunpack.c.l.b16 %v944
        %v1676 = vunpack.c.h.b16 %v944
        %v1677 = vunpack.c.l.b16 %v945
        %v1678 = vunpack.c.h.b16 %v945
        %v1679 = vunpack.c.l.b16 %v946
        %v1680 = vunpack.c.h.b16 %v946
        %v1681 = vunpack.c.l.b16 %v947
        %v1682 = vunpack.c.h.b16 %v947
        %v1683 = vunpack.c.l.b16 %v948
        %v1684 = vunpack.c.h.b16 %v948
        %v1685 = vunpack.c.l.b16 %v949
        %v1686 = vunpack.c.h.b16 %v949
        %v1687 = vunpack.c.l.b16 %v950
        %v1688 = vunpack.c.h.b16 %v950
        %v1689 = vunpack.c.l.b16 %v951
        %v1690 = vunpack.c.h.b16 %v951
        %v1691 = vunpack.c.l.b16 %v952
        %v1692 = vunpack.c.h.b16 %v952
        %v1693 = vunpack.c.l.b16 %v953
        %v1694 = vunpack.c.h.b16 %v953
        %v1695 = vunpack.c.l.b16 %v954
        %v1696 = vunpack.c.h.b16 %v954
        %v1697 = vunpack.c.l.b16 %v955
        %v1698 = vunpack.c.h.b16 %v955
        %v1699 = vunpack.c.l.b16 %v956
        %v1700 = vunpack.c.h.b16 %v956
        %v1701 = vunpack.c.l.b16 %v957
        %v1702 = vunpack.c.h.b16 %v957
        %v1703 = vunpack.c.l.b16 %v958
        %v1704 = vunpack.c.h.b16 %v958
        %v1705 = vunpack.c.l.b16 %v959
        %v1706 = vunpack.c.h.b16 %v959
        %v1707 = vunpack.c.l.b16 %v960
        %v1708 = vunpack.c.h.b16 %v960
        %v1709 = vunpack.c.l.b16 %v961
        %v1710 = vunpack.c.h.b16 %v961
        %v1711 = vunpack.c.l.b16 %v962
        %v1712 = vunpack.c.h.b16 %v962
        %v1713 = vunpack.c.l.b16 %v963
        %v1714 = vunpack.c.h.b16 %v963
        %v1715 = vunpack.c.l.b16 %v964
        %v1716 = vunpack.c.h.b16 %v964
        %v1717 = vunpack.c.l.b16 %v965
        %v1718 = vunpack.c.h.b16 %v965
        %v1719 = vunpack.c.l.b16 %v966
        %v1720 = vunpack.c.h.b16 %v966
        %v1721 = vunpack.c.l.b16 %v967
        %v1722 = vunpack.c.h.b16 %v967
        %v1723 = vunpack.c.l.b16 %v968
        %v1724 = vunpack.c.h.b16 %v968
        %v1725 = vunpack.c.l.b16 %v969
        %v1726 = vunpack.c.h.b16 %v969
        %v1727 = vunpack.c.l.b16 %v970
        %v1728 = vunpack.c.h.b16 %v970
        %v1729 = vunpack.c.l.b16 %v971
        %v1730 = vunpack.c.h.b16 %v971
        %v1731 = vunpack.c.l.b16 %v972
        %v1732 = vunpack.c.h.b16 %v972
        %v1733 = vunpack.c.l.b16 %v973
        %v1734 = vunpack.c.h.b16 %v973
        %v1735 = vunpack.c.l.b16 %v974
        %v1736 = vunpack.c.h.b16 %v974
        %v1737 = vunpack.c.l.b16 %v975
        %v1738 = vunpack.c.h.b16 %v975
        %v1739 = vunpack.c.l.b16 %v976
        %v1740 = vunpack.c.h.b16 %v976
        %v1741 = vunpack.c.l.b16 %v977
        %v1742 = vunpack.c.h.b16 %v977
        %v1743 = vunpack.c.l.b16 %v978
        %v1744 = vunpack.c.h.b16 %v978
        %v1745 = vpack.c.b16 %v1301, %v1297
        %v1746 = vpack.c.b16 %v1302, %v1298
        %v1747 = vpack.c.b16 %v1303, %v1299
        %v1748 = vpack.c.b16 %v1304, %v1300
        %v1749 = vpack.c.b16 %v1309, %v1305
        %v1750 = vpack.c.b16 %v1310, %v1306
        %v1751 = vpack.c.b16 %v1311, %v1307
        %v1752 = vpack.c.b16 %v1312, %v1308
        %v1753 = vpack.c.b16 %v1317, %v1313
        %v1754 = vpack.c.b16 %v1318, %v1314
        %v1755 = vpack.c.b16 %v1319, %v1315
        %v1756 = vpack.c.b16 %v1320, %v1316
        %v1757 = vpack.c.b16 %v1325, %v1321
        %v1758 = vpack.c.b16 %v1326, %v1322
        %v1759 = vpack.c.b16 %v1327, %v1323
        %v1760 = vpack.c.b16 %v1328, %v1324
        %v1761 = vpack.c.b16 %v1333, %v1329
        %v1762 = vpack.c.b16 %v1334, %v1330
        %v1763 = vpack.c.b16 %v1335, %v1331
        %v1764 = vpack.c.b16 %v1336, %v1332
        %v1765 = vpack.c.b16 %v1341, %v1337
        %v1766 = vpack.c.b16 %v1342, %v1338
        %v1767 = vpack.c.b16 %v1343, %v1339
        %v1768 = vpack.c.b16 %v1344, %v1340
        %v1769 = vpack.c.b16 %v1349, %v1345
        %v1770 = vpack.c.b16 %v1350, %v1346
        %v1771 = vpack.c.b16 %v1351, %v1347
        %v1772 = vpack.c.b16 %v1352, %v1348
        %v1773 = vpack.c.b16 %v1357, %v1353
        %v1774 = vpack.c.b16 %v1358, %v1354
        %v1775 = vpack.c.b16 %v1359, %v1355
        %v1776 = vpack.c.b16 %v1360, %v1356
        %v1777 = vpack.c.b16 %v1365, %v1361
        %v1778 = vpack.c.b16 %v1366, %v1362
        %v1779 = vpack.c.b16 %v1367, %v1363
        %v1780 = vpack.c.b16 %v1368, %v1364
        %v1781 = vpack.c.b16 %v1373, %v1369
        %v1782 = vpack.c.b16 %v1374, %v1370
        %v1783 = vpack.c.b16 %v1375, %v1371
        %v1784 = vpack.c.b16 %v1376, %v1372
        %v1785 = vpack.c.b16 %v1381, %v1377
        %v1786 = vpack.c.b16 %v1382, %v1378
        %v1787 = vpack.c.b16 %v1383, %v1379
        %v1788 = vpack.c.b16 %v1384, %v1380
        %v1789 = vpack.c.b16 %v1389, %v1385
        %v1790 = vpack.c.b16 %v1390, %v1386
        %v1791 = vpack.c.b16 %v1391, %v1387
        %v1792 = vpack.c.b16 %v1392, %v1388
        %v1793 = vpack.c.b16 %v1397, %v1393
        %v1794 = vpack.c.b16 %v1398, %v1394
        %v1795 = vpack.c.b16 %v1399, %v1395
        %v1796 = vpack.c.b16 %v1400, %v1396
        %v1797 = vpack.c.b16 %v1405, %v1401
        %v1798 = vpack.c.b16 %v1406, %v1402
        %v1799 = vpack.c.b16 %v1407, %v1403
        %v1800 = vpack.c.b16 %v1408, %v1404
        %v1801 = vpack.c.b16 %v1413, %v1409
        %v1802 = vpack.c.b16 %v1414, %v1410
        %v1803 = vpack.c.b16 %v1415, %v1411
        %v1804 = vpack.c.b16 %v1416, %v1412
        %v1805 = vpack.c.b16 %v1421, %v1417
        %v1806 = vpack.c.b16 %v1422, %v1418
        %v1807 = vpack.c.b16 %v1423, %v1419
        %v1808 = vpack.c.b16 %v1424, %v1420
        %v1809 = vpack.c.b16 %v1429, %v1425
        %v1810 = vpack.c.b16 %v1430, %v1426
        %v1811 = vpack.c.b16 %v1431, %v1427
        %v1812 = vpack.c.b16 %v1432, %v1428
        %v1813 = vpack.c.b16 %v1437, %v1433
        %v1814 = vpack.c.b16 %v1438, %v1434
        %v1815 = vpack.c.b16 %v1439, %v1435
        %v1816 = vpack.c.b16 %v1440, %v1436
        %v1817 = vpack.c.b16 %v1445, %v1441
        %v1818 = vpack.c.b16 %v1446, %v1442
        %v1819 = vpack.c.b16 %v1447, %v1443
        %v1820 = vpack.c.b16 %v1448, %v1444
        %v1821 = vpack.c.b16 %v1453, %v1449
        %v1822 = vpack.c.b16 %v1454, %v1450
        %v1823 = vpack.c.b16 %v1455, %v1451
        %v1824 = vpack.c.b16 %v1456, %v1452
        %v1825 = vpack.c.b16 %v1461, %v1457
        %v1826 = vpack.c.b16 %v1462, %v1458
        %v1827 = vpack.c.b16 %v1463, %v1459
        %v1828 = vpack.c.b16 %v1464, %v1460
        %v1829 = vpack.c.b16 %v1469, %v1465
        %v1830 = vpack.c.b16 %v1470, %v1466
        %v1831 = vpack.c.b16 %v1471, %v1467
        %v1832 = vpack.c.b16 %v1472, %v1468
        %v1833 = vpack.c.b16 %v1477, %v1473
        %v1834 = vpack.c.b16 %v1478, %v1474
        %v1835 = vpack.c.b16 %v1479, %v1475
        %v1836 = vpack.c.b16 %v1480, %v1476
        %v1837 = vpack.c.b16 %v1485, %v1481
        %v1838 = vpack.c.b16 %v1486, %v1482
        %v1839 = vpack.c.b16 %v1487, %v1483
        %v1840 = vpack.c.b16 %v1488, %v1484
        %v1841 = vpack.c.b16 %v1493, %v1489
        %v1842 = vpack.c.b16 %v1494, %v1490
        %v1843 = vpack.c.b16 %v1495, %v1491
        %v1844 = vpack.c.b16 %v1496, %v1492
        %v1845 = vpack.c.b16 %v1501, %v1497
        %v1846 = vpack.c.b16 %v1502, %v1498
        %v1847 = vpack.c.b16 %v1503, %v1499
        %v1848 = vpack.c.b16 %v1504, %v1500
        %v1849 = vpack.c.b16 %v1509, %v1505
        %v1850 = vpack.c.b16 %v1510, %v1506
        %v1851 = vpack.c.b16 %v1511, %v1507
        %v1852 = vpack.c.b16 %v1512, %v1508
        %v1853 = vpack.c.b16 %v1517, %v1513
        %v1854 = vpack.c.b16 %v1518, %v1514
        %v1855 = vpack.c.b16 %v1519, %v1515
        %v1856 = vpack.c.b16 %v1520, %v1516
        %v1857 = vpack.c.b16 %v1525, %v1521
        %v1858 = vpack.c.b16 %v1526, %v1522
        %v1859 = vpack.c.b16 %v1527, %v1523
        %v1860 = vpack.c.b16 %v1528, %v1524
        %v1861 = vpack.c.b16 %v1533, %v1529
        %v1862 = vpack.c.b16 %v1534, %v1530
        %v1863 = vpack.c.b16 %v1535, %v1531
        %v1864 = vpack.c.b16 %v1536, %v1532
        %v1865 = vpack.c.b16 %v1541, %v1537
        %v1866 = vpack.c.b16 %v1542, %v1538
        %v1867 = vpack.c.b16 %v1543, %v1539
        %v1868 = vpack.c.b16 %v1544, %v1540
        %v1869 = vpack.c.b16 %v1549, %v1545
        %v1870 = vpack.c.b16 %v1550, %v1546
        %v1871 = vpack.c.b16 %v1551, %v1547
        %v1872 = vpack.c.b16 %v1552, %v1548
        %v1873 = vpack.c.b16 %v1557, %v1553
        %v1874 = vpack.c.b16 %v1558, %v1554
        %v1875 = vpack.c.b16 %v1559, %v1555
        %v1876 = vpack.c.b16 %v1560, %v1556
        %v1877 = vpack.c.b16 %v1565, %v1561
        %v1878 = vpack.c.b16 %v1566, %v1562
        %v1879 = vpack.c.b16 %v1567, %v1563
        %v1880 = vpack.c.b16 %v1568, %v1564
        %v1881 = vpack.c.b16 %v1573, %v1569
        %v1882 = vpack.c.b16 %v1574, %v1570
        %v1883 = vpack.c.b16 %v1575, %v1571
        %v1884 = vpack.c.b16 %v1576, %v1572
        %v1885 = vpack.c.b16 %v1581, %v1577
        %v1886 = vpack.c.b16 %v1582, %v1578
        %v1887 = vpack.c.b16 %v1583, %v1579
        %v1888 = vpack.c.b16 %v1584, %v1580
        %v1889 = vpack.c.b16 %v1589, %v1585
        %v1890 = vpack.c.b16 %v1590, %v1586
        %v1891 = vpack.c.b16 %v1591, %v1587
        %v1892 = vpack.c.b16 %v1592, %v1588
        %v1893 = vpack.c.b16 %v1597, %v1593
        %v1894 = vpack.c.b16 %v1598, %v1594
        %v1895 = vpack.c.b16 %v1599, %v1595
        %v1896 = vpack.c.b16 %v1600, %v1596
        %v1897 = vpack.c.b16 %v1605, %v1601
        %v1898 = vpack.c.b16 %v1606, %v1602
        %v1899 = vpack.c.b16 %v1607, %v1603
        %v1900 = vpack.c.b16 %v1608, %v1604
        %v1901 = vpack.c.b16 %v1613, %v1609
        %v1902 = vpack.c.b16 %v1614, %v1610
        %v1903 = vpack.c.b16 %v1615, %v1611
        %v1904 = vpack.c.b16 %v1616, %v1612
        %v1905 = vpack.c.b16 %v1621, %v1617
        %v1906 = vpack.c.b16 %v1622, %v1618
        %v1907 = vpack.c.b16 %v1623, %v1619
        %v1908 = vpack.c.b16 %v1624, %v1620
        %v1909 = vpack.c.b16 %v1629, %v1625
        %v1910 = vpack.c.b16 %v1630, %v1626
        %v1911 = vpack.c.b16 %v1631, %v1627
        %v1912 = vpack.c.b16 %v1632, %v1628
        %v1913 = vpack.c.b16 %v1637, %v1633
        %v1914 = vpack.c.b16 %v1638, %v1634
        %v1915 = vpack.c.b16 %v1639, %v1635
        %v1916 = vpack.c.b16 %v1640, %v1636
        %v1917 = vpack.c.b16 %v1645, %v1641
        %v1918 = vpack.c.b16 %v1646, %v1642
        %v1919 = vpack.c.b16 %v1647, %v1643
        %v1920 = vpack.c.b16 %v1648, %v1644
        %v1921 = vpack.c.b16 %v1653, %v1649
        %v1922 = vpack.c.b16 %v1654, %v1650
        %v1923 = vpack.c.b16 %v1655, %v1651
        %v1924 = vpack.c.b16 %v1656, %v1652
        %v1925 = vpack.c.b16 %v1661, %v1657
        %v1926 = vpack.c.b16 %v1662, %v1658
        %v1927 = vpack.c.b16 %v1663, %v1659
        %v1928 = vpack.c.b16 %v1664, %v1660
        %v1929 = vpack.c.b16 %v1669, %v1665
        %v1930 = vpack.c.b16 %v1670, %v1666
        %v1931 = vpack.c.b16 %v1671, %v1667
        %v1932 = vpack.c.b16 %v1672, %v1668
        %v1933 = vpack.c.b16 %v1677, %v1673
        %v1934 = vpack.c.b16 %v1678, %v1674
        %v1935 = vpack.c.b16 %v1679, %v1675
        %v1936 = vpack.c.b16 %v1680, %v1676
        %v1937 = vpack.c.b16 %v1685, %v1681
        %v1938 = vpack.c.b16 %v1686, %v1682
        %v1939 = vpack.c.b16 %v1687, %v1683
        %v1940 = vpack.c.b16 %v1688, %v1684
        %v1941 = vpack.c.b16 %v1693, %v1689
        %v1942 = vpack.c.b16 %v1694, %v1690
        %v1943 = vpack.c.b16 %v1695, %v1691
        %v1944 = vpack.c.b16 %v1696, %v1692
        %v1945 = vpack.c.b16 %v1701, %v1697
        %v1946 = vpack.c.b16 %v1702, %v1698
        %v1947 = vpack.c.b16 %v1703, %v1699
        %v1948 = vpack.c.b16 %v1704, %v1700
        %v1949 = vpack.c.b16 %v1709, %v1705
        %v1950 = vpack.c.b16 %v1710, %v1706
        %v1951 = vpack.c.b16 %v1711, %v1707
        %v1952 = vpack.c.b16 %v1712, %v1708
        %v1953 = vpack.c.b16 %v1717, %v1713
        %v1954 = vpack.c.b16 %v1718, %v1714
        %v1955 = vpack.c.b16 %v1719, %v1715
        %v1956 = vpack.c.b16 %v1720, %v1716
        %v1957 = vpack.c.b16 %v1725, %v1721
        %v1958 = vpack.c.b16 %v1726, %v1722
        %v1959 = vpack.c.b16 %v1727, %v1723
        %v1960 = vpack.c.b16 %v1728, %v1724
        %v1961 = vpack.c.b16 %v1733, %v1729
        %v1962 = vpack.c.b16 %v1734, %v1730
        %v1963 = vpack.c.b16 %v1735, %v1731
        %v1964 = vpack.c.b16 %v1736, %v1732
        %v1965 = vpack.c.b16 %v1741, %v1737
        %v1966 = vpack.c.b16 %v1742, %v1738
        %v1967 = vpack.c.b16 %v1743, %v1739
        %v1968 = vpack.c.b16 %v1744, %v1740
        %2193 = vmatprep.subr.bf16.mxu0 %v1746
        %2194 = vmatpush1.bf16.msra.mxu0 %v1745
        %2195 = vmatprep.subr.bf16.mxu0 %v1750
        %2196 = vmatpush1.bf16.msra.mxu0 %v1749
        %2197 = vmatprep.subr.bf16.mxu0 %v1754
        %2198 = vmatpush1.bf16.msra.mxu0 %v1753
        %2199 = vmatprep.subr.bf16.mxu0 %v1758
        %2200 = vmatpush1.bf16.msra.mxu0 %v1757
        %2201 = vmatprep.subr.bf16.mxu0 %v1762
        %2202 = vmatpush1.bf16.msra.mxu0 %v1761
        %2203 = vmatprep.subr.bf16.mxu0 %v1766
        %2204 = vmatpush1.bf16.msra.mxu0 %v1765
        %2205 = vmatprep.subr.bf16.mxu0 %v1770
        %2206 = vmatpush1.bf16.msra.mxu0 %v1769
        %2207 = vmatprep.subr.bf16.mxu0 %v1774
        %2208 = vmatpush1.bf16.msra.mxu0 %v1773
        %2209 = vmatprep.subr.bf16.mxu0 %v1778
        %2210 = vmatpush1.bf16.msra.mxu0 %v1777
        %2211 = vmatprep.subr.bf16.mxu0 %v1782
        %2212 = vmatpush1.bf16.msra.mxu0 %v1781
        %2213 = vmatprep.subr.bf16.mxu0 %v1786
        %2214 = vmatpush1.bf16.msra.mxu0 %v1785
        %2215 = vmatprep.subr.bf16.mxu0 %v1790
        %2216 = vmatpush1.bf16.msra.mxu0 %v1789
        %2217 = vmatprep.subr.bf16.mxu0 %v1794
        %2218 = vmatpush1.bf16.msra.mxu0 %v1793
        %2219 = vmatprep.subr.bf16.mxu0 %v1798
        %2220 = vmatpush1.bf16.msra.mxu0 %v1797
        %2221 = vmatprep.subr.bf16.mxu0 %v1802
        %2222 = vmatpush1.bf16.msra.mxu0 %v1801
        %2223 = vmatprep.subr.bf16.mxu0 %v1806
        %2224 = vmatpush1.bf16.msra.mxu0 %v1805
        %2225 = vmatprep.mubr.bf16.mxu0 %v1046
        %2226 = vmatmul.mubr.bf16.gmra.mrb[0].mxu0 %v1045
        %v2227 = vpop.f32.mrb[0].mxu0
        %v2228 = vadd.f32 %v984, %v2227
        %v2229 = vpop.f32.mrb[0].mxu0
        %v2230 = vadd.f32 %v988, %v2229
        %v2231 = vpop.f32.mrb[0].mxu0
        %v2232 = vadd.f32 %v984, %v2231
        %v2233 = vpop.f32.mrb[0].mxu0
        %v2234 = vadd.f32 %v988, %v2233
        %2235 = vmatprep.mubr.bf16.mxu0 %v1053
        %2236 = vmatmul.mubr.bf16.gmra.mrb[0].mxu0 %v1052
        %v2237 = vpop.f32.mrb[0].mxu0
        %v2238 = vadd.f32 %v984, %v2237
        %v2239 = vpop.f32.mrb[0].mxu0
        %v2240 = vadd.f32 %v988, %v2239
        %v2241 = vpop.f32.mrb[0].mxu0
        %v2242 = vadd.f32 %v984, %v2241
        %v2243 = vpop.f32.mrb[0].mxu0
        %v2244 = vadd.f32 %v988, %v2243
        %2245 = vdwg.mxu0
        %2246 = vmatprep.subr.bf16.mxu0 %v1810
        %2247 = vmatpush1.bf16.msra.mxu0 %v1809
        %2248 = vmatprep.subr.bf16.mxu0 %v1814
        %2249 = vmatpush1.bf16.msra.mxu0 %v1813
        %2250 = vmatprep.subr.bf16.mxu0 %v1818
        %2251 = vmatpush1.bf16.msra.mxu0 %v1817
        %2252 = vmatprep.subr.bf16.mxu0 %v1822
        %2253 = vmatpush1.bf16.msra.mxu0 %v1821
        %2254 = vmatprep.subr.bf16.mxu0 %v1826
        %2255 = vmatpush1.bf16.msra.mxu0 %v1825
        %2256 = vmatprep.subr.bf16.mxu0 %v1830
        %2257 = vmatpush1.bf16.msra.mxu0 %v1829
        %2258 = vmatprep.subr.bf16.mxu0 %v1834
        %2259 = vmatpush1.bf16.msra.mxu0 %v1833
        %2260 = vmatprep.subr.bf16.mxu0 %v1838
        %2261 = vmatpush1.bf16.msra.mxu0 %v1837
        %2262 = vmatprep.subr.bf16.mxu0 %v1842
        %2263 = vmatpush1.bf16.msra.mxu0 %v1841
        %2264 = vmatprep.subr.bf16.mxu0 %v1846
        %2265 = vmatpush1.bf16.msra.mxu0 %v1845
        %2266 = vmatprep.subr.bf16.mxu0 %v1850
        %2267 = vmatpush1.bf16.msra.mxu0 %v1849
        %2268 = vmatprep.subr.bf16.mxu0 %v1854
        %2269 = vmatpush1.bf16.msra.mxu0 %v1853
        %2270 = vmatprep.subr.bf16.mxu0 %v1858
        %2271 = vmatpush1.bf16.msra.mxu0 %v1857
        %2272 = vmatprep.subr.bf16.mxu0 %v1862
        %2273 = vmatpush1.bf16.msra.mxu0 %v1861
        %2274 = vmatprep.subr.bf16.mxu0 %v1866
        %2275 = vmatpush1.bf16.msra.mxu0 %v1865
        %2276 = vmatprep.subr.bf16.mxu0 %v1870
        %2277 = vmatpush1.bf16.msra.mxu0 %v1869
        %2278 = vmatprep.mubr.bf16.mxu0 %v1048
        %2279 = vmatmul.mubr.bf16.gmra.mrb[0].mxu0 %v1047
        %v2280 = vpop.f32.mrb[0].mxu0
        %v2281 = vadd.f32 %v2228, %v2280
        %v2282 = vpop.f32.mrb[0].mxu0
        %v2283 = vadd.f32 %v2230, %v2282
        %v2284 = vpop.f32.mrb[0].mxu0
        %v2285 = vadd.f32 %v2232, %v2284
        %v2286 = vpop.f32.mrb[0].mxu0
        %v2287 = vadd.f32 %v2234, %v2286
        %2288 = vmatprep.mubr.bf16.mxu0 %v1055
        %2289 = vmatmul.mubr.bf16.gmra.mrb[0].mxu0 %v1054
        %v2290 = vpop.f32.mrb[0].mxu0
        %v2291 = vadd.f32 %v2238, %v2290
        %v2292 = vpop.f32.mrb[0].mxu0
        %v2293 = vadd.f32 %v2240, %v2292
        %v2294 = vpop.f32.mrb[0].mxu0
        %v2295 = vadd.f32 %v2242, %v2294
        %v2296 = vpop.f32.mrb[0].mxu0
        %v2297 = vadd.f32 %v2244, %v2296
        %2298 = vdwg.mxu0
        %2299 = vmatprep.subr.bf16.mxu0 %v1874
        %2300 = vmatpush1.bf16.msra.mxu0 %v1873
        %2301 = vmatprep.subr.bf16.mxu0 %v1878
        %2302 = vmatpush1.bf16.msra.mxu0 %v1877
        %2303 = vmatprep.subr.bf16.mxu0 %v1882
        %2304 = vmatpush1.bf16.msra.mxu0 %v1881
        %2305 = vmatprep.subr.bf16.mxu0 %v1886
        %2306 = vmatpush1.bf16.msra.mxu0 %v1885
        %2307 = vmatprep.subr.bf16.mxu0 %v1890
        %2308 = vmatpush1.bf16.msra.mxu0 %v1889
        %2309 = vmatprep.subr.bf16.mxu0 %v1894
        %2310 = vmatpush1.bf16.msra.mxu0 %v1893
        %2311 = vmatprep.subr.bf16.mxu0 %v1898
        %2312 = vmatpush1.bf16.msra.mxu0 %v1897
        %2313 = vmatprep.subr.bf16.mxu0 %v1902
        %2314 = vmatpush1.bf16.msra.mxu0 %v1901
        %2315 = vmatprep.subr.bf16.mxu0 %v1906
        %2316 = vmatpush1.bf16.msra.mxu0 %v1905
        %2317 = vmatprep.subr.bf16.mxu0 %v1910
        %2318 = vmatpush1.bf16.msra.mxu0 %v1909
        %2319 = vmatprep.subr.bf16.mxu0 %v1914
        %2320 = vmatpush1.bf16.msra.mxu0 %v1913
        %2321 = vmatprep.subr.bf16.mxu0 %v1918
        %2322 = vmatpush1.bf16.msra.mxu0 %v1917
        %2323 = vmatprep.subr.bf16.mxu0 %v1922
        %2324 = vmatpush1.bf16.msra.mxu0 %v1921
        %2325 = vmatprep.subr.bf16.mxu0 %v1926
        %2326 = vmatpush1.bf16.msra.mxu0 %v1925
        %2327 = vmatprep.subr.bf16.mxu0 %v1930
        %2328 = vmatpush1.bf16.msra.mxu0 %v1929
        %2329 = vmatprep.subr.bf16.mxu0 %v1934
        %2330 = vmatpush1.bf16.msra.mxu0 %v1933
        %2331 = vmatprep.mubr.bf16.mxu0 %v1050
        %2332 = vmatmul.mubr.bf16.gmra.mrb[0].mxu0 %v1049
        %v2333 = vpop.f32.mrb[0].mxu0
        %v2334 = vadd.f32 %v2281, %v2333
        %v2335 = vpop.f32.mrb[0].mxu0
        %v2336 = vadd.f32 %v2283, %v2335
        %v2337 = vpop.f32.mrb[0].mxu0
        %v2338 = vadd.f32 %v2285, %v2337
        %v2339 = vpop.f32.mrb[0].mxu0
        %v2340 = vadd.f32 %v2287, %v2339
        %2341 = vmatprep.mubr.bf16.mxu0 %v1057
        %2342 = vmatmul.mubr.bf16.gmra.mrb[0].mxu0 %v1056
        %v2343 = vpop.f32.mrb[0].mxu0
        %v2344 = vadd.f32 %v2291, %v2343
        %v2345 = vpop.f32.mrb[0].mxu0
        %v2346 = vadd.f32 %v2293, %v2345
        %v2347 = vpop.f32.mrb[0].mxu0
        %v2348 = vadd.f32 %v2295, %v2347
        %v2349 = vpop.f32.mrb[0].mxu0
        %v2350 = vadd.f32 %v2297, %v2349
        %2351 = vdwg.mxu0
        %2352 = vmatprep.subr.bf16.mxu0 %v1938
        %2353 = vmatpush1.bf16.msra.mxu0 %v1937
        %2354 = vmatprep.subr.bf16.mxu0 %v1942
        %2355 = vmatpush1.bf16.msra.mxu0 %v1941
        %2356 = vmatprep.subr.bf16.mxu0 %v1946
        %2357 = vmatpush1.bf16.msra.mxu0 %v1945
        %2358 = vmatprep.subr.bf16.mxu0 %v1950
        %2359 = vmatpush1.bf16.msra.mxu0 %v1949
        %2360 = vmatprep.subr.bf16.mxu0 %v1954
        %2361 = vmatpush1.bf16.msra.mxu0 %v1953
        %2362 = vmatprep.subr.bf16.mxu0 %v1958
        %2363 = vmatpush1.bf16.msra.mxu0 %v1957
        %2364 = vmatprep.subr.bf16.mxu0 %v1962
        %2365 = vmatpush1.bf16.msra.mxu0 %v1961
        %2366 = vmatprep.subr.bf16.mxu0 %v1966
        %2367 = vmatpush1.bf16.msra.mxu0 %v1965
        %2368 = vmatprep.subr.bf16.mxu0 0
        %2369 = vmatpush1.bf16.msra.mxu0 0
        %2370 = vmatprep.subr.bf16.mxu0 0
        %2371 = vmatpush1.bf16.msra.mxu0 0
        %2372 = vmatprep.subr.bf16.mxu0 0
        %2373 = vmatpush1.bf16.msra.mxu0 0
        %2374 = vmatprep.subr.bf16.mxu0 0
        %2375 = vmatpush1.bf16.msra.mxu0 0
        %2376 = vmatprep.subr.bf16.mxu0 0
        %2377 = vmatpush1.bf16.msra.mxu0 0
        %2378 = vmatprep.subr.bf16.mxu0 0
        %2379 = vmatpush1.bf16.msra.mxu0 0
        %2380 = vmatprep.subr.bf16.mxu0 0
        %2381 = vmatpush1.bf16.msra.mxu0 0
        %2382 = vmatprep.subr.bf16.mxu0 0
        %2383 = vmatpush1.bf16.msra.mxu0 0
        %2384 = vmatprep.mubr.bf16.mxu0 0
        %2385 = vmatmul.mubr.bf16.gmra.mrb[0].mxu0 %v1051
        %v2386 = vpop.f32.mrb[0].mxu0
        %v2387 = vadd.f32 %v2334, %v2386
        %v2388 = vpop.f32.mrb[0].mxu0
        %v2389 = vadd.f32 %v2336, %v2388
        %v2390 = vpop.f32.mrb[0].mxu0
        %v2391 = vadd.f32 %v2338, %v2390
        %v2392 = vpop.f32.mrb[0].mxu0
        %v2393 = vadd.f32 %v2340, %v2392
        %2394 = vmatprep.mubr.bf16.mxu0 0
        %2395 = vmatmul.mubr.bf16.gmra.mrb[0].mxu0 %v1058
        %v2396 = vpop.f32.mrb[0].mxu0
        %v2397 = vadd.f32 %v2344, %v2396
        %v2398 = vpop.f32.mrb[0].mxu0
        %v2399 = vadd.f32 %v2346, %v2398
        %v2400 = vpop.f32.mrb[0].mxu0
        %v2401 = vadd.f32 %v2348, %v2400
        %v2402 = vpop.f32.mrb[0].mxu0
        %v2403 = vadd.f32 %v2350, %v2402
        %2404 = vdwg.mxu0
        %2405 = vmatprep.subr.bf16.mxu0 %v1748
        %2406 = vmatpush1.bf16.msra.mxu0 %v1747
        %2407 = vmatprep.subr.bf16.mxu0 %v1752
        %2408 = vmatpush1.bf16.msra.mxu0 %v1751
        %2409 = vmatprep.subr.bf16.mxu0 %v1756
        %2410 = vmatpush1.bf16.msra.mxu0 %v1755
        %2411 = vmatprep.subr.bf16.mxu0 %v1760
        %2412 = vmatpush1.bf16.msra.mxu0 %v1759
        %2413 = vmatprep.subr.bf16.mxu0 %v1764
        %2414 = vmatpush1.bf16.msra.mxu0 %v1763
        %2415 = vmatprep.subr.bf16.mxu0 %v1768
        %2416 = vmatpush1.bf16.msra.mxu0 %v1767
        %2417 = vmatprep.subr.bf16.mxu0 %v1772
        %2418 = vmatpush1.bf16.msra.mxu0 %v1771
        %2419 = vmatprep.subr.bf16.mxu0 %v1776
        %2420 = vmatpush1.bf16.msra.mxu0 %v1775
        %2421 = vmatprep.subr.bf16.mxu0 %v1780
        %2422 = vmatpush1.bf16.msra.mxu0 %v1779
        %2423 = vmatprep.subr.bf16.mxu0 %v1784
        %2424 = vmatpush1.bf16.msra.mxu0 %v1783
        %2425 = vmatprep.subr.bf16.mxu0 %v1788
        %2426 = vmatpush1.bf16.msra.mxu0 %v1787
        %2427 = vmatprep.subr.bf16.mxu0 %v1792
        %2428 = vmatpush1.bf16.msra.mxu0 %v1791
        %2429 = vmatprep.subr.bf16.mxu0 %v1796
        %2430 = vmatpush1.bf16.msra.mxu0 %v1795
        %2431 = vmatprep.subr.bf16.mxu0 %v1800
        %2432 = vmatpush1.bf16.msra.mxu0 %v1799
        %2433 = vmatprep.subr.bf16.mxu0 %v1804
        %2434 = vmatpush1.bf16.msra.mxu0 %v1803
        %2435 = vmatprep.subr.bf16.mxu0 %v1808
        %2436 = vmatpush1.bf16.msra.mxu0 %v1807
        %2437 = vmatprep.mubr.bf16.mxu0 %v1046
        %2438 = vmatmul.mubr.bf16.gmra.mrb[0].mxu0 %v1045
        %v2439 = vpop.f32.mrb[0].mxu0
        %v2440 = vadd.f32 %v992, %v2439
        %v2441 = vpop.f32.mrb[0].mxu0
        %v2442 = vadd.f32 %v996, %v2441
        %v2443 = vpop.f32.mrb[0].mxu0
        %v2444 = vadd.f32 %v992, %v2443
        %v2445 = vpop.f32.mrb[0].mxu0
        %v2446 = vadd.f32 %v996, %v2445
        %2447 = vmatprep.mubr.bf16.mxu0 %v1053
        %2448 = vmatmul.mubr.bf16.gmra.mrb[0].mxu0 %v1052
        %v2449 = vpop.f32.mrb[0].mxu0
        %v2450 = vadd.f32 %v992, %v2449
        %v2451 = vpop.f32.mrb[0].mxu0
        %v2452 = vadd.f32 %v996, %v2451
        %v2453 = vpop.f32.mrb[0].mxu0
        %v2454 = vadd.f32 %v992, %v2453
        %v2455 = vpop.f32.mrb[0].mxu0
        %v2456 = vadd.f32 %v996, %v2455
        %2457 = vdwg.mxu0
        %2458 = vmatprep.subr.bf16.mxu0 %v1812
        %2459 = vmatpush1.bf16.msra.mxu0 %v1811
        %2460 = vmatprep.subr.bf16.mxu0 %v1816
        %2461 = vmatpush1.bf16.msra.mxu0 %v1815
        %2462 = vmatprep.subr.bf16.mxu0 %v1820
        %2463 = vmatpush1.bf16.msra.mxu0 %v1819
        %2464 = vmatprep.subr.bf16.mxu0 %v1824
        %2465 = vmatpush1.bf16.msra.mxu0 %v1823
        %2466 = vmatprep.subr.bf16.mxu0 %v1828
        %2467 = vmatpush1.bf16.msra.mxu0 %v1827
        %2468 = vmatprep.subr.bf16.mxu0 %v1832
        %2469 = vmatpush1.bf16.msra.mxu0 %v1831
        %2470 = vmatprep.subr.bf16.mxu0 %v1836
        %2471 = vmatpush1.bf16.msra.mxu0 %v1835
        %2472 = vmatprep.subr.bf16.mxu0 %v1840
        %2473 = vmatpush1.bf16.msra.mxu0 %v1839
        %2474 = vmatprep.subr.bf16.mxu0 %v1844
        %2475 = vmatpush1.bf16.msra.mxu0 %v1843
        %2476 = vmatprep.subr.bf16.mxu0 %v1848
        %2477 = vmatpush1.bf16.msra.mxu0 %v1847
        %2478 = vmatprep.subr.bf16.mxu0 %v1852
        %2479 = vmatpush1.bf16.msra.mxu0 %v1851
        %2480 = vmatprep.subr.bf16.mxu0 %v1856
        %2481 = vmatpush1.bf16.msra.mxu0 %v1855
        %2482 = vmatprep.subr.bf16.mxu0 %v1860
        %2483 = vmatpush1.bf16.msra.mxu0 %v1859
        %2484 = vmatprep.subr.bf16.mxu0 %v1864
        %2485 = vmatpush1.bf16.msra.mxu0 %v1863
        %2486 = vmatprep.subr.bf16.mxu0 %v1868
        %2487 = vmatpush1.bf16.msra.mxu0 %v1867
        %2488 = vmatprep.subr.bf16.mxu0 %v1872
        %2489 = vmatpush1.bf16.msra.mxu0 %v1871
        %2490 = vmatprep.mubr.bf16.mxu0 %v1048
        %2491 = vmatmul.mubr.bf16.gmra.mrb[0].mxu0 %v1047
        %v2492 = vpop.f32.mrb[0].mxu0
        %v2493 = vadd.f32 %v2440, %v2492
        %v2494 = vpop.f32.mrb[0].mxu0
        %v2495 = vadd.f32 %v2442, %v2494
        %v2496 = vpop.f32.mrb[0].mxu0
        %v2497 = vadd.f32 %v2444, %v2496
        %v2498 = vpop.f32.mrb[0].mxu0
        %v2499 = vadd.f32 %v2446, %v2498
        %2500 = vmatprep.mubr.bf16.mxu0 %v1055
        %2501 = vmatmul.mubr.bf16.gmra.mrb[0].mxu0 %v1054
        %v2502 = vpop.f32.mrb[0].mxu0
        %v2503 = vadd.f32 %v2450, %v2502
        %v2504 = vpop.f32.mrb[0].mxu0
        %v2505 = vadd.f32 %v2452, %v2504
        %v2506 = vpop.f32.mrb[0].mxu0
        %v2507 = vadd.f32 %v2454, %v2506
        %v2508 = vpop.f32.mrb[0].mxu0
        %v2509 = vadd.f32 %v2456, %v2508
        %2510 = vdwg.mxu0
        %2511 = vmatprep.subr.bf16.mxu0 %v1876
        %2512 = vmatpush1.bf16.msra.mxu0 %v1875
        %2513 = vmatprep.subr.bf16.mxu0 %v1880
        %2514 = vmatpush1.bf16.msra.mxu0 %v1879
        %2515 = vmatprep.subr.bf16.mxu0 %v1884
        %2516 = vmatpush1.bf16.msra.mxu0 %v1883
        %2517 = vmatprep.subr.bf16.mxu0 %v1888
        %2518 = vmatpush1.bf16.msra.mxu0 %v1887
        %2519 = vmatprep.subr.bf16.mxu0 %v1892
        %2520 = vmatpush1.bf16.msra.mxu0 %v1891
        %2521 = vmatprep.subr.bf16.mxu0 %v1896
        %2522 = vmatpush1.bf16.msra.mxu0 %v1895
        %2523 = vmatprep.subr.bf16.mxu0 %v1900
        %2524 = vmatpush1.bf16.msra.mxu0 %v1899
        %2525 = vmatprep.subr.bf16.mxu0 %v1904
        %2526 = vmatpush1.bf16.msra.mxu0 %v1903
        %2527 = vmatprep.subr.bf16.mxu0 %v1908
        %2528 = vmatpush1.bf16.msra.mxu0 %v1907
        %2529 = vmatprep.subr.bf16.mxu0 %v1912
        %2530 = vmatpush1.bf16.msra.mxu0 %v1911
        %2531 = vmatprep.subr.bf16.mxu0 %v1916
        %2532 = vmatpush1.bf16.msra.mxu0 %v1915
        %2533 = vmatprep.subr.bf16.mxu0 %v1920
        %2534 = vmatpush1.bf16.msra.mxu0 %v1919
        %2535 = vmatprep.subr.bf16.mxu0 %v1924
        %2536 = vmatpush1.bf16.msra.mxu0 %v1923
        %2537 = vmatprep.subr.bf16.mxu0 %v1928
        %2538 = vmatpush1.bf16.msra.mxu0 %v1927
        %2539 = vmatprep.subr.bf16.mxu0 %v1932
        %2540 = vmatpush1.bf16.msra.mxu0 %v1931
        %2541 = vmatprep.subr.bf16.mxu0 %v1936
        %2542 = vmatpush1.bf16.msra.mxu0 %v1935
        %2543 = vmatprep.mubr.bf16.mxu0 %v1050
        %2544 = vmatmul.mubr.bf16.gmra.mrb[0].mxu0 %v1049
        %v2545 = vpop.f32.mrb[0].mxu0
        %v2546 = vadd.f32 %v2493, %v2545
        %v2547 = vpop.f32.mrb[0].mxu0
        %v2548 = vadd.f32 %v2495, %v2547
        %v2549 = vpop.f32.mrb[0].mxu0
        %v2550 = vadd.f32 %v2497, %v2549
        %v2551 = vpop.f32.mrb[0].mxu0
        %v2552 = vadd.f32 %v2499, %v2551
        %2553 = vmatprep.mubr.bf16.mxu0 %v1057
        %2554 = vmatmul.mubr.bf16.gmra.mrb[0].mxu0 %v1056
        %v2555 = vpop.f32.mrb[0].mxu0
        %v2556 = vadd.f32 %v2503, %v2555
        %v2557 = vpop.f32.mrb[0].mxu0
        %v2558 = vadd.f32 %v2505, %v2557
        %v2559 = vpop.f32.mrb[0].mxu0
        %v2560 = vadd.f32 %v2507, %v2559
        %v2561 = vpop.f32.mrb[0].mxu0
        %v2562 = vadd.f32 %v2509, %v2561
        %2563 = vdwg.mxu0
        %2564 = vmatprep.subr.bf16.mxu0 %v1940
        %2565 = vmatpush1.bf16.msra.mxu0 %v1939
        %2566 = vmatprep.subr.bf16.mxu0 %v1944
        %2567 = vmatpush1.bf16.msra.mxu0 %v1943
        %2568 = vmatprep.subr.bf16.mxu0 %v1948
        %2569 = vmatpush1.bf16.msra.mxu0 %v1947
        %2570 = vmatprep.subr.bf16.mxu0 %v1952
        %2571 = vmatpush1.bf16.msra.mxu0 %v1951
        %2572 = vmatprep.subr.bf16.mxu0 %v1956
        %2573 = vmatpush1.bf16.msra.mxu0 %v1955
        %2574 = vmatprep.subr.bf16.mxu0 %v1960
        %2575 = vmatpush1.bf16.msra.mxu0 %v1959
        %2576 = vmatprep.subr.bf16.mxu0 %v1964
        %2577 = vmatpush1.bf16.msra.mxu0 %v1963
        %2578 = vmatprep.subr.bf16.mxu0 %v1968
        %2579 = vmatpush1.bf16.msra.mxu0 %v1967
        %2580 = vmatprep.subr.bf16.mxu0 0
        %2581 = vmatpush1.bf16.msra.mxu0 0
        %2582 = vmatprep.subr.bf16.mxu0 0
        %2583 = vmatpush1.bf16.msra.mxu0 0
        %2584 = vmatprep.subr.bf16.mxu0 0
        %2585 = vmatpush1.bf16.msra.mxu0 0
        %2586 = vmatprep.subr.bf16.mxu0 0
        %2587 = vmatpush1.bf16.msra.mxu0 0
        %2588 = vmatprep.subr.bf16.mxu0 0
        %2589 = vmatpush1.bf16.msra.mxu0 0
        %2590 = vmatprep.subr.bf16.mxu0 0
        %2591 = vmatpush1.bf16.msra.mxu0 0
        %2592 = vmatprep.subr.bf16.mxu0 0
        %2593 = vmatpush1.bf16.msra.mxu0 0
        %2594 = vmatprep.subr.bf16.mxu0 0
        %2595 = vmatpush1.bf16.msra.mxu0 0
        %2596 = vmatprep.mubr.bf16.mxu0 0
        %2597 = vmatmul.mubr.bf16.gmra.mrb[0].mxu0 %v1051
        %v2598 = vpop.f32.mrb[0].mxu0
        %v2599 = vadd.f32 %v2546, %v2598
        %v2600 = vpop.f32.mrb[0].mxu0
        %v2601 = vadd.f32 %v2548, %v2600
        %v2602 = vpop.f32.mrb[0].mxu0
        %v2603 = vadd.f32 %v2550, %v2602
        %v2604 = vpop.f32.mrb[0].mxu0
        %v2605 = vadd.f32 %v2552, %v2604
        %2606 = vmatprep.mubr.bf16.mxu0 0
        %2607 = vmatmul.mubr.bf16.gmra.mrb[0].mxu0 %v1058
        %v2608 = vpop.f32.mrb[0].mxu0
        %v2609 = vadd.f32 %v2556, %v2608
        %v2610 = vpop.f32.mrb[0].mxu0
        %v2611 = vadd.f32 %v2558, %v2610
        %v2612 = vpop.f32.mrb[0].mxu0
        %v2613 = vadd.f32 %v2560, %v2612
        %v2614 = vpop.f32.mrb[0].mxu0
        %v2615 = vadd.f32 %v2562, %v2614
        %2616 = vdwg.mxu0
        %v2617 = vtanh.pop %v2387
        %v2618 = vtanh.pop %v2389
        %v2619 = vtanh.pop %v2599
        %v2620 = vtanh.pop %v2601
        %v2621 = vtanh.pop %v2391
        %v2622 = vtanh.pop %v2393
        %v2623 = vtanh.pop %v2603
        %v2624 = vtanh.pop %v2605
        %v2625 = vtanh.pop %v2397
        %v2626 = vtanh.pop %v2399
        %v2627 = vtanh.pop %v2609
        %v2628 = vtanh.pop %v2611
        %v2629 = vtanh.pop %v2401
        %v2630 = vtanh.pop %v2403
        %v2631 = vtanh.pop %v2613
        %v2632 = vtanh.pop %v2615
        %v2633 = vpack.c.bf16 %v2621, %v2617
        %v2634 = vpack.c.bf16 %v2622, %v2618
        %v2635 = vpack.c.bf16 %v2623, %v2619
        %v2636 = vpack.c.bf16 %v2624, %v2620
        %v2637 = vpack.c.bf16 %v2629, %v2625
        %v2638 = vpack.c.bf16 %v2630, %v2626
        %v2639 = vpack.c.bf16 %v2631, %v2627
        %v2640 = vpack.c.bf16 %v2632, %v2628
        %v2641 = vld [vmem:[#allocation7] sm:$0xff]
        %v2642 = vld [vmem:[#allocation7 + $0x8] sm:$0xff]
        %v2643 = vld [vmem:[#allocation7 + $0x10] sm:$0xff]
        %v2644 = vld [vmem:[#allocation7 + $0x18] sm:$0xff]
        %v2645 = vld [vmem:[#allocation7 + $0x20] sm:$0xff]
        %v2646 = vld [vmem:[#allocation7 + $0x28] sm:$0xff]
        %v2647 = vld [vmem:[#allocation7 + $0x30] sm:$0xff]
        %v2648 = vld [vmem:[#allocation7 + $0x38] sm:$0xff]
        %v2649 = vld [vmem:[#allocation7 + $0x40] sm:$0xff]
        %v2650 = vld [vmem:[#allocation7 + $0x48] sm:$0xff]
        %v2651 = vld [vmem:[#allocation7 + $0x50] sm:$0xff]
        %v2652 = vld [vmem:[#allocation7 + $0x58] sm:$0xff]
        %v2653 = vld [vmem:[#allocation7 + $0x60] sm:$0xff]
        %v2654 = vld [vmem:[#allocation7 + $0x68] sm:$0xff]
        %v2655 = vld [vmem:[#allocation7 + $0x70] sm:$0xff]
        %v2656 = vld [vmem:[#allocation7 + $0x78] sm:$0xff]
        %v2657 = vld [vmem:[#allocation7 + $0x80] sm:$0xff]
        %v2658 = vld [vmem:[#allocation7 + $0x88] sm:$0xff]
        %v2659 = vld [vmem:[#allocation7 + $0x90] sm:$0xff]
        %v2660 = vld [vmem:[#allocation7 + $0x98] sm:$0xff]
        %v2661 = vld [vmem:[#allocation7 + $0xa0] sm:$0xff]
        %v2662 = vld [vmem:[#allocation7 + $0xa8] sm:$0xff]
        %v2663 = vld [vmem:[#allocation7 + $0xb0] sm:$0xff]
        %v2664 = vld [vmem:[#allocation7 + $0xb8] sm:$0xff]
        %v2665 = vld [vmem:[#allocation7 + $0xc0] sm:$0xff]
        %v2666 = vld [vmem:[#allocation7 + $0xc8] sm:$0xff]
        %v2667 = vld [vmem:[#allocation7 + $0xd0] sm:$0xff]
        %v2668 = vld [vmem:[#allocation7 + $0xd8] sm:$0xff]
        %v2669 = vld [vmem:[#allocation7 + $0xe0] sm:$0xff]
        %v2670 = vld [vmem:[#allocation7 + $0xe8] sm:$0xff]
        %v2671 = vld [vmem:[#allocation7 + $0xf0] sm:$0xff]
        %v2672 = vld [vmem:[#allocation7 + $0xf8] sm:$0xff]
        %v2673 = vld [vmem:[#allocation7 + $0x100] sm:$0xff]
        %v2674 = vld [vmem:[#allocation7 + $0x108] sm:$0xff]
        %v2675 = vld [vmem:[#allocation7 + $0x110] sm:$0xff]
        %v2676 = vld [vmem:[#allocation7 + $0x118] sm:$0xff]
        %v2677 = vld [vmem:[#allocation7 + $0x120] sm:$0xff]
        %v2678 = vld [vmem:[#allocation7 + $0x128] sm:$0xff]
        %v2679 = vld [vmem:[#allocation7 + $0x130] sm:$0xff]
        %v2680 = vld [vmem:[#allocation7 + $0x138] sm:$0xff]
        %v2681 = vld [vmem:[#allocation7 + $0x140] sm:$0xff]
        %v2682 = vld [vmem:[#allocation7 + $0x148] sm:$0xff]
        %v2683 = vld [vmem:[#allocation7 + $0x150] sm:$0xff]
        %v2684 = vld [vmem:[#allocation7 + $0x158] sm:$0xff]
        %v2685 = vld [vmem:[#allocation7 + $0x160] sm:$0xff]
        %v2686 = vld [vmem:[#allocation7 + $0x168] sm:$0xff]
        %v2687 = vld [vmem:[#allocation7 + $0x170] sm:$0xff]
        %v2688 = vld [vmem:[#allocation7 + $0x178] sm:$0xff]
        %v2689 = vld [vmem:[#allocation7 + $0x180] sm:$0xff]
        %v2690 = vld [vmem:[#allocation7 + $0x188] sm:$0xff]
        %v2691 = vld [vmem:[#allocation7 + $0x190] sm:$0xff]
        %v2692 = vld [vmem:[#allocation7 + $0x198] sm:$0xff]
        %v2693 = vld [vmem:[#allocation7 + $0x1a0] sm:$0xff]
        %v2694 = vld [vmem:[#allocation7 + $0x1a8] sm:$0xff]
        %v2695 = vld [vmem:[#allocation7 + $0x1b0] sm:$0xff]
        %v2696 = vld [vmem:[#allocation7 + $0x1b8] sm:$0xff]
        %v2697 = vld [vmem:[#allocation7 + $0x1c0] sm:$0xff]
        %v2698 = vld [vmem:[#allocation7 + $0x1c8] sm:$0xff]
        %v2699 = vld [vmem:[#allocation7 + $0x1d0] sm:$0xff]
        %v2700 = vld [vmem:[#allocation7 + $0x1d8] sm:$0xff]
        %v2701 = vld [vmem:[#allocation7 + $0x1e0] sm:$0xff]
        %v2702 = vld [vmem:[#allocation7 + $0x1e8] sm:$0xff]
        %v2703 = vld [vmem:[#allocation7 + $0x1f0] sm:$0xff]
        %v2704 = vld [vmem:[#allocation7 + $0x1f8] sm:$0xff]
        %v2705 = vld [vmem:[#allocation8] sm:$0x3]
        %v2707 = vlaneseq
        %v2708 = vshrl.u32 %v2707, 7
        %v2709 = vsub.s32 0, %v2708
        %v2710 = vrot.slane %v2705, %v2709
        %v2711 = vlaneseq
        %v2712 = vshrl.u32 %v2711, 7
        %v2713 = vsub.s32 1, %v2712
        %v2714 = vrot.slane %v2705, %v2713
        %v2781 = vunpack.c.l.b16 %v2641
        %v2782 = vunpack.c.h.b16 %v2641
        %v2783 = vunpack.c.l.b16 %v2642
        %v2784 = vunpack.c.h.b16 %v2642
        %v2785 = vunpack.c.l.b16 %v2643
        %v2786 = vunpack.c.h.b16 %v2643
        %v2787 = vunpack.c.l.b16 %v2644
        %v2788 = vunpack.c.h.b16 %v2644
        %v2789 = vunpack.c.l.b16 %v2645
        %v2790 = vunpack.c.h.b16 %v2645
        %v2791 = vunpack.c.l.b16 %v2646
        %v2792 = vunpack.c.h.b16 %v2646
        %v2793 = vunpack.c.l.b16 %v2647
        %v2794 = vunpack.c.h.b16 %v2647
        %v2795 = vunpack.c.l.b16 %v2648
        %v2796 = vunpack.c.h.b16 %v2648
        %v2797 = vunpack.c.l.b16 %v2649
        %v2798 = vunpack.c.h.b16 %v2649
        %v2799 = vunpack.c.l.b16 %v2650
        %v2800 = vunpack.c.h.b16 %v2650
        %v2801 = vunpack.c.l.b16 %v2651
        %v2802 = vunpack.c.h.b16 %v2651
        %v2803 = vunpack.c.l.b16 %v2652
        %v2804 = vunpack.c.h.b16 %v2652
        %v2805 = vunpack.c.l.b16 %v2653
        %v2806 = vunpack.c.h.b16 %v2653
        %v2807 = vunpack.c.l.b16 %v2654
        %v2808 = vunpack.c.h.b16 %v2654
        %v2809 = vunpack.c.l.b16 %v2655
        %v2810 = vunpack.c.h.b16 %v2655
        %v2811 = vunpack.c.l.b16 %v2656
        %v2812 = vunpack.c.h.b16 %v2656
        %v2813 = vunpack.c.l.b16 %v2657
        %v2814 = vunpack.c.h.b16 %v2657
        %v2815 = vunpack.c.l.b16 %v2658
        %v2816 = vunpack.c.h.b16 %v2658
        %v2817 = vunpack.c.l.b16 %v2659
        %v2818 = vunpack.c.h.b16 %v2659
        %v2819 = vunpack.c.l.b16 %v2660
        %v2820 = vunpack.c.h.b16 %v2660
        %v2821 = vunpack.c.l.b16 %v2661
        %v2822 = vunpack.c.h.b16 %v2661
        %v2823 = vunpack.c.l.b16 %v2662
        %v2824 = vunpack.c.h.b16 %v2662
        %v2825 = vunpack.c.l.b16 %v2663
        %v2826 = vunpack.c.h.b16 %v2663
        %v2827 = vunpack.c.l.b16 %v2664
        %v2828 = vunpack.c.h.b16 %v2664
        %v2829 = vunpack.c.l.b16 %v2665
        %v2830 = vunpack.c.h.b16 %v2665
        %v2831 = vunpack.c.l.b16 %v2666
        %v2832 = vunpack.c.h.b16 %v2666
        %v2833 = vunpack.c.l.b16 %v2667
        %v2834 = vunpack.c.h.b16 %v2667
        %v2835 = vunpack.c.l.b16 %v2668
        %v2836 = vunpack.c.h.b16 %v2668
        %v2837 = vunpack.c.l.b16 %v2669
        %v2838 = vunpack.c.h.b16 %v2669
        %v2839 = vunpack.c.l.b16 %v2670
        %v2840 = vunpack.c.h.b16 %v2670
        %v2841 = vunpack.c.l.b16 %v2671
        %v2842 = vunpack.c.h.b16 %v2671
        %v2843 = vunpack.c.l.b16 %v2672
        %v2844 = vunpack.c.h.b16 %v2672
        %v2845 = vunpack.c.l.b16 %v2673
        %v2846 = vunpack.c.h.b16 %v2673
        %v2847 = vunpack.c.l.b16 %v2674
        %v2848 = vunpack.c.h.b16 %v2674
        %v2849 = vunpack.c.l.b16 %v2675
        %v2850 = vunpack.c.h.b16 %v2675
        %v2851 = vunpack.c.l.b16 %v2676
        %v2852 = vunpack.c.h.b16 %v2676
        %v2853 = vunpack.c.l.b16 %v2677
        %v2854 = vunpack.c.h.b16 %v2677
        %v2855 = vunpack.c.l.b16 %v2678
        %v2856 = vunpack.c.h.b16 %v2678
        %v2857 = vunpack.c.l.b16 %v2679
        %v2858 = vunpack.c.h.b16 %v2679
        %v2859 = vunpack.c.l.b16 %v2680
        %v2860 = vunpack.c.h.b16 %v2680
        %v2861 = vunpack.c.l.b16 %v2681
        %v2862 = vunpack.c.h.b16 %v2681
        %v2863 = vunpack.c.l.b16 %v2682
        %v2864 = vunpack.c.h.b16 %v2682
        %v2865 = vunpack.c.l.b16 %v2683
        %v2866 = vunpack.c.h.b16 %v2683
        %v2867 = vunpack.c.l.b16 %v2684
        %v2868 = vunpack.c.h.b16 %v2684
        %v2869 = vunpack.c.l.b16 %v2685
        %v2870 = vunpack.c.h.b16 %v2685
        %v2871 = vunpack.c.l.b16 %v2686
        %v2872 = vunpack.c.h.b16 %v2686
        %v2873 = vunpack.c.l.b16 %v2687
        %v2874 = vunpack.c.h.b16 %v2687
        %v2875 = vunpack.c.l.b16 %v2688
        %v2876 = vunpack.c.h.b16 %v2688
        %v2877 = vunpack.c.l.b16 %v2689
        %v2878 = vunpack.c.h.b16 %v2689
        %v2879 = vunpack.c.l.b16 %v2690
        %v2880 = vunpack.c.h.b16 %v2690
        %v2881 = vunpack.c.l.b16 %v2691
        %v2882 = vunpack.c.h.b16 %v2691
        %v2883 = vunpack.c.l.b16 %v2692
        %v2884 = vunpack.c.h.b16 %v2692
        %v2885 = vunpack.c.l.b16 %v2693
        %v2886 = vunpack.c.h.b16 %v2693
        %v2887 = vunpack.c.l.b16 %v2694
        %v2888 = vunpack.c.h.b16 %v2694
        %v2889 = vunpack.c.l.b16 %v2695
        %v2890 = vunpack.c.h.b16 %v2695
        %v2891 = vunpack.c.l.b16 %v2696
        %v2892 = vunpack.c.h.b16 %v2696
        %v2893 = vunpack.c.l.b16 %v2697
        %v2894 = vunpack.c.h.b16 %v2697
        %v2895 = vunpack.c.l.b16 %v2698
        %v2896 = vunpack.c.h.b16 %v2698
        %v2897 = vunpack.c.l.b16 %v2699
        %v2898 = vunpack.c.h.b16 %v2699
        %v2899 = vunpack.c.l.b16 %v2700
        %v2900 = vunpack.c.h.b16 %v2700
        %v2901 = vunpack.c.l.b16 %v2701
        %v2902 = vunpack.c.h.b16 %v2701
        %v2903 = vunpack.c.l.b16 %v2702
        %v2904 = vunpack.c.h.b16 %v2702
        %v2905 = vunpack.c.l.b16 %v2703
        %v2906 = vunpack.c.h.b16 %v2703
        %v2907 = vunpack.c.l.b16 %v2704
        %v2908 = vunpack.c.h.b16 %v2704
        %v2909 = vpack.c.b16 %v2783, %v2781
        %v2910 = vpack.c.b16 %v2784, %v2782
        %v2911 = vpack.c.b16 %v2787, %v2785
        %v2912 = vpack.c.b16 %v2788, %v2786
        %v2913 = vpack.c.b16 %v2791, %v2789
        %v2914 = vpack.c.b16 %v2792, %v2790
        %v2915 = vpack.c.b16 %v2795, %v2793
        %v2916 = vpack.c.b16 %v2796, %v2794
        %v2917 = vpack.c.b16 %v2799, %v2797
        %v2918 = vpack.c.b16 %v2800, %v2798
        %v2919 = vpack.c.b16 %v2803, %v2801
        %v2920 = vpack.c.b16 %v2804, %v2802
        %v2921 = vpack.c.b16 %v2807, %v2805
        %v2922 = vpack.c.b16 %v2808, %v2806
        %v2923 = vpack.c.b16 %v2811, %v2809
        %v2924 = vpack.c.b16 %v2812, %v2810
        %v2925 = vpack.c.b16 %v2815, %v2813
        %v2926 = vpack.c.b16 %v2816, %v2814
        %v2927 = vpack.c.b16 %v2819, %v2817
        %v2928 = vpack.c.b16 %v2820, %v2818
        %v2929 = vpack.c.b16 %v2823, %v2821
        %v2930 = vpack.c.b16 %v2824, %v2822
        %v2931 = vpack.c.b16 %v2827, %v2825
        %v2932 = vpack.c.b16 %v2828, %v2826
        %v2933 = vpack.c.b16 %v2831, %v2829
        %v2934 = vpack.c.b16 %v2832, %v2830
        %v2935 = vpack.c.b16 %v2835, %v2833
        %v2936 = vpack.c.b16 %v2836, %v2834
        %v2937 = vpack.c.b16 %v2839, %v2837
        %v2938 = vpack.c.b16 %v2840, %v2838
        %v2939 = vpack.c.b16 %v2843, %v2841
        %v2940 = vpack.c.b16 %v2844, %v2842
        %v2941 = vpack.c.b16 %v2847, %v2845
        %v2942 = vpack.c.b16 %v2848, %v2846
        %v2943 = vpack.c.b16 %v2851, %v2849
        %v2944 = vpack.c.b16 %v2852, %v2850
        %v2945 = vpack.c.b16 %v2855, %v2853
        %v2946 = vpack.c.b16 %v2856, %v2854
        %v2947 = vpack.c.b16 %v2859, %v2857
        %v2948 = vpack.c.b16 %v2860, %v2858
        %v2949 = vpack.c.b16 %v2863, %v2861
        %v2950 = vpack.c.b16 %v2864, %v2862
        %v2951 = vpack.c.b16 %v2867, %v2865
        %v2952 = vpack.c.b16 %v2868, %v2866
        %v2953 = vpack.c.b16 %v2871, %v2869
        %v2954 = vpack.c.b16 %v2872, %v2870
        %v2955 = vpack.c.b16 %v2875, %v2873
        %v2956 = vpack.c.b16 %v2876, %v2874
        %v2957 = vpack.c.b16 %v2879, %v2877
        %v2958 = vpack.c.b16 %v2880, %v2878
        %v2959 = vpack.c.b16 %v2883, %v2881
        %v2960 = vpack.c.b16 %v2884, %v2882
        %v2961 = vpack.c.b16 %v2887, %v2885
        %v2962 = vpack.c.b16 %v2888, %v2886
        %v2963 = vpack.c.b16 %v2891, %v2889
        %v2964 = vpack.c.b16 %v2892, %v2890
        %v2965 = vpack.c.b16 %v2895, %v2893
        %v2966 = vpack.c.b16 %v2896, %v2894
        %v2967 = vpack.c.b16 %v2899, %v2897
        %v2968 = vpack.c.b16 %v2900, %v2898
        %v2969 = vpack.c.b16 %v2903, %v2901
        %v2970 = vpack.c.b16 %v2904, %v2902
        %v2971 = vpack.c.b16 %v2907, %v2905
        %v2972 = vpack.c.b16 %v2908, %v2906
        %3037 = vmatprep.subr.bf16.mxu0 %v2910
        %3038 = vmatpush1.bf16.msra.mxu0 %v2909
        %3039 = vmatprep.subr.bf16.mxu0 %v2912
        %3040 = vmatpush1.bf16.msra.mxu0 %v2911
        %3041 = vmatprep.subr.bf16.mxu0 %v2914
        %3042 = vmatpush1.bf16.msra.mxu0 %v2913
        %3043 = vmatprep.subr.bf16.mxu0 %v2916
        %3044 = vmatpush1.bf16.msra.mxu0 %v2915
        %3045 = vmatprep.subr.bf16.mxu0 %v2918
        %3046 = vmatpush1.bf16.msra.mxu0 %v2917
        %3047 = vmatprep.subr.bf16.mxu0 %v2920
        %3048 = vmatpush1.bf16.msra.mxu0 %v2919
        %3049 = vmatprep.subr.bf16.mxu0 %v2922
        %3050 = vmatpush1.bf16.msra.mxu0 %v2921
        %3051 = vmatprep.subr.bf16.mxu0 %v2924
        %3052 = vmatpush1.bf16.msra.mxu0 %v2923
        %3053 = vmatprep.subr.bf16.mxu0 %v2926
        %3054 = vmatpush1.bf16.msra.mxu0 %v2925
        %3055 = vmatprep.subr.bf16.mxu0 %v2928
        %3056 = vmatpush1.bf16.msra.mxu0 %v2927
        %3057 = vmatprep.subr.bf16.mxu0 %v2930
        %3058 = vmatpush1.bf16.msra.mxu0 %v2929
        %3059 = vmatprep.subr.bf16.mxu0 %v2932
        %3060 = vmatpush1.bf16.msra.mxu0 %v2931
        %3061 = vmatprep.subr.bf16.mxu0 %v2934
        %3062 = vmatpush1.bf16.msra.mxu0 %v2933
        %3063 = vmatprep.subr.bf16.mxu0 %v2936
        %3064 = vmatpush1.bf16.msra.mxu0 %v2935
        %3065 = vmatprep.subr.bf16.mxu0 %v2938
        %3066 = vmatpush1.bf16.msra.mxu0 %v2937
        %3067 = vmatprep.subr.bf16.mxu0 %v2940
        %3068 = vmatpush1.bf16.msra.mxu0 %v2939
        %3069 = vmatprep.mubr.bf16.mxu0 %v2634
        %3070 = vmatmul.mubr.bf16.gmra.mrb[0].mxu0 %v2633
        %v3071 = vpop.f32.mrb[0].mxu0
        %v3072 = vadd.f32 %v2710, %v3071
        %v3073 = vpop.f32.mrb[0].mxu0
        %v3074 = vadd.f32 %v2714, %v3073
        %v3075 = vpop.f32.mrb[0].mxu0
        %v3076 = vadd.f32 %v2710, %v3075
        %v3077 = vpop.f32.mrb[0].mxu0
        %v3078 = vadd.f32 %v2714, %v3077
        %3079 = vmatprep.mubr.bf16.mxu0 %v2638
        %3080 = vmatmul.mubr.bf16.gmra.mrb[0].mxu0 %v2637
        %v3081 = vpop.f32.mrb[0].mxu0
        %v3082 = vadd.f32 %v2710, %v3081
        %v3083 = vpop.f32.mrb[0].mxu0
        %v3084 = vadd.f32 %v2714, %v3083
        %v3085 = vpop.f32.mrb[0].mxu0
        %v3086 = vadd.f32 %v2710, %v3085
        %v3087 = vpop.f32.mrb[0].mxu0
        %v3088 = vadd.f32 %v2714, %v3087
        %3089 = vdwg.mxu0
        %3090 = vmatprep.subr.bf16.mxu0 %v2942
        %3091 = vmatpush1.bf16.msra.mxu0 %v2941
        %3092 = vmatprep.subr.bf16.mxu0 %v2944
        %3093 = vmatpush1.bf16.msra.mxu0 %v2943
        %3094 = vmatprep.subr.bf16.mxu0 %v2946
        %3095 = vmatpush1.bf16.msra.mxu0 %v2945
        %3096 = vmatprep.subr.bf16.mxu0 %v2948
        %3097 = vmatpush1.bf16.msra.mxu0 %v2947
        %3098 = vmatprep.subr.bf16.mxu0 %v2950
        %3099 = vmatpush1.bf16.msra.mxu0 %v2949
        %3100 = vmatprep.subr.bf16.mxu0 %v2952
        %3101 = vmatpush1.bf16.msra.mxu0 %v2951
        %3102 = vmatprep.subr.bf16.mxu0 %v2954
        %3103 = vmatpush1.bf16.msra.mxu0 %v2953
        %3104 = vmatprep.subr.bf16.mxu0 %v2956
        %3105 = vmatpush1.bf16.msra.mxu0 %v2955
        %3106 = vmatprep.subr.bf16.mxu0 %v2958
        %3107 = vmatpush1.bf16.msra.mxu0 %v2957
        %3108 = vmatprep.subr.bf16.mxu0 %v2960
        %3109 = vmatpush1.bf16.msra.mxu0 %v2959
        %3110 = vmatprep.subr.bf16.mxu0 %v2962
        %3111 = vmatpush1.bf16.msra.mxu0 %v2961
        %3112 = vmatprep.subr.bf16.mxu0 %v2964
        %3113 = vmatpush1.bf16.msra.mxu0 %v2963
        %3114 = vmatprep.subr.bf16.mxu0 %v2966
        %3115 = vmatpush1.bf16.msra.mxu0 %v2965
        %3116 = vmatprep.subr.bf16.mxu0 %v2968
        %3117 = vmatpush1.bf16.msra.mxu0 %v2967
        %3118 = vmatprep.subr.bf16.mxu0 %v2970
        %3119 = vmatpush1.bf16.msra.mxu0 %v2969
        %3120 = vmatprep.subr.bf16.mxu0 %v2972
        %3121 = vmatpush1.bf16.msra.mxu0 %v2971
        %3122 = vmatprep.mubr.bf16.mxu0 %v2636
        %3123 = vmatmul.mubr.bf16.gmra.mrb[0].mxu0 %v2635
        %v3124 = vpop.f32.mrb[0].mxu0
        %v3125 = vadd.f32 %v3072, %v3124
        %v3126 = vpop.f32.mrb[0].mxu0
        %v3127 = vadd.f32 %v3074, %v3126
        %v3128 = vpop.f32.mrb[0].mxu0
        %v3129 = vadd.f32 %v3076, %v3128
        %v3130 = vpop.f32.mrb[0].mxu0
        %v3131 = vadd.f32 %v3078, %v3130
        %3132 = vmatprep.mubr.bf16.mxu0 %v2640
        %3133 = vmatmul.mubr.bf16.gmra.mrb[0].mxu0 %v2639
        %v3134 = vpop.f32.mrb[0].mxu0
        %v3135 = vadd.f32 %v3082, %v3134
        %v3136 = vpop.f32.mrb[0].mxu0
        %v3137 = vadd.f32 %v3084, %v3136
        %v3138 = vpop.f32.mrb[0].mxu0
        %v3139 = vadd.f32 %v3086, %v3138
        %v3140 = vpop.f32.mrb[0].mxu0
        %v3141 = vadd.f32 %v3088, %v3140
        %3142 = vdwg.mxu0
        %v3143 = vtanh.pop %v3125
        %v3144 = vtanh.pop %v3127
        %v3145 = vtanh.pop %v3129
        %v3146 = vtanh.pop %v3131
        %v3147 = vtanh.pop %v3135
        %v3148 = vtanh.pop %v3137
        %v3149 = vtanh.pop %v3139
        %v3150 = vtanh.pop %v3141
        %v3151 = vpack.c.bf16 %v3145, %v3143
        %v3152 = vpack.c.bf16 %v3146, %v3144
        %v3153 = vpack.c.bf16 %v3149, %v3147
        %v3154 = vpack.c.bf16 %v3150, %v3148
        %v3155 = vld [vmem:[#allocation10] sm:$0xf]
        %v3156 = vld [vmem:[#allocation10 + $0x4] sm:$0xf]
        %v3157 = vld [vmem:[#allocation10 + $0x8] sm:$0xf]
        %v3158 = vld [vmem:[#allocation10 + $0xc] sm:$0xf]
        %v3159 = vld [vmem:[#allocation10 + $0x10] sm:$0xf]
        %v3160 = vld [vmem:[#allocation10 + $0x14] sm:$0xf]
        %v3161 = vld [vmem:[#allocation10 + $0x18] sm:$0xf]
        %v3162 = vld [vmem:[#allocation10 + $0x1c] sm:$0xf]
        %v3163 = vld [vmem:[#allocation10 + $0x20] sm:$0xf]
        %v3164 = vld [vmem:[#allocation10 + $0x24] sm:$0xf]
        %v3165 = vld [vmem:[#allocation10 + $0x28] sm:$0xf]
        %v3166 = vld [vmem:[#allocation10 + $0x2c] sm:$0xf]
        %v3167 = vld [vmem:[#allocation10 + $0x30] sm:$0xf]
        %v3168 = vld [vmem:[#allocation10 + $0x34] sm:$0xf]
        %v3169 = vld [vmem:[#allocation10 + $0x38] sm:$0xf]
        %v3170 = vld [vmem:[#allocation10 + $0x3c] sm:$0xf]
        %v3171 = vld [vmem:[#allocation10 + $0x40] sm:$0xf]
        %v3172 = vld [vmem:[#allocation10 + $0x44] sm:$0xf]
        %v3173 = vld [vmem:[#allocation10 + $0x48] sm:$0xf]
        %v3174 = vld [vmem:[#allocation10 + $0x4c] sm:$0xf]
        %v3175 = vld [vmem:[#allocation10 + $0x50] sm:$0xf]
        %v3176 = vld [vmem:[#allocation10 + $0x54] sm:$0xf]
        %v3177 = vld [vmem:[#allocation10 + $0x58] sm:$0xf]
        %v3178 = vld [vmem:[#allocation10 + $0x5c] sm:$0xf]
        %v3179 = vld [vmem:[#allocation10 + $0x60] sm:$0xf]
        %v3180 = vld [vmem:[#allocation10 + $0x64] sm:$0xf]
        %v3181 = vld [vmem:[#allocation10 + $0x68] sm:$0xf]
        %v3182 = vld [vmem:[#allocation10 + $0x6c] sm:$0xf]
        %v3183 = vld [vmem:[#allocation10 + $0x70] sm:$0xf]
        %v3184 = vld [vmem:[#allocation10 + $0x74] sm:$0xf]
        %v3185 = vld [vmem:[#allocation10 + $0x78] sm:$0xf]
        %v3186 = vld [vmem:[#allocation10 + $0x7c] sm:$0xf]
        %v3187 = vld [vmem:[%s6] sm:$0x1]
        %v3189 = vlaneseq
        %v3190 = vshrl.u32 %v3189, 7
        %v3191 = vsub.s32 0, %v3190
        %v3192 = vrot.slane %v3187, %v3191
        %v3226 = vunpack.c.l.b16 %v3155
        %v3227 = vunpack.c.l.b16 %v3156
        %v3228 = vunpack.c.l.b16 %v3157
        %v3229 = vunpack.c.l.b16 %v3158
        %v3230 = vunpack.c.l.b16 %v3159
        %v3231 = vunpack.c.l.b16 %v3160
        %v3232 = vunpack.c.l.b16 %v3161
        %v3233 = vunpack.c.l.b16 %v3162
        %v3234 = vunpack.c.l.b16 %v3163
        %v3235 = vunpack.c.l.b16 %v3164
        %v3236 = vunpack.c.l.b16 %v3165
        %v3237 = vunpack.c.l.b16 %v3166
        %v3238 = vunpack.c.l.b16 %v3167
        %v3239 = vunpack.c.l.b16 %v3168
        %v3240 = vunpack.c.l.b16 %v3169
        %v3241 = vunpack.c.l.b16 %v3170
        %v3242 = vunpack.c.l.b16 %v3171
        %v3243 = vunpack.c.l.b16 %v3172
        %v3244 = vunpack.c.l.b16 %v3173
        %v3245 = vunpack.c.l.b16 %v3174
        %v3246 = vunpack.c.l.b16 %v3175
        %v3247 = vunpack.c.l.b16 %v3176
        %v3248 = vunpack.c.l.b16 %v3177
        %v3249 = vunpack.c.l.b16 %v3178
        %v3250 = vunpack.c.l.b16 %v3179
        %v3251 = vunpack.c.l.b16 %v3180
        %v3252 = vunpack.c.l.b16 %v3181
        %v3253 = vunpack.c.l.b16 %v3182
        %v3254 = vunpack.c.l.b16 %v3183
        %v3255 = vunpack.c.l.b16 %v3184
        %v3256 = vunpack.c.l.b16 %v3185
        %v3257 = vunpack.c.l.b16 %v3186
        %v3258 = vpack.c.b16 %v3227, %v3226
        %v3259 = vpack.c.b16 %v3229, %v3228
        %v3260 = vpack.c.b16 %v3231, %v3230
        %v3261 = vpack.c.b16 %v3233, %v3232
        %v3262 = vpack.c.b16 %v3235, %v3234
        %v3263 = vpack.c.b16 %v3237, %v3236
        %v3264 = vpack.c.b16 %v3239, %v3238
        %v3265 = vpack.c.b16 %v3241, %v3240
        %v3266 = vpack.c.b16 %v3243, %v3242
        %v3267 = vpack.c.b16 %v3245, %v3244
        %v3268 = vpack.c.b16 %v3247, %v3246
        %v3269 = vpack.c.b16 %v3249, %v3248
        %v3270 = vpack.c.b16 %v3251, %v3250
        %v3271 = vpack.c.b16 %v3253, %v3252
        %v3272 = vpack.c.b16 %v3255, %v3254
        %v3273 = vpack.c.b16 %v3257, %v3256
        %3290 = vmatprep.subr.bf16.mxu0 0
        %3291 = vmatpush1.bf16.msra.mxu0 %v3258
        %3292 = vmatprep.subr.bf16.mxu0 0
        %3293 = vmatpush1.bf16.msra.mxu0 %v3259
        %3294 = vmatprep.subr.bf16.mxu0 0
        %3295 = vmatpush1.bf16.msra.mxu0 %v3260
        %3296 = vmatprep.subr.bf16.mxu0 0
        %3297 = vmatpush1.bf16.msra.mxu0 %v3261
        %3298 = vmatprep.subr.bf16.mxu0 0
        %3299 = vmatpush1.bf16.msra.mxu0 %v3262
        %3300 = vmatprep.subr.bf16.mxu0 0
        %3301 = vmatpush1.bf16.msra.mxu0 %v3263
        %3302 = vmatprep.subr.bf16.mxu0 0
        %3303 = vmatpush1.bf16.msra.mxu0 %v3264
        %3304 = vmatprep.subr.bf16.mxu0 0
        %3305 = vmatpush1.bf16.msra.mxu0 %v3265
        %3306 = vmatprep.subr.bf16.mxu0 0
        %3307 = vmatpush1.bf16.msra.mxu0 %v3266
        %3308 = vmatprep.subr.bf16.mxu0 0
        %3309 = vmatpush1.bf16.msra.mxu0 %v3267
        %3310 = vmatprep.subr.bf16.mxu0 0
        %3311 = vmatpush1.bf16.msra.mxu0 %v3268
        %3312 = vmatprep.subr.bf16.mxu0 0
        %3313 = vmatpush1.bf16.msra.mxu0 %v3269
        %3314 = vmatprep.subr.bf16.mxu0 0
        %3315 = vmatpush1.bf16.msra.mxu0 %v3270
        %3316 = vmatprep.subr.bf16.mxu0 0
        %3317 = vmatpush1.bf16.msra.mxu0 %v3271
        %3318 = vmatprep.subr.bf16.mxu0 0
        %3319 = vmatpush1.bf16.msra.mxu0 %v3272
        %3320 = vmatprep.subr.bf16.mxu0 0
        %3321 = vmatpush1.bf16.msra.mxu0 %v3273
        %3322 = vmatprep.mubr.bf16.mxu0 %v3152
        %3323 = vmatmul.mubr.bf16.gmra.mrb[0].mxu0 %v3151
        %v3324 = vpop.f32.mrb[0].mxu0
        %v3325 = vadd.f32 %v3192, %v3324
        %v3326 = vpop.f32.mrb[0].mxu0
        %v3327 = vpop.f32.mrb[0].mxu0
        %v3328 = vadd.f32 %v3192, %v3327
        %v3329 = vpop.f32.mrb[0].mxu0
        %3330 = vmatprep.mubr.bf16.mxu0 %v3154
        %3331 = vmatmul.mubr.bf16.gmra.mrb[0].mxu0 %v3153
        %v3332 = vpop.f32.mrb[0].mxu0
        %v3333 = vadd.f32 %v3192, %v3332
        %v3334 = vpop.f32.mrb[0].mxu0
        %v3335 = vpop.f32.mrb[0].mxu0
        %v3336 = vadd.f32 %v3192, %v3335
        %v3337 = vpop.f32.mrb[0].mxu0
        %3338 = vdwg.mxu0
        %v3339 = vtanh.pop %v3325
        %v3340 = vtanh.pop %v3328
        %v3341 = vtanh.pop %v3333
        %v3342 = vtanh.pop %v3336
        %v3343 = vpack.c.bf16 %v3340, %v3339
        %v3344 = vpack.c.bf16 %v3342, %v3341
        %v3345 = vld [vmem:[#allocation11] sm:$0xf]
        %v3346 = vld [vmem:[#allocation11 + $0x4] sm:$0xf]
        %v3347 = vld [vmem:[#allocation11 + $0x8] sm:$0xf]
        %v3348 = vld [vmem:[#allocation11 + $0xc] sm:$0xf]
        %v3349 = vld [vmem:[#allocation11 + $0x10] sm:$0xf]
        %v3350 = vld [vmem:[#allocation11 + $0x14] sm:$0xf]
        %v3351 = vld [vmem:[#allocation11 + $0x18] sm:$0xf]
        %v3352 = vld [vmem:[#allocation11 + $0x1c] sm:$0xf]
        %v3353 = vld [vmem:[#allocation11 + $0x20] sm:$0xf]
        %v3354 = vld [vmem:[#allocation11 + $0x24] sm:$0xf]
        %v3355 = vld [vmem:[#allocation11 + $0x28] sm:$0xf]
        %v3356 = vld [vmem:[#allocation11 + $0x2c] sm:$0xf]
        %v3357 = vld [vmem:[#allocation11 + $0x30] sm:$0xf]
        %v3358 = vld [vmem:[#allocation11 + $0x34] sm:$0xf]
        %v3359 = vld [vmem:[#allocation11 + $0x38] sm:$0xf]
        %v3360 = vld [vmem:[#allocation11 + $0x3c] sm:$0xf]
        %v3361 = vld [vmem:[%s8] sm:$0x1]
        %v3363 = vlaneseq
        %v3364 = vshrl.u32 %v3363, 7
        %v3365 = vsub.s32 0, %v3364
        %v3366 = vrot.slane %v3361, %v3365
        %v3384 = vunpack.c.l.b16 %v3345
        %v3385 = vunpack.c.l.b16 %v3346
        %v3386 = vunpack.c.l.b16 %v3347
        %v3387 = vunpack.c.l.b16 %v3348
        %v3388 = vunpack.c.l.b16 %v3349
        %v3389 = vunpack.c.l.b16 %v3350
        %v3390 = vunpack.c.l.b16 %v3351
        %v3391 = vunpack.c.l.b16 %v3352
        %v3392 = vunpack.c.l.b16 %v3353
        %v3393 = vunpack.c.l.b16 %v3354
        %v3394 = vunpack.c.l.b16 %v3355
        %v3395 = vunpack.c.l.b16 %v3356
        %v3396 = vunpack.c.l.b16 %v3357
        %v3397 = vunpack.c.l.b16 %v3358
        %v3398 = vunpack.c.l.b16 %v3359
        %v3399 = vunpack.c.l.b16 %v3360
        %v3400 = vpack.c.b16 %v3385, %v3384
        %v3401 = vpack.c.b16 %v3387, %v3386
        %v3402 = vpack.c.b16 %v3389, %v3388
        %v3403 = vpack.c.b16 %v3391, %v3390
        %v3404 = vpack.c.b16 %v3393, %v3392
        %v3405 = vpack.c.b16 %v3395, %v3394
        %v3406 = vpack.c.b16 %v3397, %v3396
        %v3407 = vpack.c.b16 %v3399, %v3398
        %3416 = vmatprep.subr.bf16.mxu0 0
        %3417 = vmatpush1.bf16.msra.mxu0 %v3400
        %3418 = vmatprep.subr.bf16.mxu0 0
        %3419 = vmatpush1.bf16.msra.mxu0 %v3401
        %3420 = vmatprep.subr.bf16.mxu0 0
        %3421 = vmatpush1.bf16.msra.mxu0 %v3402
        %3422 = vmatprep.subr.bf16.mxu0 0
        %3423 = vmatpush1.bf16.msra.mxu0 %v3403
        %3424 = vmatprep.subr.bf16.mxu0 0
        %3425 = vmatpush1.bf16.msra.mxu0 %v3404
        %3426 = vmatprep.subr.bf16.mxu0 0
        %3427 = vmatpush1.bf16.msra.mxu0 %v3405
        %3428 = vmatprep.subr.bf16.mxu0 0
        %3429 = vmatpush1.bf16.msra.mxu0 %v3406
        %3430 = vmatprep.subr.bf16.mxu0 0
        %3431 = vmatpush1.bf16.msra.mxu0 %v3407
        %3432 = vmatprep.subr.bf16.mxu0 0
        %3433 = vmatpush1.bf16.msra.mxu0 0
        %3434 = vmatprep.subr.bf16.mxu0 0
        %3435 = vmatpush1.bf16.msra.mxu0 0
        %3436 = vmatprep.subr.bf16.mxu0 0
        %3437 = vmatpush1.bf16.msra.mxu0 0
        %3438 = vmatprep.subr.bf16.mxu0 0
        %3439 = vmatpush1.bf16.msra.mxu0 0
        %3440 = vmatprep.subr.bf16.mxu0 0
        %3441 = vmatpush1.bf16.msra.mxu0 0
        %3442 = vmatprep.subr.bf16.mxu0 0
        %3443 = vmatpush1.bf16.msra.mxu0 0
        %3444 = vmatprep.subr.bf16.mxu0 0
        %3445 = vmatpush1.bf16.msra.mxu0 0
        %3446 = vmatprep.subr.bf16.mxu0 0
        %3447 = vmatpush1.bf16.msra.mxu0 0
        %3448 = vmatprep.mubr.bf16.mxu0 0
        %3449 = vmatmul.mubr.bf16.gmra.mrb[0].mxu0 %v3343
        %v3450 = vpop.f32.mrb[0].mxu0
        %v3451 = vadd.f32 %v3366, %v3450
        %v3452 = vpop.f32.mrb[0].mxu0
        %v3453 = vpop.f32.mrb[0].mxu0
        %v3454 = vadd.f32 %v3366, %v3453
        %v3455 = vpop.f32.mrb[0].mxu0
        %3456 = vmatprep.mubr.bf16.mxu0 0
        %3457 = vmatmul.mubr.bf16.gmra.mrb[0].mxu0 %v3344
        %v3458 = vpop.f32.mrb[0].mxu0
        %v3459 = vadd.f32 %v3366, %v3458
        %v3460 = vpop.f32.mrb[0].mxu0
        %v3461 = vpop.f32.mrb[0].mxu0
        %v3462 = vadd.f32 %v3366, %v3461
        %v3463 = vpop.f32.mrb[0].mxu0
        %3464 = vdwg.mxu0
        %v3465 = vtanh.pop %v3451
        %v3466 = vtanh.pop %v3454
        %v3467 = vtanh.pop %v3459
        %v3468 = vtanh.pop %v3462
        %3469 = vst [vmem:[%s727] sm:$0xff] %v3465
        %3470 = vst [vmem:[%s727 + $0x8] sm:$0xff] %v3466
        %3471 = vst [vmem:[%s727 + $0x10] sm:$0xff] %v3467
        %3472 = vst [vmem:[%s727 + $0x18] sm:$0xff] %v3468
        %v3473 = vpack.c.bf16 %v3466, %v3465
        %v3474 = vpack.c.bf16 %v3468, %v3467
        %v3475 = vld [vmem:[#allocation13] sm:$0xf]
        %v3476 = vld [vmem:[#allocation13 + $0x4] sm:$0xf]
        %v3477 = vld [vmem:[#allocation13 + $0x8] sm:$0xf]
        %v3478 = vld [vmem:[#allocation13 + $0xc] sm:$0xf]
        %v3479 = vld [vmem:[#allocation13 + $0x10] sm:$0xf]
        %v3480 = vld [vmem:[#allocation13 + $0x14] sm:$0xf]
        %v3481 = vld [vmem:[#allocation13 + $0x18] sm:$0xf]
        %v3482 = vld [vmem:[#allocation13 + $0x1c] sm:$0xf]
        %v3483 = vld [vmem:[#allocation13 + $0x20] sm:$0xf]
        %v3484 = vld [vmem:[#allocation13 + $0x24] sm:$0xf]
        %v3485 = vld [vmem:[#allocation13 + $0x28] sm:$0xf]
        %v3486 = vld [vmem:[#allocation13 + $0x2c] sm:$0xf]
        %v3487 = vld [vmem:[#allocation13 + $0x30] sm:$0xf]
        %v3488 = vld [vmem:[#allocation13 + $0x34] sm:$0xf]
        %v3489 = vld [vmem:[#allocation13 + $0x38] sm:$0xf]
        %v3490 = vld [vmem:[#allocation13 + $0x3c] sm:$0xf]
        %v3491 = vld [vmem:[%s10] sm:$0x1]
        %v3493 = vlaneseq
        %v3494 = vshrl.u32 %v3493, 7
        %v3495 = vsub.s32 0, %v3494
        %v3496 = vrot.slane %v3491, %v3495
        %v3514 = vunpack.c.l.b16 %v3475
        %v3515 = vunpack.c.l.b16 %v3476
        %v3516 = vunpack.c.l.b16 %v3477
        %v3517 = vunpack.c.l.b16 %v3478
        %v3518 = vunpack.c.l.b16 %v3479
        %v3519 = vunpack.c.l.b16 %v3480
        %v3520 = vunpack.c.l.b16 %v3481
        %v3521 = vunpack.c.l.b16 %v3482
        %v3522 = vunpack.c.l.b16 %v3483
        %v3523 = vunpack.c.l.b16 %v3484
        %v3524 = vunpack.c.l.b16 %v3485
        %v3525 = vunpack.c.l.b16 %v3486
        %v3526 = vunpack.c.l.b16 %v3487
        %v3527 = vunpack.c.l.b16 %v3488
        %v3528 = vunpack.c.l.b16 %v3489
        %v3529 = vunpack.c.l.b16 %v3490
        %v3530 = vpack.c.b16 %v3515, %v3514
        %v3531 = vpack.c.b16 %v3517, %v3516
        %v3532 = vpack.c.b16 %v3519, %v3518
        %v3533 = vpack.c.b16 %v3521, %v3520
        %v3534 = vpack.c.b16 %v3523, %v3522
        %v3535 = vpack.c.b16 %v3525, %v3524
        %v3536 = vpack.c.b16 %v3527, %v3526
        %v3537 = vpack.c.b16 %v3529, %v3528
        %3546 = vmatprep.subr.bf16.mxu0 0
        %3547 = vmatpush1.bf16.msra.mxu0 %v3530
        %3548 = vmatprep.subr.bf16.mxu0 0
        %3549 = vmatpush1.bf16.msra.mxu0 %v3531
        %3550 = vmatprep.subr.bf16.mxu0 0
        %3551 = vmatpush1.bf16.msra.mxu0 %v3532
        %3552 = vmatprep.subr.bf16.mxu0 0
        %3553 = vmatpush1.bf16.msra.mxu0 %v3533
        %3554 = vmatprep.subr.bf16.mxu0 0
        %3555 = vmatpush1.bf16.msra.mxu0 %v3534
        %3556 = vmatprep.subr.bf16.mxu0 0
        %3557 = vmatpush1.bf16.msra.mxu0 %v3535
        %3558 = vmatprep.subr.bf16.mxu0 0
        %3559 = vmatpush1.bf16.msra.mxu0 %v3536
        %3560 = vmatprep.subr.bf16.mxu0 0
        %3561 = vmatpush1.bf16.msra.mxu0 %v3537
        %3562 = vmatprep.subr.bf16.mxu0 0
        %3563 = vmatpush1.bf16.msra.mxu0 0
        %3564 = vmatprep.subr.bf16.mxu0 0
        %3565 = vmatpush1.bf16.msra.mxu0 0
        %3566 = vmatprep.subr.bf16.mxu0 0
        %3567 = vmatpush1.bf16.msra.mxu0 0
        %3568 = vmatprep.subr.bf16.mxu0 0
        %3569 = vmatpush1.bf16.msra.mxu0 0
        %3570 = vmatprep.subr.bf16.mxu0 0
        %3571 = vmatpush1.bf16.msra.mxu0 0
        %3572 = vmatprep.subr.bf16.mxu0 0
        %3573 = vmatpush1.bf16.msra.mxu0 0
        %3574 = vmatprep.subr.bf16.mxu0 0
        %3575 = vmatpush1.bf16.msra.mxu0 0
        %3576 = vmatprep.subr.bf16.mxu0 0
        %3577 = vmatpush1.bf16.msra.mxu0 0
        %3578 = vmatprep.mubr.bf16.mxu0 0
        %3579 = vmatmul.mubr.bf16.gmra.mrb[0].mxu0 %v3473
        %v3580 = vpop.f32.mrb[0].mxu0
        %v3581 = vadd.f32 %v3496, %v3580
        %v3582 = vpop.f32.mrb[0].mxu0
        %v3583 = vpop.f32.mrb[0].mxu0
        %v3584 = vadd.f32 %v3496, %v3583
        %v3585 = vpop.f32.mrb[0].mxu0
        %3586 = vmatprep.mubr.bf16.mxu0 0
        %3587 = vmatmul.mubr.bf16.gmra.mrb[0].mxu0 %v3474
        %v3588 = vpop.f32.mrb[0].mxu0
        %v3589 = vadd.f32 %v3496, %v3588
        %v3590 = vpop.f32.mrb[0].mxu0
        %v3591 = vpop.f32.mrb[0].mxu0
        %v3592 = vadd.f32 %v3496, %v3591
        %v3593 = vpop.f32.mrb[0].mxu0
        %3594 = vdwg.mxu0
        %v3595 = vtanh.pop %v3581
        %v3596 = vtanh.pop %v3584
        %v3597 = vtanh.pop %v3589
        %v3598 = vtanh.pop %v3592
        %v3599 = vpack.c.bf16 %v3596, %v3595
        %v3600 = vpack.c.bf16 %v3598, %v3597
        %v3601 = vld [vmem:[#allocation14] sm:$0xff]
        %v3602 = vld [vmem:[#allocation14 + $0x8] sm:$0xff]
        %v3603 = vld [vmem:[#allocation14 + $0x10] sm:$0xff]
        %v3604 = vld [vmem:[#allocation14 + $0x18] sm:$0xff]
        %v3605 = vld [vmem:[#allocation14 + $0x20] sm:$0xff]
        %v3606 = vld [vmem:[#allocation14 + $0x28] sm:$0xff]
        %v3607 = vld [vmem:[#allocation14 + $0x30] sm:$0xff]
        %v3608 = vld [vmem:[#allocation14 + $0x38] sm:$0xff]
        %v3609 = vld [vmem:[#allocation14 + $0x40] sm:$0xff]
        %v3610 = vld [vmem:[#allocation14 + $0x48] sm:$0xff]
        %v3611 = vld [vmem:[#allocation14 + $0x50] sm:$0xff]
        %v3612 = vld [vmem:[#allocation14 + $0x58] sm:$0xff]
        %v3613 = vld [vmem:[#allocation14 + $0x60] sm:$0xff]
        %v3614 = vld [vmem:[#allocation14 + $0x68] sm:$0xff]
        %v3615 = vld [vmem:[#allocation14 + $0x70] sm:$0xff]
        %v3616 = vld [vmem:[#allocation14 + $0x78] sm:$0xff]
        %v3617 = vld [vmem:[%s12] sm:$0x3]
        %v3619 = vlaneseq
        %v3620 = vshrl.u32 %v3619, 7
        %v3621 = vsub.s32 0, %v3620
        %v3622 = vrot.slane %v3617, %v3621
        %v3623 = vlaneseq
        %v3624 = vshrl.u32 %v3623, 7
        %v3625 = vsub.s32 1, %v3624
        %v3626 = vrot.slane %v3617, %v3625
        %v3645 = vunpack.c.l.b16 %v3601
        %v3646 = vunpack.c.h.b16 %v3601
        %v3647 = vunpack.c.l.b16 %v3602
        %v3648 = vunpack.c.h.b16 %v3602
        %v3649 = vunpack.c.l.b16 %v3603
        %v3650 = vunpack.c.h.b16 %v3603
        %v3651 = vunpack.c.l.b16 %v3604
        %v3652 = vunpack.c.h.b16 %v3604
        %v3653 = vunpack.c.l.b16 %v3605
        %v3654 = vunpack.c.h.b16 %v3605
        %v3655 = vunpack.c.l.b16 %v3606
        %v3656 = vunpack.c.h.b16 %v3606
        %v3657 = vunpack.c.l.b16 %v3607
        %v3658 = vunpack.c.h.b16 %v3607
        %v3659 = vunpack.c.l.b16 %v3608
        %v3660 = vunpack.c.h.b16 %v3608
        %v3661 = vunpack.c.l.b16 %v3609
        %v3662 = vunpack.c.h.b16 %v3609
        %v3663 = vunpack.c.l.b16 %v3610
        %v3664 = vunpack.c.h.b16 %v3610
        %v3665 = vunpack.c.l.b16 %v3611
        %v3666 = vunpack.c.h.b16 %v3611
        %v3667 = vunpack.c.l.b16 %v3612
        %v3668 = vunpack.c.h.b16 %v3612
        %v3669 = vunpack.c.l.b16 %v3613
        %v3670 = vunpack.c.h.b16 %v3613
        %v3671 = vunpack.c.l.b16 %v3614
        %v3672 = vunpack.c.h.b16 %v3614
        %v3673 = vunpack.c.l.b16 %v3615
        %v3674 = vunpack.c.h.b16 %v3615
        %v3675 = vunpack.c.l.b16 %v3616
        %v3676 = vunpack.c.h.b16 %v3616
        %v3677 = vpack.c.b16 %v3647, %v3645
        %v3678 = vpack.c.b16 %v3648, %v3646
        %v3679 = vpack.c.b16 %v3651, %v3649
        %v3680 = vpack.c.b16 %v3652, %v3650
        %v3681 = vpack.c.b16 %v3655, %v3653
        %v3682 = vpack.c.b16 %v3656, %v3654
        %v3683 = vpack.c.b16 %v3659, %v3657
        %v3684 = vpack.c.b16 %v3660, %v3658
        %v3685 = vpack.c.b16 %v3663, %v3661
        %v3686 = vpack.c.b16 %v3664, %v3662
        %v3687 = vpack.c.b16 %v3667, %v3665
        %v3688 = vpack.c.b16 %v3668, %v3666
        %v3689 = vpack.c.b16 %v3671, %v3669
        %v3690 = vpack.c.b16 %v3672, %v3670
        %v3691 = vpack.c.b16 %v3675, %v3673
        %v3692 = vpack.c.b16 %v3676, %v3674
        %3709 = vmatprep.subr.bf16.mxu0 %v3678
        %3710 = vmatpush1.bf16.msra.mxu0 %v3677
        %3711 = vmatprep.subr.bf16.mxu0 %v3680
        %3712 = vmatpush1.bf16.msra.mxu0 %v3679
        %3713 = vmatprep.subr.bf16.mxu0 %v3682
        %3714 = vmatpush1.bf16.msra.mxu0 %v3681
        %3715 = vmatprep.subr.bf16.mxu0 %v3684
        %3716 = vmatpush1.bf16.msra.mxu0 %v3683
        %3717 = vmatprep.subr.bf16.mxu0 %v3686
        %3718 = vmatpush1.bf16.msra.mxu0 %v3685
        %3719 = vmatprep.subr.bf16.mxu0 %v3688
        %3720 = vmatpush1.bf16.msra.mxu0 %v3687
        %3721 = vmatprep.subr.bf16.mxu0 %v3690
        %3722 = vmatpush1.bf16.msra.mxu0 %v3689
        %3723 = vmatprep.subr.bf16.mxu0 %v3692
        %3724 = vmatpush1.bf16.msra.mxu0 %v3691
        %3725 = vmatprep.subr.bf16.mxu0 0
        %3726 = vmatpush1.bf16.msra.mxu0 0
        %3727 = vmatprep.subr.bf16.mxu0 0
        %3728 = vmatpush1.bf16.msra.mxu0 0
        %3729 = vmatprep.subr.bf16.mxu0 0
        %3730 = vmatpush1.bf16.msra.mxu0 0
        %3731 = vmatprep.subr.bf16.mxu0 0
        %3732 = vmatpush1.bf16.msra.mxu0 0
        %3733 = vmatprep.subr.bf16.mxu0 0
        %3734 = vmatpush1.bf16.msra.mxu0 0
        %3735 = vmatprep.subr.bf16.mxu0 0
        %3736 = vmatpush1.bf16.msra.mxu0 0
        %3737 = vmatprep.subr.bf16.mxu0 0
        %3738 = vmatpush1.bf16.msra.mxu0 0
        %3739 = vmatprep.subr.bf16.mxu0 0
        %3740 = vmatpush1.bf16.msra.mxu0 0
        %3741 = vmatprep.mubr.bf16.mxu0 0
        %3742 = vmatmul.mubr.bf16.gmra.mrb[0].mxu0 %v3599
        %v3743 = vpop.f32.mrb[0].mxu0
        %v3744 = vadd.f32 %v3622, %v3743
        %v3745 = vpop.f32.mrb[0].mxu0
        %v3746 = vadd.f32 %v3626, %v3745
        %v3747 = vpop.f32.mrb[0].mxu0
        %v3748 = vadd.f32 %v3622, %v3747
        %v3749 = vpop.f32.mrb[0].mxu0
        %v3750 = vadd.f32 %v3626, %v3749
        %3751 = vmatprep.mubr.bf16.mxu0 0
        %3752 = vmatmul.mubr.bf16.gmra.mrb[0].mxu0 %v3600
        %v3753 = vpop.f32.mrb[0].mxu0
        %v3754 = vadd.f32 %v3622, %v3753
        %v3755 = vpop.f32.mrb[0].mxu0
        %v3756 = vadd.f32 %v3626, %v3755
        %v3757 = vpop.f32.mrb[0].mxu0
        %v3758 = vadd.f32 %v3622, %v3757
        %v3759 = vpop.f32.mrb[0].mxu0
        %v3760 = vadd.f32 %v3626, %v3759
        %3761 = vdwg.mxu0
        %v3762 = vtanh.pop %v3744
        %v3763 = vtanh.pop %v3746
        %v3764 = vtanh.pop %v3748
        %v3765 = vtanh.pop %v3750
        %v3766 = vtanh.pop %v3754
        %v3767 = vtanh.pop %v3756
        %v3768 = vtanh.pop %v3758
        %v3769 = vtanh.pop %v3760
        %v3770 = vpack.c.bf16 %v3764, %v3762
        %v3771 = vpack.c.bf16 %v3765, %v3763
        %v3772 = vpack.c.bf16 %v3768, %v3766
        %v3773 = vpack.c.bf16 %v3769, %v3767
        %v3774 = vld [vmem:[#allocation16] sm:$0xff]
        %v3775 = vld [vmem:[#allocation16 + $0x8] sm:$0xff]
        %v3776 = vld [vmem:[#allocation16 + $0x10] sm:$0xff]
        %v3777 = vld [vmem:[#allocation16 + $0x18] sm:$0xff]
        %v3778 = vld [vmem:[#allocation16 + $0x20] sm:$0xff]
        %v3779 = vld [vmem:[#allocation16 + $0x28] sm:$0xff]
        %v3780 = vld [vmem:[#allocation16 + $0x30] sm:$0xff]
        %v3781 = vld [vmem:[#allocation16 + $0x38] sm:$0xff]
        %v3782 = vld [vmem:[#allocation16 + $0x40] sm:$0xff]
        %v3783 = vld [vmem:[#allocation16 + $0x48] sm:$0xff]
        %v3784 = vld [vmem:[#allocation16 + $0x50] sm:$0xff]
        %v3785 = vld [vmem:[#allocation16 + $0x58] sm:$0xff]
        %v3786 = vld [vmem:[#allocation16 + $0x60] sm:$0xff]
        %v3787 = vld [vmem:[#allocation16 + $0x68] sm:$0xff]
        %v3788 = vld [vmem:[#allocation16 + $0x70] sm:$0xff]
        %v3789 = vld [vmem:[#allocation16 + $0x78] sm:$0xff]
        %v3790 = vld [vmem:[#allocation16 + $0x80] sm:$0xff]
        %v3791 = vld [vmem:[#allocation16 + $0x88] sm:$0xff]
        %v3792 = vld [vmem:[#allocation16 + $0x90] sm:$0xff]
        %v3793 = vld [vmem:[#allocation16 + $0x98] sm:$0xff]
        %v3794 = vld [vmem:[#allocation16 + $0xa0] sm:$0xff]
        %v3795 = vld [vmem:[#allocation16 + $0xa8] sm:$0xff]
        %v3796 = vld [vmem:[#allocation16 + $0xb0] sm:$0xff]
        %v3797 = vld [vmem:[#allocation16 + $0xb8] sm:$0xff]
        %v3798 = vld [vmem:[#allocation16 + $0xc0] sm:$0xff]
        %v3799 = vld [vmem:[#allocation16 + $0xc8] sm:$0xff]
        %v3800 = vld [vmem:[#allocation16 + $0xd0] sm:$0xff]
        %v3801 = vld [vmem:[#allocation16 + $0xd8] sm:$0xff]
        %v3802 = vld [vmem:[#allocation16 + $0xe0] sm:$0xff]
        %v3803 = vld [vmem:[#allocation16 + $0xe8] sm:$0xff]
        %v3804 = vld [vmem:[#allocation16 + $0xf0] sm:$0xff]
        %v3805 = vld [vmem:[#allocation16 + $0xf8] sm:$0xff]
        %v3806 = vld [vmem:[#allocation16 + $0x100] sm:$0xff]
        %v3807 = vld [vmem:[#allocation16 + $0x108] sm:$0xff]
        %v3808 = vld [vmem:[#allocation16 + $0x110] sm:$0xff]
        %v3809 = vld [vmem:[#allocation16 + $0x118] sm:$0xff]
        %v3810 = vld [vmem:[#allocation16 + $0x120] sm:$0xff]
        %v3811 = vld [vmem:[#allocation16 + $0x128] sm:$0xff]
        %v3812 = vld [vmem:[#allocation16 + $0x130] sm:$0xff]
        %v3813 = vld [vmem:[#allocation16 + $0x138] sm:$0xff]
        %v3814 = vld [vmem:[#allocation16 + $0x140] sm:$0xff]
        %v3815 = vld [vmem:[#allocation16 + $0x148] sm:$0xff]
        %v3816 = vld [vmem:[#allocation16 + $0x150] sm:$0xff]
        %v3817 = vld [vmem:[#allocation16 + $0x158] sm:$0xff]
        %v3818 = vld [vmem:[#allocation16 + $0x160] sm:$0xff]
        %v3819 = vld [vmem:[#allocation16 + $0x168] sm:$0xff]
        %v3820 = vld [vmem:[#allocation16 + $0x170] sm:$0xff]
        %v3821 = vld [vmem:[#allocation16 + $0x178] sm:$0xff]
        %v3822 = vld [vmem:[#allocation16 + $0x180] sm:$0xff]
        %v3823 = vld [vmem:[#allocation16 + $0x188] sm:$0xff]
        %v3824 = vld [vmem:[#allocation16 + $0x190] sm:$0xff]
        %v3825 = vld [vmem:[#allocation16 + $0x198] sm:$0xff]
        %v3826 = vld [vmem:[#allocation16 + $0x1a0] sm:$0xff]
        %v3827 = vld [vmem:[#allocation16 + $0x1a8] sm:$0xff]
        %v3828 = vld [vmem:[#allocation16 + $0x1b0] sm:$0xff]
        %v3829 = vld [vmem:[#allocation16 + $0x1b8] sm:$0xff]
        %v3830 = vld [vmem:[#allocation16 + $0x1c0] sm:$0xff]
        %v3831 = vld [vmem:[#allocation16 + $0x1c8] sm:$0xff]
        %v3832 = vld [vmem:[#allocation16 + $0x1d0] sm:$0xff]
        %v3833 = vld [vmem:[#allocation16 + $0x1d8] sm:$0xff]
        %v3834 = vld [vmem:[#allocation16 + $0x1e0] sm:$0xff]
        %v3835 = vld [vmem:[#allocation16 + $0x1e8] sm:$0xff]
        %v3836 = vld [vmem:[#allocation16 + $0x1f0] sm:$0xff]
        %v3837 = vld [vmem:[#allocation16 + $0x1f8] sm:$0xff]
        %v3838 = vld [vmem:[%s14] sm:$0xf]
        %v3840 = vlaneseq
        %v3841 = vshrl.u32 %v3840, 7
        %v3842 = vsub.s32 0, %v3841
        %v3843 = vrot.slane %v3838, %v3842
        %v3844 = vlaneseq
        %v3845 = vshrl.u32 %v3844, 7
        %v3846 = vsub.s32 1, %v3845
        %v3847 = vrot.slane %v3838, %v3846
        %v3848 = vlaneseq
        %v3849 = vshrl.u32 %v3848, 7
        %v3850 = vsub.s32 2, %v3849
        %v3851 = vrot.slane %v3838, %v3850
        %v3852 = vlaneseq
        %v3853 = vshrl.u32 %v3852, 7
        %v3854 = vsub.s32 3, %v3853
        %v3855 = vrot.slane %v3838, %v3854
        %v3924 = vunpack.c.l.b16 %v3774
        %v3925 = vunpack.c.h.b16 %v3774
        %v3926 = vunpack.c.l.b16 %v3775
        %v3927 = vunpack.c.h.b16 %v3775
        %v3928 = vunpack.c.l.b16 %v3776
        %v3929 = vunpack.c.h.b16 %v3776
        %v3930 = vunpack.c.l.b16 %v3777
        %v3931 = vunpack.c.h.b16 %v3777
        %v3932 = vunpack.c.l.b16 %v3778
        %v3933 = vunpack.c.h.b16 %v3778
        %v3934 = vunpack.c.l.b16 %v3779
        %v3935 = vunpack.c.h.b16 %v3779
        %v3936 = vunpack.c.l.b16 %v3780
        %v3937 = vunpack.c.h.b16 %v3780
        %v3938 = vunpack.c.l.b16 %v3781
        %v3939 = vunpack.c.h.b16 %v3781
        %v3940 = vunpack.c.l.b16 %v3782
        %v3941 = vunpack.c.h.b16 %v3782
        %v3942 = vunpack.c.l.b16 %v3783
        %v3943 = vunpack.c.h.b16 %v3783
        %v3944 = vunpack.c.l.b16 %v3784
        %v3945 = vunpack.c.h.b16 %v3784
        %v3946 = vunpack.c.l.b16 %v3785
        %v3947 = vunpack.c.h.b16 %v3785
        %v3948 = vunpack.c.l.b16 %v3786
        %v3949 = vunpack.c.h.b16 %v3786
        %v3950 = vunpack.c.l.b16 %v3787
        %v3951 = vunpack.c.h.b16 %v3787
        %v3952 = vunpack.c.l.b16 %v3788
        %v3953 = vunpack.c.h.b16 %v3788
        %v3954 = vunpack.c.l.b16 %v3789
        %v3955 = vunpack.c.h.b16 %v3789
        %v3956 = vunpack.c.l.b16 %v3790
        %v3957 = vunpack.c.h.b16 %v3790
        %v3958 = vunpack.c.l.b16 %v3791
        %v3959 = vunpack.c.h.b16 %v3791
        %v3960 = vunpack.c.l.b16 %v3792
        %v3961 = vunpack.c.h.b16 %v3792
        %v3962 = vunpack.c.l.b16 %v3793
        %v3963 = vunpack.c.h.b16 %v3793
        %v3964 = vunpack.c.l.b16 %v3794
        %v3965 = vunpack.c.h.b16 %v3794
        %v3966 = vunpack.c.l.b16 %v3795
        %v3967 = vunpack.c.h.b16 %v3795
        %v3968 = vunpack.c.l.b16 %v3796
        %v3969 = vunpack.c.h.b16 %v3796
        %v3970 = vunpack.c.l.b16 %v3797
        %v3971 = vunpack.c.h.b16 %v3797
        %v3972 = vunpack.c.l.b16 %v3798
        %v3973 = vunpack.c.h.b16 %v3798
        %v3974 = vunpack.c.l.b16 %v3799
        %v3975 = vunpack.c.h.b16 %v3799
        %v3976 = vunpack.c.l.b16 %v3800
        %v3977 = vunpack.c.h.b16 %v3800
        %v3978 = vunpack.c.l.b16 %v3801
        %v3979 = vunpack.c.h.b16 %v3801
        %v3980 = vunpack.c.l.b16 %v3802
        %v3981 = vunpack.c.h.b16 %v3802
        %v3982 = vunpack.c.l.b16 %v3803
        %v3983 = vunpack.c.h.b16 %v3803
        %v3984 = vunpack.c.l.b16 %v3804
        %v3985 = vunpack.c.h.b16 %v3804
        %v3986 = vunpack.c.l.b16 %v3805
        %v3987 = vunpack.c.h.b16 %v3805
        %v3988 = vunpack.c.l.b16 %v3806
        %v3989 = vunpack.c.h.b16 %v3806
        %v3990 = vunpack.c.l.b16 %v3807
        %v3991 = vunpack.c.h.b16 %v3807
        %v3992 = vunpack.c.l.b16 %v3808
        %v3993 = vunpack.c.h.b16 %v3808
        %v3994 = vunpack.c.l.b16 %v3809
        %v3995 = vunpack.c.h.b16 %v3809
        %v3996 = vunpack.c.l.b16 %v3810
        %v3997 = vunpack.c.h.b16 %v3810
        %v3998 = vunpack.c.l.b16 %v3811
        %v3999 = vunpack.c.h.b16 %v3811
        %v4000 = vunpack.c.l.b16 %v3812
        %v4001 = vunpack.c.h.b16 %v3812
        %v4002 = vunpack.c.l.b16 %v3813
        %v4003 = vunpack.c.h.b16 %v3813
        %v4004 = vunpack.c.l.b16 %v3814
        %v4005 = vunpack.c.h.b16 %v3814
        %v4006 = vunpack.c.l.b16 %v3815
        %v4007 = vunpack.c.h.b16 %v3815
        %v4008 = vunpack.c.l.b16 %v3816
        %v4009 = vunpack.c.h.b16 %v3816
        %v4010 = vunpack.c.l.b16 %v3817
        %v4011 = vunpack.c.h.b16 %v3817
        %v4012 = vunpack.c.l.b16 %v3818
        %v4013 = vunpack.c.h.b16 %v3818
        %v4014 = vunpack.c.l.b16 %v3819
        %v4015 = vunpack.c.h.b16 %v3819
        %v4016 = vunpack.c.l.b16 %v3820
        %v4017 = vunpack.c.h.b16 %v3820
        %v4018 = vunpack.c.l.b16 %v3821
        %v4019 = vunpack.c.h.b16 %v3821
        %v4020 = vunpack.c.l.b16 %v3822
        %v4021 = vunpack.c.h.b16 %v3822
        %v4022 = vunpack.c.l.b16 %v3823
        %v4023 = vunpack.c.h.b16 %v3823
        %v4024 = vunpack.c.l.b16 %v3824
        %v4025 = vunpack.c.h.b16 %v3824
        %v4026 = vunpack.c.l.b16 %v3825
        %v4027 = vunpack.c.h.b16 %v3825
        %v4028 = vunpack.c.l.b16 %v3826
        %v4029 = vunpack.c.h.b16 %v3826
        %v4030 = vunpack.c.l.b16 %v3827
        %v4031 = vunpack.c.h.b16 %v3827
        %v4032 = vunpack.c.l.b16 %v3828
        %v4033 = vunpack.c.h.b16 %v3828
        %v4034 = vunpack.c.l.b16 %v3829
        %v4035 = vunpack.c.h.b16 %v3829
        %v4036 = vunpack.c.l.b16 %v3830
        %v4037 = vunpack.c.h.b16 %v3830
        %v4038 = vunpack.c.l.b16 %v3831
        %v4039 = vunpack.c.h.b16 %v3831
        %v4040 = vunpack.c.l.b16 %v3832
        %v4041 = vunpack.c.h.b16 %v3832
        %v4042 = vunpack.c.l.b16 %v3833
        %v4043 = vunpack.c.h.b16 %v3833
        %v4044 = vunpack.c.l.b16 %v3834
        %v4045 = vunpack.c.h.b16 %v3834
        %v4046 = vunpack.c.l.b16 %v3835
        %v4047 = vunpack.c.h.b16 %v3835
        %v4048 = vunpack.c.l.b16 %v3836
        %v4049 = vunpack.c.h.b16 %v3836
        %v4050 = vunpack.c.l.b16 %v3837
        %v4051 = vunpack.c.h.b16 %v3837
        %v4052 = vpack.c.b16 %v3928, %v3924
        %v4053 = vpack.c.b16 %v3929, %v3925
        %v4054 = vpack.c.b16 %v3930, %v3926
        %v4055 = vpack.c.b16 %v3931, %v3927
        %v4056 = vpack.c.b16 %v3936, %v3932
        %v4057 = vpack.c.b16 %v3937, %v3933
        %v4058 = vpack.c.b16 %v3938, %v3934
        %v4059 = vpack.c.b16 %v3939, %v3935
        %v4060 = vpack.c.b16 %v3944, %v3940
        %v4061 = vpack.c.b16 %v3945, %v3941
        %v4062 = vpack.c.b16 %v3946, %v3942
        %v4063 = vpack.c.b16 %v3947, %v3943
        %v4064 = vpack.c.b16 %v3952, %v3948
        %v4065 = vpack.c.b16 %v3953, %v3949
        %v4066 = vpack.c.b16 %v3954, %v3950
        %v4067 = vpack.c.b16 %v3955, %v3951
        %v4068 = vpack.c.b16 %v3960, %v3956
        %v4069 = vpack.c.b16 %v3961, %v3957
        %v4070 = vpack.c.b16 %v3962, %v3958
        %v4071 = vpack.c.b16 %v3963, %v3959
        %v4072 = vpack.c.b16 %v3968, %v3964
        %v4073 = vpack.c.b16 %v3969, %v3965
        %v4074 = vpack.c.b16 %v3970, %v3966
        %v4075 = vpack.c.b16 %v3971, %v3967
        %v4076 = vpack.c.b16 %v3976, %v3972
        %v4077 = vpack.c.b16 %v3977, %v3973
        %v4078 = vpack.c.b16 %v3978, %v3974
        %v4079 = vpack.c.b16 %v3979, %v3975
        %v4080 = vpack.c.b16 %v3984, %v3980
        %v4081 = vpack.c.b16 %v3985, %v3981
        %v4082 = vpack.c.b16 %v3986, %v3982
        %v4083 = vpack.c.b16 %v3987, %v3983
        %v4084 = vpack.c.b16 %v3992, %v3988
        %v4085 = vpack.c.b16 %v3993, %v3989
        %v4086 = vpack.c.b16 %v3994, %v3990
        %v4087 = vpack.c.b16 %v3995, %v3991
        %v4088 = vpack.c.b16 %v4000, %v3996
        %v4089 = vpack.c.b16 %v4001, %v3997
        %v4090 = vpack.c.b16 %v4002, %v3998
        %v4091 = vpack.c.b16 %v4003, %v3999
        %v4092 = vpack.c.b16 %v4008, %v4004
        %v4093 = vpack.c.b16 %v4009, %v4005
        %v4094 = vpack.c.b16 %v4010, %v4006
        %v4095 = vpack.c.b16 %v4011, %v4007
        %v4096 = vpack.c.b16 %v4016, %v4012
        %v4097 = vpack.c.b16 %v4017, %v4013
        %v4098 = vpack.c.b16 %v4018, %v4014
        %v4099 = vpack.c.b16 %v4019, %v4015
        %v4100 = vpack.c.b16 %v4024, %v4020
        %v4101 = vpack.c.b16 %v4025, %v4021
        %v4102 = vpack.c.b16 %v4026, %v4022
        %v4103 = vpack.c.b16 %v4027, %v4023
        %v4104 = vpack.c.b16 %v4032, %v4028
        %v4105 = vpack.c.b16 %v4033, %v4029
        %v4106 = vpack.c.b16 %v4034, %v4030
        %v4107 = vpack.c.b16 %v4035, %v4031
        %v4108 = vpack.c.b16 %v4040, %v4036
        %v4109 = vpack.c.b16 %v4041, %v4037
        %v4110 = vpack.c.b16 %v4042, %v4038
        %v4111 = vpack.c.b16 %v4043, %v4039
        %v4112 = vpack.c.b16 %v4048, %v4044
        %v4113 = vpack.c.b16 %v4049, %v4045
        %v4114 = vpack.c.b16 %v4050, %v4046
        %v4115 = vpack.c.b16 %v4051, %v4047
        %4180 = vmatprep.subr.bf16.mxu0 %v4053
        %4181 = vmatpush1.bf16.msra.mxu0 %v4052
        %4182 = vmatprep.subr.bf16.mxu0 %v4057
        %4183 = vmatpush1.bf16.msra.mxu0 %v4056
        %4184 = vmatprep.subr.bf16.mxu0 %v4061
        %4185 = vmatpush1.bf16.msra.mxu0 %v4060
        %4186 = vmatprep.subr.bf16.mxu0 %v4065
        %4187 = vmatpush1.bf16.msra.mxu0 %v4064
        %4188 = vmatprep.subr.bf16.mxu0 %v4069
        %4189 = vmatpush1.bf16.msra.mxu0 %v4068
        %4190 = vmatprep.subr.bf16.mxu0 %v4073
        %4191 = vmatpush1.bf16.msra.mxu0 %v4072
        %4192 = vmatprep.subr.bf16.mxu0 %v4077
        %4193 = vmatpush1.bf16.msra.mxu0 %v4076
        %4194 = vmatprep.subr.bf16.mxu0 %v4081
        %4195 = vmatpush1.bf16.msra.mxu0 %v4080
        %4196 = vmatprep.subr.bf16.mxu0 %v4085
        %4197 = vmatpush1.bf16.msra.mxu0 %v4084
        %4198 = vmatprep.subr.bf16.mxu0 %v4089
        %4199 = vmatpush1.bf16.msra.mxu0 %v4088
        %4200 = vmatprep.subr.bf16.mxu0 %v4093
        %4201 = vmatpush1.bf16.msra.mxu0 %v4092
        %4202 = vmatprep.subr.bf16.mxu0 %v4097
        %4203 = vmatpush1.bf16.msra.mxu0 %v4096
        %4204 = vmatprep.subr.bf16.mxu0 %v4101
        %4205 = vmatpush1.bf16.msra.mxu0 %v4100
        %4206 = vmatprep.subr.bf16.mxu0 %v4105
        %4207 = vmatpush1.bf16.msra.mxu0 %v4104
        %4208 = vmatprep.subr.bf16.mxu0 %v4109
        %4209 = vmatpush1.bf16.msra.mxu0 %v4108
        %4210 = vmatprep.subr.bf16.mxu0 %v4113
        %4211 = vmatpush1.bf16.msra.mxu0 %v4112
        %4212 = vmatprep.mubr.bf16.mxu0 %v3771
        %4213 = vmatmul.mubr.bf16.gmra.mrb[0].mxu0 %v3770
        %v4214 = vpop.f32.mrb[0].mxu0
        %v4215 = vadd.f32 %v3843, %v4214
        %v4216 = vpop.f32.mrb[0].mxu0
        %v4217 = vadd.f32 %v3847, %v4216
        %v4218 = vpop.f32.mrb[0].mxu0
        %v4219 = vadd.f32 %v3843, %v4218
        %v4220 = vpop.f32.mrb[0].mxu0
        %v4221 = vadd.f32 %v3847, %v4220
        %4222 = vmatprep.mubr.bf16.mxu0 %v3773
        %4223 = vmatmul.mubr.bf16.gmra.mrb[0].mxu0 %v3772
        %v4224 = vpop.f32.mrb[0].mxu0
        %v4225 = vadd.f32 %v3843, %v4224
        %v4226 = vpop.f32.mrb[0].mxu0
        %v4227 = vadd.f32 %v3847, %v4226
        %v4228 = vpop.f32.mrb[0].mxu0
        %v4229 = vadd.f32 %v3843, %v4228
        %v4230 = vpop.f32.mrb[0].mxu0
        %v4231 = vadd.f32 %v3847, %v4230
        %4232 = vdwg.mxu0
        %4233 = vmatprep.subr.bf16.mxu0 %v4055
        %4234 = vmatpush1.bf16.msra.mxu0 %v4054
        %4235 = vmatprep.subr.bf16.mxu0 %v4059
        %4236 = vmatpush1.bf16.msra.mxu0 %v4058
        %4237 = vmatprep.subr.bf16.mxu0 %v4063
        %4238 = vmatpush1.bf16.msra.mxu0 %v4062
        %4239 = vmatprep.subr.bf16.mxu0 %v4067
        %4240 = vmatpush1.bf16.msra.mxu0 %v4066
        %4241 = vmatprep.subr.bf16.mxu0 %v4071
        %4242 = vmatpush1.bf16.msra.mxu0 %v4070
        %4243 = vmatprep.subr.bf16.mxu0 %v4075
        %4244 = vmatpush1.bf16.msra.mxu0 %v4074
        %4245 = vmatprep.subr.bf16.mxu0 %v4079
        %4246 = vmatpush1.bf16.msra.mxu0 %v4078
        %4247 = vmatprep.subr.bf16.mxu0 %v4083
        %4248 = vmatpush1.bf16.msra.mxu0 %v4082
        %4249 = vmatprep.subr.bf16.mxu0 %v4087
        %4250 = vmatpush1.bf16.msra.mxu0 %v4086
        %4251 = vmatprep.subr.bf16.mxu0 %v4091
        %4252 = vmatpush1.bf16.msra.mxu0 %v4090
        %4253 = vmatprep.subr.bf16.mxu0 %v4095
        %4254 = vmatpush1.bf16.msra.mxu0 %v4094
        %4255 = vmatprep.subr.bf16.mxu0 %v4099
        %4256 = vmatpush1.bf16.msra.mxu0 %v4098
        %4257 = vmatprep.subr.bf16.mxu0 %v4103
        %4258 = vmatpush1.bf16.msra.mxu0 %v4102
        %4259 = vmatprep.subr.bf16.mxu0 %v4107
        %4260 = vmatpush1.bf16.msra.mxu0 %v4106
        %4261 = vmatprep.subr.bf16.mxu0 %v4111
        %4262 = vmatpush1.bf16.msra.mxu0 %v4110
        %4263 = vmatprep.subr.bf16.mxu0 %v4115
        %4264 = vmatpush1.bf16.msra.mxu0 %v4114
        %4265 = vmatprep.mubr.bf16.mxu0 %v3771
        %4266 = vmatmul.mubr.bf16.gmra.mrb[0].mxu0 %v3770
        %v4267 = vpop.f32.mrb[0].mxu0
        %v4268 = vadd.f32 %v3851, %v4267
        %v4269 = vpop.f32.mrb[0].mxu0
        %v4270 = vadd.f32 %v3855, %v4269
        %v4271 = vpop.f32.mrb[0].mxu0
        %v4272 = vadd.f32 %v3851, %v4271
        %v4273 = vpop.f32.mrb[0].mxu0
        %v4274 = vadd.f32 %v3855, %v4273
        %4275 = vmatprep.mubr.bf16.mxu0 %v3773
        %4276 = vmatmul.mubr.bf16.gmra.mrb[0].mxu0 %v3772
        %v4277 = vpop.f32.mrb[0].mxu0
        %v4278 = vadd.f32 %v3851, %v4277
        %v4279 = vpop.f32.mrb[0].mxu0
        %v4280 = vadd.f32 %v3855, %v4279
        %v4281 = vpop.f32.mrb[0].mxu0
        %v4282 = vadd.f32 %v3851, %v4281
        %v4283 = vpop.f32.mrb[0].mxu0
        %v4284 = vadd.f32 %v3855, %v4283
        %4285 = vdwg.mxu0
        %v4286 = vtanh.pop %v4215
        %v4287 = vtanh.pop %v4217
        %v4288 = vtanh.pop %v4268
        %v4289 = vtanh.pop %v4270
        %v4290 = vtanh.pop %v4219
        %v4291 = vtanh.pop %v4221
        %v4292 = vtanh.pop %v4272
        %v4293 = vtanh.pop %v4274
        %v4294 = vtanh.pop %v4225
        %v4295 = vtanh.pop %v4227
        %v4296 = vtanh.pop %v4278
        %v4297 = vtanh.pop %v4280
        %v4298 = vtanh.pop %v4229
        %v4299 = vtanh.pop %v4231
        %v4300 = vtanh.pop %v4282
        %v4301 = vtanh.pop %v4284
        %v4302 = vpack.c.bf16 %v4290, %v4286
        %v4303 = vpack.c.bf16 %v4291, %v4287
        %v4304 = vpack.c.bf16 %v4292, %v4288
        %v4305 = vpack.c.bf16 %v4293, %v4289
        %v4306 = vpack.c.bf16 %v4298, %v4294
        %v4307 = vpack.c.bf16 %v4299, %v4295
        %v4308 = vpack.c.bf16 %v4300, %v4296
        %v4309 = vpack.c.bf16 %v4301, %v4297
        %v4310 = vld [vmem:[#allocation17] sm:$0xff]
        %v4311 = vld [vmem:[#allocation17 + $0x8] sm:$0xff]
        %v4312 = vld [vmem:[#allocation17 + $0x10] sm:$0xff]
        %v4313 = vld [vmem:[#allocation17 + $0x18] sm:$0xf]
        %v4314 = vld [vmem:[#allocation17 + $0x1c] sm:$0xff]
        %v4315 = vld [vmem:[#allocation17 + $0x24] sm:$0xff]
        %v4316 = vld [vmem:[#allocation17 + $0x2c] sm:$0xff]
        %v4317 = vld [vmem:[#allocation17 + $0x34] sm:$0xf]
        %v4318 = vld [vmem:[#allocation17 + $0x38] sm:$0xff]
        %v4319 = vld [vmem:[#allocation17 + $0x40] sm:$0xff]
        %v4320 = vld [vmem:[#allocation17 + $0x48] sm:$0xff]
        %v4321 = vld [vmem:[#allocation17 + $0x50] sm:$0xf]
        %v4322 = vld [vmem:[#allocation17 + $0x54] sm:$0xff]
        %v4323 = vld [vmem:[#allocation17 + $0x5c] sm:$0xff]
        %v4324 = vld [vmem:[#allocation17 + $0x64] sm:$0xff]
        %v4325 = vld [vmem:[#allocation17 + $0x6c] sm:$0xf]
        %v4326 = vld [vmem:[#allocation17 + $0x70] sm:$0xff]
        %v4327 = vld [vmem:[#allocation17 + $0x78] sm:$0xff]
        %v4328 = vld [vmem:[#allocation17 + $0x80] sm:$0xff]
        %v4329 = vld [vmem:[#allocation17 + $0x88] sm:$0xf]
        %v4330 = vld [vmem:[#allocation17 + $0x8c] sm:$0xff]
        %v4331 = vld [vmem:[#allocation17 + $0x94] sm:$0xff]
        %v4332 = vld [vmem:[#allocation17 + $0x9c] sm:$0xff]
        %v4333 = vld [vmem:[#allocation17 + $0xa4] sm:$0xf]
        %v4334 = vld [vmem:[#allocation17 + $0xa8] sm:$0xff]
        %v4335 = vld [vmem:[#allocation17 + $0xb0] sm:$0xff]
        %v4336 = vld [vmem:[#allocation17 + $0xb8] sm:$0xff]
        %v4337 = vld [vmem:[#allocation17 + $0xc0] sm:$0xf]
        %v4338 = vld [vmem:[#allocation17 + $0xc4] sm:$0xff]
        %v4339 = vld [vmem:[#allocation17 + $0xcc] sm:$0xff]
        %v4340 = vld [vmem:[#allocation17 + $0xd4] sm:$0xff]
        %v4341 = vld [vmem:[#allocation17 + $0xdc] sm:$0xf]
        %v4342 = vld [vmem:[#allocation17 + $0xe0] sm:$0xff]
        %v4343 = vld [vmem:[#allocation17 + $0xe8] sm:$0xff]
        %v4344 = vld [vmem:[#allocation17 + $0xf0] sm:$0xff]
        %v4345 = vld [vmem:[#allocation17 + $0xf8] sm:$0xf]
        %v4346 = vld [vmem:[#allocation17 + $0xfc] sm:$0xff]
        %v4347 = vld [vmem:[#allocation17 + $0x104] sm:$0xff]
        %v4348 = vld [vmem:[#allocation17 + $0x10c] sm:$0xff]
        %v4349 = vld [vmem:[#allocation17 + $0x114] sm:$0xf]
        %v4350 = vld [vmem:[#allocation17 + $0x118] sm:$0xff]
        %v4351 = vld [vmem:[#allocation17 + $0x120] sm:$0xff]
        %v4352 = vld [vmem:[#allocation17 + $0x128] sm:$0xff]
        %v4353 = vld [vmem:[#allocation17 + $0x130] sm:$0xf]
        %v4354 = vld [vmem:[#allocation17 + $0x134] sm:$0xff]
        %v4355 = vld [vmem:[#allocation17 + $0x13c] sm:$0xff]
        %v4356 = vld [vmem:[#allocation17 + $0x144] sm:$0xff]
        %v4357 = vld [vmem:[#allocation17 + $0x14c] sm:$0xf]
        %v4358 = vld [vmem:[#allocation17 + $0x150] sm:$0xff]
        %v4359 = vld [vmem:[#allocation17 + $0x158] sm:$0xff]
        %v4360 = vld [vmem:[#allocation17 + $0x160] sm:$0xff]
        %v4361 = vld [vmem:[#allocation17 + $0x168] sm:$0xf]
        %v4362 = vld [vmem:[#allocation17 + $0x16c] sm:$0xff]
        %v4363 = vld [vmem:[#allocation17 + $0x174] sm:$0xff]
        %v4364 = vld [vmem:[#allocation17 + $0x17c] sm:$0xff]
        %v4365 = vld [vmem:[#allocation17 + $0x184] sm:$0xf]
        %v4366 = vld [vmem:[#allocation17 + $0x188] sm:$0xff]
        %v4367 = vld [vmem:[#allocation17 + $0x190] sm:$0xff]
        %v4368 = vld [vmem:[#allocation17 + $0x198] sm:$0xff]
        %v4369 = vld [vmem:[#allocation17 + $0x1a0] sm:$0xf]
        %v4370 = vld [vmem:[#allocation17 + $0x1a4] sm:$0xff]
        %v4371 = vld [vmem:[#allocation17 + $0x1ac] sm:$0xff]
        %v4372 = vld [vmem:[#allocation17 + $0x1b4] sm:$0xff]
        %v4373 = vld [vmem:[#allocation17 + $0x1bc] sm:$0xf]
        %v4374 = vld [vmem:[#allocation17 + $0x1c0] sm:$0xff]
        %v4375 = vld [vmem:[#allocation17 + $0x1c8] sm:$0xff]
        %v4376 = vld [vmem:[#allocation17 + $0x1d0] sm:$0xff]
        %v4377 = vld [vmem:[#allocation17 + $0x1d8] sm:$0xf]
        %v4378 = vld [vmem:[#allocation17 + $0x1dc] sm:$0xff]
        %v4379 = vld [vmem:[#allocation17 + $0x1e4] sm:$0xff]
        %v4380 = vld [vmem:[#allocation17 + $0x1ec] sm:$0xff]
        %v4381 = vld [vmem:[#allocation17 + $0x1f4] sm:$0xf]
        %v4382 = vld [vmem:[#allocation17 + $0x1f8] sm:$0xff]
        %v4383 = vld [vmem:[#allocation17 + $0x200] sm:$0xff]
        %v4384 = vld [vmem:[#allocation17 + $0x208] sm:$0xff]
        %v4385 = vld [vmem:[#allocation17 + $0x210] sm:$0xf]
        %v4386 = vld [vmem:[#allocation17 + $0x214] sm:$0xff]
        %v4387 = vld [vmem:[#allocation17 + $0x21c] sm:$0xff]
        %v4388 = vld [vmem:[#allocation17 + $0x224] sm:$0xff]
        %v4389 = vld [vmem:[#allocation17 + $0x22c] sm:$0xf]
        %v4390 = vld [vmem:[#allocation17 + $0x230] sm:$0xff]
        %v4391 = vld [vmem:[#allocation17 + $0x238] sm:$0xff]
        %v4392 = vld [vmem:[#allocation17 + $0x240] sm:$0xff]
        %v4393 = vld [vmem:[#allocation17 + $0x248] sm:$0xf]
        %v4394 = vld [vmem:[#allocation17 + $0x24c] sm:$0xff]
        %v4395 = vld [vmem:[#allocation17 + $0x254] sm:$0xff]
        %v4396 = vld [vmem:[#allocation17 + $0x25c] sm:$0xff]
        %v4397 = vld [vmem:[#allocation17 + $0x264] sm:$0xf]
        %v4398 = vld [vmem:[#allocation17 + $0x268] sm:$0xff]
        %v4399 = vld [vmem:[#allocation17 + $0x270] sm:$0xff]
        %v4400 = vld [vmem:[#allocation17 + $0x278] sm:$0xff]
        %v4401 = vld [vmem:[#allocation17 + $0x280] sm:$0xf]
        %v4402 = vld [vmem:[#allocation17 + $0x284] sm:$0xff]
        %v4403 = vld [vmem:[#allocation17 + $0x28c] sm:$0xff]
        %v4404 = vld [vmem:[#allocation17 + $0x294] sm:$0xff]
        %v4405 = vld [vmem:[#allocation17 + $0x29c] sm:$0xf]
        %v4406 = vld [vmem:[#allocation17 + $0x2a0] sm:$0xff]
        %v4407 = vld [vmem:[#allocation17 + $0x2a8] sm:$0xff]
        %v4408 = vld [vmem:[#allocation17 + $0x2b0] sm:$0xff]
        %v4409 = vld [vmem:[#allocation17 + $0x2b8] sm:$0xf]
        %v4410 = vld [vmem:[#allocation17 + $0x2bc] sm:$0xff]
        %v4411 = vld [vmem:[#allocation17 + $0x2c4] sm:$0xff]
        %v4412 = vld [vmem:[#allocation17 + $0x2cc] sm:$0xff]
        %v4413 = vld [vmem:[#allocation17 + $0x2d4] sm:$0xf]
        %v4414 = vld [vmem:[#allocation17 + $0x2d8] sm:$0xff]
        %v4415 = vld [vmem:[#allocation17 + $0x2e0] sm:$0xff]
        %v4416 = vld [vmem:[#allocation17 + $0x2e8] sm:$0xff]
        %v4417 = vld [vmem:[#allocation17 + $0x2f0] sm:$0xf]
        %v4418 = vld [vmem:[#allocation17 + $0x2f4] sm:$0xff]
        %v4419 = vld [vmem:[#allocation17 + $0x2fc] sm:$0xff]
        %v4420 = vld [vmem:[#allocation17 + $0x304] sm:$0xff]
        %v4421 = vld [vmem:[#allocation17 + $0x30c] sm:$0xf]
        %v4422 = vld [vmem:[#allocation17 + $0x310] sm:$0xff]
        %v4423 = vld [vmem:[#allocation17 + $0x318] sm:$0xff]
        %v4424 = vld [vmem:[#allocation17 + $0x320] sm:$0xff]
        %v4425 = vld [vmem:[#allocation17 + $0x328] sm:$0xf]
        %v4426 = vld [vmem:[#allocation17 + $0x32c] sm:$0xff]
        %v4427 = vld [vmem:[#allocation17 + $0x334] sm:$0xff]
        %v4428 = vld [vmem:[#allocation17 + $0x33c] sm:$0xff]
        %v4429 = vld [vmem:[#allocation17 + $0x344] sm:$0xf]
        %v4430 = vld [vmem:[#allocation17 + $0x348] sm:$0xff]
        %v4431 = vld [vmem:[#allocation17 + $0x350] sm:$0xff]
        %v4432 = vld [vmem:[#allocation17 + $0x358] sm:$0xff]
        %v4433 = vld [vmem:[#allocation17 + $0x360] sm:$0xf]
        %v4434 = vld [vmem:[#allocation17 + $0x364] sm:$0xff]
        %v4435 = vld [vmem:[#allocation17 + $0x36c] sm:$0xff]
        %v4436 = vld [vmem:[#allocation17 + $0x374] sm:$0xff]
        %v4437 = vld [vmem:[#allocation17 + $0x37c] sm:$0xf]
        %v4438 = vld [vmem:[#allocation17 + $0x380] sm:$0xff]
        %v4439 = vld [vmem:[#allocation17 + $0x388] sm:$0xff]
        %v4440 = vld [vmem:[#allocation17 + $0x390] sm:$0xff]
        %v4441 = vld [vmem:[#allocation17 + $0x398] sm:$0xf]
        %v4442 = vld [vmem:[#allocation17 + $0x39c] sm:$0xff]
        %v4443 = vld [vmem:[#allocation17 + $0x3a4] sm:$0xff]
        %v4444 = vld [vmem:[#allocation17 + $0x3ac] sm:$0xff]
        %v4445 = vld [vmem:[#allocation17 + $0x3b4] sm:$0xf]
        %v4446 = vld [vmem:[#allocation17 + $0x3b8] sm:$0xff]
        %v4447 = vld [vmem:[#allocation17 + $0x3c0] sm:$0xff]
        %v4448 = vld [vmem:[#allocation17 + $0x3c8] sm:$0xff]
        %v4449 = vld [vmem:[#allocation17 + $0x3d0] sm:$0xf]
        %v4450 = vld [vmem:[#allocation17 + $0x3d4] sm:$0xff]
        %v4451 = vld [vmem:[#allocation17 + $0x3dc] sm:$0xff]
        %v4452 = vld [vmem:[#allocation17 + $0x3e4] sm:$0xff]
        %v4453 = vld [vmem:[#allocation17 + $0x3ec] sm:$0xf]
        %v4454 = vld [vmem:[#allocation17 + $0x3f0] sm:$0xff]
        %v4455 = vld [vmem:[#allocation17 + $0x3f8] sm:$0xff]
        %v4456 = vld [vmem:[#allocation17 + $0x400] sm:$0xff]
        %v4457 = vld [vmem:[#allocation17 + $0x408] sm:$0xf]
        %v4458 = vld [vmem:[#allocation17 + $0x40c] sm:$0xff]
        %v4459 = vld [vmem:[#allocation17 + $0x414] sm:$0xff]
        %v4460 = vld [vmem:[#allocation17 + $0x41c] sm:$0xff]
        %v4461 = vld [vmem:[#allocation17 + $0x424] sm:$0xf]
        %v4462 = vld [vmem:[#allocation17 + $0x428] sm:$0xff]
        %v4463 = vld [vmem:[#allocation17 + $0x430] sm:$0xff]
        %v4464 = vld [vmem:[#allocation17 + $0x438] sm:$0xff]
        %v4465 = vld [vmem:[#allocation17 + $0x440] sm:$0xf]
        %v4466 = vld [vmem:[#allocation17 + $0x444] sm:$0xff]
        %v4467 = vld [vmem:[#allocation17 + $0x44c] sm:$0xff]
        %v4468 = vld [vmem:[#allocation17 + $0x454] sm:$0xff]
        %v4469 = vld [vmem:[#allocation17 + $0x45c] sm:$0xf]
        %v4470 = vld [vmem:[#allocation17 + $0x460] sm:$0xff]
        %v4471 = vld [vmem:[#allocation17 + $0x468] sm:$0xff]
        %v4472 = vld [vmem:[#allocation17 + $0x470] sm:$0xff]
        %v4473 = vld [vmem:[#allocation17 + $0x478] sm:$0xf]
        %v4474 = vld [vmem:[#allocation17 + $0x47c] sm:$0xff]
        %v4475 = vld [vmem:[#allocation17 + $0x484] sm:$0xff]
        %v4476 = vld [vmem:[#allocation17 + $0x48c] sm:$0xff]
        %v4477 = vld [vmem:[#allocation17 + $0x494] sm:$0xf]
        %v4478 = vld [vmem:[#allocation17 + $0x498] sm:$0xff]
        %v4479 = vld [vmem:[#allocation17 + $0x4a0] sm:$0xff]
        %v4480 = vld [vmem:[#allocation17 + $0x4a8] sm:$0xff]
        %v4481 = vld [vmem:[#allocation17 + $0x4b0] sm:$0xf]
        %v4482 = vld [vmem:[#allocation17 + $0x4b4] sm:$0xff]
        %v4483 = vld [vmem:[#allocation17 + $0x4bc] sm:$0xff]
        %v4484 = vld [vmem:[#allocation17 + $0x4c4] sm:$0xff]
        %v4485 = vld [vmem:[#allocation17 + $0x4cc] sm:$0xf]
        %v4486 = vld [vmem:[#allocation17 + $0x4d0] sm:$0xff]
        %v4487 = vld [vmem:[#allocation17 + $0x4d8] sm:$0xff]
        %v4488 = vld [vmem:[#allocation17 + $0x4e0] sm:$0xff]
        %v4489 = vld [vmem:[#allocation17 + $0x4e8] sm:$0xf]
        %v4490 = vld [vmem:[#allocation17 + $0x4ec] sm:$0xff]
        %v4491 = vld [vmem:[#allocation17 + $0x4f4] sm:$0xff]
        %v4492 = vld [vmem:[#allocation17 + $0x4fc] sm:$0xff]
        %v4493 = vld [vmem:[#allocation17 + $0x504] sm:$0xf]
        %v4494 = vld [vmem:[#allocation17 + $0x508] sm:$0xff]
        %v4495 = vld [vmem:[#allocation17 + $0x510] sm:$0xff]
        %v4496 = vld [vmem:[#allocation17 + $0x518] sm:$0xff]
        %v4497 = vld [vmem:[#allocation17 + $0x520] sm:$0xf]
        %v4498 = vld [vmem:[#allocation17 + $0x524] sm:$0xff]
        %v4499 = vld [vmem:[#allocation17 + $0x52c] sm:$0xff]
        %v4500 = vld [vmem:[#allocation17 + $0x534] sm:$0xff]
        %v4501 = vld [vmem:[#allocation17 + $0x53c] sm:$0xf]
        %v4502 = vld [vmem:[#allocation17 + $0x540] sm:$0xff]
        %v4503 = vld [vmem:[#allocation17 + $0x548] sm:$0xff]
        %v4504 = vld [vmem:[#allocation17 + $0x550] sm:$0xff]
        %v4505 = vld [vmem:[#allocation17 + $0x558] sm:$0xf]
        %v4506 = vld [vmem:[#allocation17 + $0x55c] sm:$0xff]
        %v4507 = vld [vmem:[#allocation17 + $0x564] sm:$0xff]
        %v4508 = vld [vmem:[#allocation17 + $0x56c] sm:$0xff]
        %v4509 = vld [vmem:[#allocation17 + $0x574] sm:$0xf]
        %v4510 = vld [vmem:[#allocation17 + $0x578] sm:$0xff]
        %v4511 = vld [vmem:[#allocation17 + $0x580] sm:$0xff]
        %v4512 = vld [vmem:[#allocation17 + $0x588] sm:$0xff]
        %v4513 = vld [vmem:[#allocation17 + $0x590] sm:$0xf]
        %v4514 = vld [vmem:[#allocation17 + $0x594] sm:$0xff]
        %v4515 = vld [vmem:[#allocation17 + $0x59c] sm:$0xff]
        %v4516 = vld [vmem:[#allocation17 + $0x5a4] sm:$0xff]
        %v4517 = vld [vmem:[#allocation17 + $0x5ac] sm:$0xf]
        %v4518 = vld [vmem:[#allocation17 + $0x5b0] sm:$0xff]
        %v4519 = vld [vmem:[#allocation17 + $0x5b8] sm:$0xff]
        %v4520 = vld [vmem:[#allocation17 + $0x5c0] sm:$0xff]
        %v4521 = vld [vmem:[#allocation17 + $0x5c8] sm:$0xf]
        %v4522 = vld [vmem:[#allocation17 + $0x5cc] sm:$0xff]
        %v4523 = vld [vmem:[#allocation17 + $0x5d4] sm:$0xff]
        %v4524 = vld [vmem:[#allocation17 + $0x5dc] sm:$0xff]
        %v4525 = vld [vmem:[#allocation17 + $0x5e4] sm:$0xf]
        %v4526 = vld [vmem:[#allocation17 + $0x5e8] sm:$0xff]
        %v4527 = vld [vmem:[#allocation17 + $0x5f0] sm:$0xff]
        %v4528 = vld [vmem:[#allocation17 + $0x5f8] sm:$0xff]
        %v4529 = vld [vmem:[#allocation17 + $0x600] sm:$0xf]
        %v4530 = vld [vmem:[#allocation17 + $0x604] sm:$0xff]
        %v4531 = vld [vmem:[#allocation17 + $0x60c] sm:$0xff]
        %v4532 = vld [vmem:[#allocation17 + $0x614] sm:$0xff]
        %v4533 = vld [vmem:[#allocation17 + $0x61c] sm:$0xf]
        %v4534 = vld [vmem:[#allocation17 + $0x620] sm:$0xff]
        %v4535 = vld [vmem:[#allocation17 + $0x628] sm:$0xff]
        %v4536 = vld [vmem:[#allocation17 + $0x630] sm:$0xff]
        %v4537 = vld [vmem:[#allocation17 + $0x638] sm:$0xf]
        %v4538 = vld [vmem:[#allocation17 + $0x63c] sm:$0xff]
        %v4539 = vld [vmem:[#allocation17 + $0x644] sm:$0xff]
        %v4540 = vld [vmem:[#allocation17 + $0x64c] sm:$0xff]
        %v4541 = vld [vmem:[#allocation17 + $0x654] sm:$0xf]
        %v4542 = vld [vmem:[#allocation17 + $0x658] sm:$0xff]
        %v4543 = vld [vmem:[#allocation17 + $0x660] sm:$0xff]
        %v4544 = vld [vmem:[#allocation17 + $0x668] sm:$0xff]
        %v4545 = vld [vmem:[#allocation17 + $0x670] sm:$0xf]
        %v4546 = vld [vmem:[#allocation17 + $0x674] sm:$0xff]
        %v4547 = vld [vmem:[#allocation17 + $0x67c] sm:$0xff]
        %v4548 = vld [vmem:[#allocation17 + $0x684] sm:$0xff]
        %v4549 = vld [vmem:[#allocation17 + $0x68c] sm:$0xf]
        %v4550 = vld [vmem:[#allocation17 + $0x690] sm:$0xff]
        %v4551 = vld [vmem:[#allocation17 + $0x698] sm:$0xff]
        %v4552 = vld [vmem:[#allocation17 + $0x6a0] sm:$0xff]
        %v4553 = vld [vmem:[#allocation17 + $0x6a8] sm:$0xf]
        %v4554 = vld [vmem:[#allocation17 + $0x6ac] sm:$0xff]
        %v4555 = vld [vmem:[#allocation17 + $0x6b4] sm:$0xff]
        %v4556 = vld [vmem:[#allocation17 + $0x6bc] sm:$0xff]
        %v4557 = vld [vmem:[#allocation17 + $0x6c4] sm:$0xf]
        %v4558 = vld [vmem:[#allocation17 + $0x6c8] sm:$0xff]
        %v4559 = vld [vmem:[#allocation17 + $0x6d0] sm:$0xff]
        %v4560 = vld [vmem:[#allocation17 + $0x6d8] sm:$0xff]
        %v4561 = vld [vmem:[#allocation17 + $0x6e0] sm:$0xf]
        %v4562 = vld [vmem:[#allocation17 + $0x6e4] sm:$0xff]
        %v4563 = vld [vmem:[#allocation17 + $0x6ec] sm:$0xff]
        %v4564 = vld [vmem:[#allocation17 + $0x6f4] sm:$0xff]
        %v4565 = vld [vmem:[#allocation17 + $0x6fc] sm:$0xf]
        %v4566 = vld [vmem:[%s16] sm:$0xff]
        %v4568 = vlaneseq
        %v4569 = vshrl.u32 %v4568, 7
        %v4570 = vsub.s32 0, %v4569
        %v4571 = vrot.slane %v4566, %v4570
        %v4572 = vlaneseq
        %v4573 = vshrl.u32 %v4572, 7
        %v4574 = vsub.s32 1, %v4573
        %v4575 = vrot.slane %v4566, %v4574
        %v4576 = vlaneseq
        %v4577 = vshrl.u32 %v4576, 7
        %v4578 = vsub.s32 2, %v4577
        %v4579 = vrot.slane %v4566, %v4578
        %v4580 = vlaneseq
        %v4581 = vshrl.u32 %v4580, 7
        %v4582 = vsub.s32 3, %v4581
        %v4583 = vrot.slane %v4566, %v4582
        %v4584 = vlaneseq
        %v4585 = vshrl.u32 %v4584, 7
        %v4586 = vsub.s32 4, %v4585
        %v4587 = vrot.slane %v4566, %v4586
        %v4588 = vlaneseq
        %v4589 = vshrl.u32 %v4588, 7
        %v4590 = vsub.s32 5, %v4589
        %v4591 = vrot.slane %v4566, %v4590
        %v4592 = vlaneseq
        %v4593 = vshrl.u32 %v4592, 7
        %v4594 = vsub.s32 6, %v4593
        %v4595 = vrot.slane %v4566, %v4594
        %v4859 = vunpack.c.l.b16 %v4310
        %v4860 = vunpack.c.h.b16 %v4310
        %v4861 = vunpack.c.l.b16 %v4311
        %v4862 = vunpack.c.h.b16 %v4311
        %v4863 = vunpack.c.l.b16 %v4312
        %v4864 = vunpack.c.h.b16 %v4312
        %v4865 = vunpack.c.l.b16 %v4313
        %v4866 = vunpack.c.l.b16 %v4314
        %v4867 = vunpack.c.h.b16 %v4314
        %v4868 = vunpack.c.l.b16 %v4315
        %v4869 = vunpack.c.h.b16 %v4315
        %v4870 = vunpack.c.l.b16 %v4316
        %v4871 = vunpack.c.h.b16 %v4316
        %v4872 = vunpack.c.l.b16 %v4317
        %v4873 = vunpack.c.l.b16 %v4318
        %v4874 = vunpack.c.h.b16 %v4318
        %v4875 = vunpack.c.l.b16 %v4319
        %v4876 = vunpack.c.h.b16 %v4319
        %v4877 = vunpack.c.l.b16 %v4320
        %v4878 = vunpack.c.h.b16 %v4320
        %v4879 = vunpack.c.l.b16 %v4321
        %v4880 = vunpack.c.l.b16 %v4322
        %v4881 = vunpack.c.h.b16 %v4322
        %v4882 = vunpack.c.l.b16 %v4323
        %v4883 = vunpack.c.h.b16 %v4323
        %v4884 = vunpack.c.l.b16 %v4324
        %v4885 = vunpack.c.h.b16 %v4324
        %v4886 = vunpack.c.l.b16 %v4325
        %v4887 = vunpack.c.l.b16 %v4326
        %v4888 = vunpack.c.h.b16 %v4326
        %v4889 = vunpack.c.l.b16 %v4327
        %v4890 = vunpack.c.h.b16 %v4327
        %v4891 = vunpack.c.l.b16 %v4328
        %v4892 = vunpack.c.h.b16 %v4328
        %v4893 = vunpack.c.l.b16 %v4329
        %v4894 = vunpack.c.l.b16 %v4330
        %v4895 = vunpack.c.h.b16 %v4330
        %v4896 = vunpack.c.l.b16 %v4331
        %v4897 = vunpack.c.h.b16 %v4331
        %v4898 = vunpack.c.l.b16 %v4332
        %v4899 = vunpack.c.h.b16 %v4332
        %v4900 = vunpack.c.l.b16 %v4333
        %v4901 = vunpack.c.l.b16 %v4334
        %v4902 = vunpack.c.h.b16 %v4334
        %v4903 = vunpack.c.l.b16 %v4335
        %v4904 = vunpack.c.h.b16 %v4335
        %v4905 = vunpack.c.l.b16 %v4336
        %v4906 = vunpack.c.h.b16 %v4336
        %v4907 = vunpack.c.l.b16 %v4337
        %v4908 = vunpack.c.l.b16 %v4338
        %v4909 = vunpack.c.h.b16 %v4338
        %v4910 = vunpack.c.l.b16 %v4339
        %v4911 = vunpack.c.h.b16 %v4339
        %v4912 = vunpack.c.l.b16 %v4340
        %v4913 = vunpack.c.h.b16 %v4340
        %v4914 = vunpack.c.l.b16 %v4341
        %v4915 = vunpack.c.l.b16 %v4342
        %v4916 = vunpack.c.h.b16 %v4342
        %v4917 = vunpack.c.l.b16 %v4343
        %v4918 = vunpack.c.h.b16 %v4343
        %v4919 = vunpack.c.l.b16 %v4344
        %v4920 = vunpack.c.h.b16 %v4344
        %v4921 = vunpack.c.l.b16 %v4345
        %v4922 = vunpack.c.l.b16 %v4346
        %v4923 = vunpack.c.h.b16 %v4346
        %v4924 = vunpack.c.l.b16 %v4347
        %v4925 = vunpack.c.h.b16 %v4347
        %v4926 = vunpack.c.l.b16 %v4348
        %v4927 = vunpack.c.h.b16 %v4348
        %v4928 = vunpack.c.l.b16 %v4349
        %v4929 = vunpack.c.l.b16 %v4350
        %v4930 = vunpack.c.h.b16 %v4350
        %v4931 = vunpack.c.l.b16 %v4351
        %v4932 = vunpack.c.h.b16 %v4351
        %v4933 = vunpack.c.l.b16 %v4352
        %v4934 = vunpack.c.h.b16 %v4352
        %v4935 = vunpack.c.l.b16 %v4353
        %v4936 = vunpack.c.l.b16 %v4354
        %v4937 = vunpack.c.h.b16 %v4354
        %v4938 = vunpack.c.l.b16 %v4355
        %v4939 = vunpack.c.h.b16 %v4355
        %v4940 = vunpack.c.l.b16 %v4356
        %v4941 = vunpack.c.h.b16 %v4356
        %v4942 = vunpack.c.l.b16 %v4357
        %v4943 = vunpack.c.l.b16 %v4358
        %v4944 = vunpack.c.h.b16 %v4358
        %v4945 = vunpack.c.l.b16 %v4359
        %v4946 = vunpack.c.h.b16 %v4359
        %v4947 = vunpack.c.l.b16 %v4360
        %v4948 = vunpack.c.h.b16 %v4360
        %v4949 = vunpack.c.l.b16 %v4361
        %v4950 = vunpack.c.l.b16 %v4362
        %v4951 = vunpack.c.h.b16 %v4362
        %v4952 = vunpack.c.l.b16 %v4363
        %v4953 = vunpack.c.h.b16 %v4363
        %v4954 = vunpack.c.l.b16 %v4364
        %v4955 = vunpack.c.h.b16 %v4364
        %v4956 = vunpack.c.l.b16 %v4365
        %v4957 = vunpack.c.l.b16 %v4366
        %v4958 = vunpack.c.h.b16 %v4366
        %v4959 = vunpack.c.l.b16 %v4367
        %v4960 = vunpack.c.h.b16 %v4367
        %v4961 = vunpack.c.l.b16 %v4368
        %v4962 = vunpack.c.h.b16 %v4368
        %v4963 = vunpack.c.l.b16 %v4369
        %v4964 = vunpack.c.l.b16 %v4370
        %v4965 = vunpack.c.h.b16 %v4370
        %v4966 = vunpack.c.l.b16 %v4371
        %v4967 = vunpack.c.h.b16 %v4371
        %v4968 = vunpack.c.l.b16 %v4372
        %v4969 = vunpack.c.h.b16 %v4372
        %v4970 = vunpack.c.l.b16 %v4373
        %v4971 = vunpack.c.l.b16 %v4374
        %v4972 = vunpack.c.h.b16 %v4374
        %v4973 = vunpack.c.l.b16 %v4375
        %v4974 = vunpack.c.h.b16 %v4375
        %v4975 = vunpack.c.l.b16 %v4376
        %v4976 = vunpack.c.h.b16 %v4376
        %v4977 = vunpack.c.l.b16 %v4377
        %v4978 = vunpack.c.l.b16 %v4378
        %v4979 = vunpack.c.h.b16 %v4378
        %v4980 = vunpack.c.l.b16 %v4379
        %v4981 = vunpack.c.h.b16 %v4379
        %v4982 = vunpack.c.l.b16 %v4380
        %v4983 = vunpack.c.h.b16 %v4380
        %v4984 = vunpack.c.l.b16 %v4381
        %v4985 = vunpack.c.l.b16 %v4382
        %v4986 = vunpack.c.h.b16 %v4382
        %v4987 = vunpack.c.l.b16 %v4383
        %v4988 = vunpack.c.h.b16 %v4383
        %v4989 = vunpack.c.l.b16 %v4384
        %v4990 = vunpack.c.h.b16 %v4384
        %v4991 = vunpack.c.l.b16 %v4385
        %v4992 = vunpack.c.l.b16 %v4386
        %v4993 = vunpack.c.h.b16 %v4386
        %v4994 = vunpack.c.l.b16 %v4387
        %v4995 = vunpack.c.h.b16 %v4387
        %v4996 = vunpack.c.l.b16 %v4388
        %v4997 = vunpack.c.h.b16 %v4388
        %v4998 = vunpack.c.l.b16 %v4389
        %v4999 = vunpack.c.l.b16 %v4390
        %v5000 = vunpack.c.h.b16 %v4390
        %v5001 = vunpack.c.l.b16 %v4391
        %v5002 = vunpack.c.h.b16 %v4391
        %v5003 = vunpack.c.l.b16 %v4392
        %v5004 = vunpack.c.h.b16 %v4392
        %v5005 = vunpack.c.l.b16 %v4393
        %v5006 = vunpack.c.l.b16 %v4394
        %v5007 = vunpack.c.h.b16 %v4394
        %v5008 = vunpack.c.l.b16 %v4395
        %v5009 = vunpack.c.h.b16 %v4395
        %v5010 = vunpack.c.l.b16 %v4396
        %v5011 = vunpack.c.h.b16 %v4396
        %v5012 = vunpack.c.l.b16 %v4397
        %v5013 = vunpack.c.l.b16 %v4398
        %v5014 = vunpack.c.h.b16 %v4398
        %v5015 = vunpack.c.l.b16 %v4399
        %v5016 = vunpack.c.h.b16 %v4399
        %v5017 = vunpack.c.l.b16 %v4400
        %v5018 = vunpack.c.h.b16 %v4400
        %v5019 = vunpack.c.l.b16 %v4401
        %v5020 = vunpack.c.l.b16 %v4402
        %v5021 = vunpack.c.h.b16 %v4402
        %v5022 = vunpack.c.l.b16 %v4403
        %v5023 = vunpack.c.h.b16 %v4403
        %v5024 = vunpack.c.l.b16 %v4404
        %v5025 = vunpack.c.h.b16 %v4404
        %v5026 = vunpack.c.l.b16 %v4405
        %v5027 = vunpack.c.l.b16 %v4406
        %v5028 = vunpack.c.h.b16 %v4406
        %v5029 = vunpack.c.l.b16 %v4407
        %v5030 = vunpack.c.h.b16 %v4407
        %v5031 = vunpack.c.l.b16 %v4408
        %v5032 = vunpack.c.h.b16 %v4408
        %v5033 = vunpack.c.l.b16 %v4409
        %v5034 = vunpack.c.l.b16 %v4410
        %v5035 = vunpack.c.h.b16 %v4410
        %v5036 = vunpack.c.l.b16 %v4411
        %v5037 = vunpack.c.h.b16 %v4411
        %v5038 = vunpack.c.l.b16 %v4412
        %v5039 = vunpack.c.h.b16 %v4412
        %v5040 = vunpack.c.l.b16 %v4413
        %v5041 = vunpack.c.l.b16 %v4414
        %v5042 = vunpack.c.h.b16 %v4414
        %v5043 = vunpack.c.l.b16 %v4415
        %v5044 = vunpack.c.h.b16 %v4415
        %v5045 = vunpack.c.l.b16 %v4416
        %v5046 = vunpack.c.h.b16 %v4416
        %v5047 = vunpack.c.l.b16 %v4417
        %v5048 = vunpack.c.l.b16 %v4418
        %v5049 = vunpack.c.h.b16 %v4418
        %v5050 = vunpack.c.l.b16 %v4419
        %v5051 = vunpack.c.h.b16 %v4419
        %v5052 = vunpack.c.l.b16 %v4420
        %v5053 = vunpack.c.h.b16 %v4420
        %v5054 = vunpack.c.l.b16 %v4421
        %v5055 = vunpack.c.l.b16 %v4422
        %v5056 = vunpack.c.h.b16 %v4422
        %v5057 = vunpack.c.l.b16 %v4423
        %v5058 = vunpack.c.h.b16 %v4423
        %v5059 = vunpack.c.l.b16 %v4424
        %v5060 = vunpack.c.h.b16 %v4424
        %v5061 = vunpack.c.l.b16 %v4425
        %v5062 = vunpack.c.l.b16 %v4426
        %v5063 = vunpack.c.h.b16 %v4426
        %v5064 = vunpack.c.l.b16 %v4427
        %v5065 = vunpack.c.h.b16 %v4427
        %v5066 = vunpack.c.l.b16 %v4428
        %v5067 = vunpack.c.h.b16 %v4428
        %v5068 = vunpack.c.l.b16 %v4429
        %v5069 = vunpack.c.l.b16 %v4430
        %v5070 = vunpack.c.h.b16 %v4430
        %v5071 = vunpack.c.l.b16 %v4431
        %v5072 = vunpack.c.h.b16 %v4431
        %v5073 = vunpack.c.l.b16 %v4432
        %v5074 = vunpack.c.h.b16 %v4432
        %v5075 = vunpack.c.l.b16 %v4433
        %v5076 = vunpack.c.l.b16 %v4434
        %v5077 = vunpack.c.h.b16 %v4434
        %v5078 = vunpack.c.l.b16 %v4435
        %v5079 = vunpack.c.h.b16 %v4435
        %v5080 = vunpack.c.l.b16 %v4436
        %v5081 = vunpack.c.h.b16 %v4436
        %v5082 = vunpack.c.l.b16 %v4437
        %v5083 = vunpack.c.l.b16 %v4438
        %v5084 = vunpack.c.h.b16 %v4438
        %v5085 = vunpack.c.l.b16 %v4439
        %v5086 = vunpack.c.h.b16 %v4439
        %v5087 = vunpack.c.l.b16 %v4440
        %v5088 = vunpack.c.h.b16 %v4440
        %v5089 = vunpack.c.l.b16 %v4441
        %v5090 = vunpack.c.l.b16 %v4442
        %v5091 = vunpack.c.h.b16 %v4442
        %v5092 = vunpack.c.l.b16 %v4443
        %v5093 = vunpack.c.h.b16 %v4443
        %v5094 = vunpack.c.l.b16 %v4444
        %v5095 = vunpack.c.h.b16 %v4444
        %v5096 = vunpack.c.l.b16 %v4445
        %v5097 = vunpack.c.l.b16 %v4446
        %v5098 = vunpack.c.h.b16 %v4446
        %v5099 = vunpack.c.l.b16 %v4447
        %v5100 = vunpack.c.h.b16 %v4447
        %v5101 = vunpack.c.l.b16 %v4448
        %v5102 = vunpack.c.h.b16 %v4448
        %v5103 = vunpack.c.l.b16 %v4449
        %v5104 = vunpack.c.l.b16 %v4450
        %v5105 = vunpack.c.h.b16 %v4450
        %v5106 = vunpack.c.l.b16 %v4451
        %v5107 = vunpack.c.h.b16 %v4451
        %v5108 = vunpack.c.l.b16 %v4452
        %v5109 = vunpack.c.h.b16 %v4452
        %v5110 = vunpack.c.l.b16 %v4453
        %v5111 = vunpack.c.l.b16 %v4454
        %v5112 = vunpack.c.h.b16 %v4454
        %v5113 = vunpack.c.l.b16 %v4455
        %v5114 = vunpack.c.h.b16 %v4455
        %v5115 = vunpack.c.l.b16 %v4456
        %v5116 = vunpack.c.h.b16 %v4456
        %v5117 = vunpack.c.l.b16 %v4457
        %v5118 = vunpack.c.l.b16 %v4458
        %v5119 = vunpack.c.h.b16 %v4458
        %v5120 = vunpack.c.l.b16 %v4459
        %v5121 = vunpack.c.h.b16 %v4459
        %v5122 = vunpack.c.l.b16 %v4460
        %v5123 = vunpack.c.h.b16 %v4460
        %v5124 = vunpack.c.l.b16 %v4461
        %v5125 = vunpack.c.l.b16 %v4462
        %v5126 = vunpack.c.h.b16 %v4462
        %v5127 = vunpack.c.l.b16 %v4463
        %v5128 = vunpack.c.h.b16 %v4463
        %v5129 = vunpack.c.l.b16 %v4464
        %v5130 = vunpack.c.h.b16 %v4464
        %v5131 = vunpack.c.l.b16 %v4465
        %v5132 = vunpack.c.l.b16 %v4466
        %v5133 = vunpack.c.h.b16 %v4466
        %v5134 = vunpack.c.l.b16 %v4467
        %v5135 = vunpack.c.h.b16 %v4467
        %v5136 = vunpack.c.l.b16 %v4468
        %v5137 = vunpack.c.h.b16 %v4468
        %v5138 = vunpack.c.l.b16 %v4469
        %v5139 = vunpack.c.l.b16 %v4470
        %v5140 = vunpack.c.h.b16 %v4470
        %v5141 = vunpack.c.l.b16 %v4471
        %v5142 = vunpack.c.h.b16 %v4471
        %v5143 = vunpack.c.l.b16 %v4472
        %v5144 = vunpack.c.h.b16 %v4472
        %v5145 = vunpack.c.l.b16 %v4473
        %v5146 = vunpack.c.l.b16 %v4474
        %v5147 = vunpack.c.h.b16 %v4474
        %v5148 = vunpack.c.l.b16 %v4475
        %v5149 = vunpack.c.h.b16 %v4475
        %v5150 = vunpack.c.l.b16 %v4476
        %v5151 = vunpack.c.h.b16 %v4476
        %v5152 = vunpack.c.l.b16 %v4477
        %v5153 = vunpack.c.l.b16 %v4478
        %v5154 = vunpack.c.h.b16 %v4478
        %v5155 = vunpack.c.l.b16 %v4479
        %v5156 = vunpack.c.h.b16 %v4479
        %v5157 = vunpack.c.l.b16 %v4480
        %v5158 = vunpack.c.h.b16 %v4480
        %v5159 = vunpack.c.l.b16 %v4481
        %v5160 = vunpack.c.l.b16 %v4482
        %v5161 = vunpack.c.h.b16 %v4482
        %v5162 = vunpack.c.l.b16 %v4483
        %v5163 = vunpack.c.h.b16 %v4483
        %v5164 = vunpack.c.l.b16 %v4484
        %v5165 = vunpack.c.h.b16 %v4484
        %v5166 = vunpack.c.l.b16 %v4485
        %v5167 = vunpack.c.l.b16 %v4486
        %v5168 = vunpack.c.h.b16 %v4486
        %v5169 = vunpack.c.l.b16 %v4487
        %v5170 = vunpack.c.h.b16 %v4487
        %v5171 = vunpack.c.l.b16 %v4488
        %v5172 = vunpack.c.h.b16 %v4488
        %v5173 = vunpack.c.l.b16 %v4489
        %v5174 = vunpack.c.l.b16 %v4490
        %v5175 = vunpack.c.h.b16 %v4490
        %v5176 = vunpack.c.l.b16 %v4491
        %v5177 = vunpack.c.h.b16 %v4491
        %v5178 = vunpack.c.l.b16 %v4492
        %v5179 = vunpack.c.h.b16 %v4492
        %v5180 = vunpack.c.l.b16 %v4493
        %v5181 = vunpack.c.l.b16 %v4494
        %v5182 = vunpack.c.h.b16 %v4494
        %v5183 = vunpack.c.l.b16 %v4495
        %v5184 = vunpack.c.h.b16 %v4495
        %v5185 = vunpack.c.l.b16 %v4496
        %v5186 = vunpack.c.h.b16 %v4496
        %v5187 = vunpack.c.l.b16 %v4497
        %v5188 = vunpack.c.l.b16 %v4498
        %v5189 = vunpack.c.h.b16 %v4498
        %v5190 = vunpack.c.l.b16 %v4499
        %v5191 = vunpack.c.h.b16 %v4499
        %v5192 = vunpack.c.l.b16 %v4500
        %v5193 = vunpack.c.h.b16 %v4500
        %v5194 = vunpack.c.l.b16 %v4501
        %v5195 = vunpack.c.l.b16 %v4502
        %v5196 = vunpack.c.h.b16 %v4502
        %v5197 = vunpack.c.l.b16 %v4503
        %v5198 = vunpack.c.h.b16 %v4503
        %v5199 = vunpack.c.l.b16 %v4504
        %v5200 = vunpack.c.h.b16 %v4504
        %v5201 = vunpack.c.l.b16 %v4505
        %v5202 = vunpack.c.l.b16 %v4506
        %v5203 = vunpack.c.h.b16 %v4506
        %v5204 = vunpack.c.l.b16 %v4507
        %v5205 = vunpack.c.h.b16 %v4507
        %v5206 = vunpack.c.l.b16 %v4508
        %v5207 = vunpack.c.h.b16 %v4508
        %v5208 = vunpack.c.l.b16 %v4509
        %v5209 = vunpack.c.l.b16 %v4510
        %v5210 = vunpack.c.h.b16 %v4510
        %v5211 = vunpack.c.l.b16 %v4511
        %v5212 = vunpack.c.h.b16 %v4511
        %v5213 = vunpack.c.l.b16 %v4512
        %v5214 = vunpack.c.h.b16 %v4512
        %v5215 = vunpack.c.l.b16 %v4513
        %v5216 = vunpack.c.l.b16 %v4514
        %v5217 = vunpack.c.h.b16 %v4514
        %v5218 = vunpack.c.l.b16 %v4515
        %v5219 = vunpack.c.h.b16 %v4515
        %v5220 = vunpack.c.l.b16 %v4516
        %v5221 = vunpack.c.h.b16 %v4516
        %v5222 = vunpack.c.l.b16 %v4517
        %v5223 = vunpack.c.l.b16 %v4518
        %v5224 = vunpack.c.h.b16 %v4518
        %v5225 = vunpack.c.l.b16 %v4519
        %v5226 = vunpack.c.h.b16 %v4519
        %v5227 = vunpack.c.l.b16 %v4520
        %v5228 = vunpack.c.h.b16 %v4520
        %v5229 = vunpack.c.l.b16 %v4521
        %v5230 = vunpack.c.l.b16 %v4522
        %v5231 = vunpack.c.h.b16 %v4522
        %v5232 = vunpack.c.l.b16 %v4523
        %v5233 = vunpack.c.h.b16 %v4523
        %v5234 = vunpack.c.l.b16 %v4524
        %v5235 = vunpack.c.h.b16 %v4524
        %v5236 = vunpack.c.l.b16 %v4525
        %v5237 = vunpack.c.l.b16 %v4526
        %v5238 = vunpack.c.h.b16 %v4526
        %v5239 = vunpack.c.l.b16 %v4527
        %v5240 = vunpack.c.h.b16 %v4527
        %v5241 = vunpack.c.l.b16 %v4528
        %v5242 = vunpack.c.h.b16 %v4528
        %v5243 = vunpack.c.l.b16 %v4529
        %v5244 = vunpack.c.l.b16 %v4530
        %v5245 = vunpack.c.h.b16 %v4530
        %v5246 = vunpack.c.l.b16 %v4531
        %v5247 = vunpack.c.h.b16 %v4531
        %v5248 = vunpack.c.l.b16 %v4532
        %v5249 = vunpack.c.h.b16 %v4532
        %v5250 = vunpack.c.l.b16 %v4533
        %v5251 = vunpack.c.l.b16 %v4534
        %v5252 = vunpack.c.h.b16 %v4534
        %v5253 = vunpack.c.l.b16 %v4535
        %v5254 = vunpack.c.h.b16 %v4535
        %v5255 = vunpack.c.l.b16 %v4536
        %v5256 = vunpack.c.h.b16 %v4536
        %v5257 = vunpack.c.l.b16 %v4537
        %v5258 = vunpack.c.l.b16 %v4538
        %v5259 = vunpack.c.h.b16 %v4538
        %v5260 = vunpack.c.l.b16 %v4539
        %v5261 = vunpack.c.h.b16 %v4539
        %v5262 = vunpack.c.l.b16 %v4540
        %v5263 = vunpack.c.h.b16 %v4540
        %v5264 = vunpack.c.l.b16 %v4541
        %v5265 = vunpack.c.l.b16 %v4542
        %v5266 = vunpack.c.h.b16 %v4542
        %v5267 = vunpack.c.l.b16 %v4543
        %v5268 = vunpack.c.h.b16 %v4543
        %v5269 = vunpack.c.l.b16 %v4544
        %v5270 = vunpack.c.h.b16 %v4544
        %v5271 = vunpack.c.l.b16 %v4545
        %v5272 = vunpack.c.l.b16 %v4546
        %v5273 = vunpack.c.h.b16 %v4546
        %v5274 = vunpack.c.l.b16 %v4547
        %v5275 = vunpack.c.h.b16 %v4547
        %v5276 = vunpack.c.l.b16 %v4548
        %v5277 = vunpack.c.h.b16 %v4548
        %v5278 = vunpack.c.l.b16 %v4549
        %v5279 = vunpack.c.l.b16 %v4550
        %v5280 = vunpack.c.h.b16 %v4550
        %v5281 = vunpack.c.l.b16 %v4551
        %v5282 = vunpack.c.h.b16 %v4551
        %v5283 = vunpack.c.l.b16 %v4552
        %v5284 = vunpack.c.h.b16 %v4552
        %v5285 = vunpack.c.l.b16 %v4553
        %v5286 = vunpack.c.l.b16 %v4554
        %v5287 = vunpack.c.h.b16 %v4554
        %v5288 = vunpack.c.l.b16 %v4555
        %v5289 = vunpack.c.h.b16 %v4555
        %v5290 = vunpack.c.l.b16 %v4556
        %v5291 = vunpack.c.h.b16 %v4556
        %v5292 = vunpack.c.l.b16 %v4557
        %v5293 = vunpack.c.l.b16 %v4558
        %v5294 = vunpack.c.h.b16 %v4558
        %v5295 = vunpack.c.l.b16 %v4559
        %v5296 = vunpack.c.h.b16 %v4559
        %v5297 = vunpack.c.l.b16 %v4560
        %v5298 = vunpack.c.h.b16 %v4560
        %v5299 = vunpack.c.l.b16 %v4561
        %v5300 = vunpack.c.l.b16 %v4562
        %v5301 = vunpack.c.h.b16 %v4562
        %v5302 = vunpack.c.l.b16 %v4563
        %v5303 = vunpack.c.h.b16 %v4563
        %v5304 = vunpack.c.l.b16 %v4564
        %v5305 = vunpack.c.h.b16 %v4564
        %v5306 = vunpack.c.l.b16 %v4565
        %v5307 = vpack.c.b16 %v4866, %v4859
        %v5308 = vpack.c.b16 %v4867, %v4860
        %v5309 = vpack.c.b16 %v4868, %v4861
        %v5310 = vpack.c.b16 %v4869, %v4862
        %v5311 = vpack.c.b16 %v4870, %v4863
        %v5312 = vpack.c.b16 %v4871, %v4864
        %v5313 = vpack.c.b16 %v4872, %v4865
        %v5314 = vpack.c.b16 %v4880, %v4873
        %v5315 = vpack.c.b16 %v4881, %v4874
        %v5316 = vpack.c.b16 %v4882, %v4875
        %v5317 = vpack.c.b16 %v4883, %v4876
        %v5318 = vpack.c.b16 %v4884, %v4877
        %v5319 = vpack.c.b16 %v4885, %v4878
        %v5320 = vpack.c.b16 %v4886, %v4879
        %v5321 = vpack.c.b16 %v4894, %v4887
        %v5322 = vpack.c.b16 %v4895, %v4888
        %v5323 = vpack.c.b16 %v4896, %v4889
        %v5324 = vpack.c.b16 %v4897, %v4890
        %v5325 = vpack.c.b16 %v4898, %v4891
        %v5326 = vpack.c.b16 %v4899, %v4892
        %v5327 = vpack.c.b16 %v4900, %v4893
        %v5328 = vpack.c.b16 %v4908, %v4901
        %v5329 = vpack.c.b16 %v4909, %v4902
        %v5330 = vpack.c.b16 %v4910, %v4903
        %v5331 = vpack.c.b16 %v4911, %v4904
        %v5332 = vpack.c.b16 %v4912, %v4905
        %v5333 = vpack.c.b16 %v4913, %v4906
        %v5334 = vpack.c.b16 %v4914, %v4907
        %v5335 = vpack.c.b16 %v4922, %v4915
        %v5336 = vpack.c.b16 %v4923, %v4916
        %v5337 = vpack.c.b16 %v4924, %v4917
        %v5338 = vpack.c.b16 %v4925, %v4918
        %v5339 = vpack.c.b16 %v4926, %v4919
        %v5340 = vpack.c.b16 %v4927, %v4920
        %v5341 = vpack.c.b16 %v4928, %v4921
        %v5342 = vpack.c.b16 %v4936, %v4929
        %v5343 = vpack.c.b16 %v4937, %v4930
        %v5344 = vpack.c.b16 %v4938, %v4931
        %v5345 = vpack.c.b16 %v4939, %v4932
        %v5346 = vpack.c.b16 %v4940, %v4933
        %v5347 = vpack.c.b16 %v4941, %v4934
        %v5348 = vpack.c.b16 %v4942, %v4935
        %v5349 = vpack.c.b16 %v4950, %v4943
        %v5350 = vpack.c.b16 %v4951, %v4944
        %v5351 = vpack.c.b16 %v4952, %v4945
        %v5352 = vpack.c.b16 %v4953, %v4946
        %v5353 = vpack.c.b16 %v4954, %v4947
        %v5354 = vpack.c.b16 %v4955, %v4948
        %v5355 = vpack.c.b16 %v4956, %v4949
        %v5356 = vpack.c.b16 %v4964, %v4957
        %v5357 = vpack.c.b16 %v4965, %v4958
        %v5358 = vpack.c.b16 %v4966, %v4959
        %v5359 = vpack.c.b16 %v4967, %v4960
        %v5360 = vpack.c.b16 %v4968, %v4961
        %v5361 = vpack.c.b16 %v4969, %v4962
        %v5362 = vpack.c.b16 %v4970, %v4963
        %v5363 = vpack.c.b16 %v4978, %v4971
        %v5364 = vpack.c.b16 %v4979, %v4972
        %v5365 = vpack.c.b16 %v4980, %v4973
        %v5366 = vpack.c.b16 %v4981, %v4974
        %v5367 = vpack.c.b16 %v4982, %v4975
        %v5368 = vpack.c.b16 %v4983, %v4976
        %v5369 = vpack.c.b16 %v4984, %v4977
        %v5370 = vpack.c.b16 %v4992, %v4985
        %v5371 = vpack.c.b16 %v4993, %v4986
        %v5372 = vpack.c.b16 %v4994, %v4987
        %v5373 = vpack.c.b16 %v4995, %v4988
        %v5374 = vpack.c.b16 %v4996, %v4989
        %v5375 = vpack.c.b16 %v4997, %v4990
        %v5376 = vpack.c.b16 %v4998, %v4991
        %v5377 = vpack.c.b16 %v5006, %v4999
        %v5378 = vpack.c.b16 %v5007, %v5000
        %v5379 = vpack.c.b16 %v5008, %v5001
        %v5380 = vpack.c.b16 %v5009, %v5002
        %v5381 = vpack.c.b16 %v5010, %v5003
        %v5382 = vpack.c.b16 %v5011, %v5004
        %v5383 = vpack.c.b16 %v5012, %v5005
        %v5384 = vpack.c.b16 %v5020, %v5013
        %v5385 = vpack.c.b16 %v5021, %v5014
        %v5386 = vpack.c.b16 %v5022, %v5015
        %v5387 = vpack.c.b16 %v5023, %v5016
        %v5388 = vpack.c.b16 %v5024, %v5017
        %v5389 = vpack.c.b16 %v5025, %v5018
        %v5390 = vpack.c.b16 %v5026, %v5019
        %v5391 = vpack.c.b16 %v5034, %v5027
        %v5392 = vpack.c.b16 %v5035, %v5028
        %v5393 = vpack.c.b16 %v5036, %v5029
        %v5394 = vpack.c.b16 %v5037, %v5030
        %v5395 = vpack.c.b16 %v5038, %v5031
        %v5396 = vpack.c.b16 %v5039, %v5032
        %v5397 = vpack.c.b16 %v5040, %v5033
        %v5398 = vpack.c.b16 %v5048, %v5041
        %v5399 = vpack.c.b16 %v5049, %v5042
        %v5400 = vpack.c.b16 %v5050, %v5043
        %v5401 = vpack.c.b16 %v5051, %v5044
        %v5402 = vpack.c.b16 %v5052, %v5045
        %v5403 = vpack.c.b16 %v5053, %v5046
        %v5404 = vpack.c.b16 %v5054, %v5047
        %v5405 = vpack.c.b16 %v5062, %v5055
        %v5406 = vpack.c.b16 %v5063, %v5056
        %v5407 = vpack.c.b16 %v5064, %v5057
        %v5408 = vpack.c.b16 %v5065, %v5058
        %v5409 = vpack.c.b16 %v5066, %v5059
        %v5410 = vpack.c.b16 %v5067, %v5060
        %v5411 = vpack.c.b16 %v5068, %v5061
        %v5412 = vpack.c.b16 %v5076, %v5069
        %v5413 = vpack.c.b16 %v5077, %v5070
        %v5414 = vpack.c.b16 %v5078, %v5071
        %v5415 = vpack.c.b16 %v5079, %v5072
        %v5416 = vpack.c.b16 %v5080, %v5073
        %v5417 = vpack.c.b16 %v5081, %v5074
        %v5418 = vpack.c.b16 %v5082, %v5075
        %v5419 = vpack.c.b16 %v5090, %v5083
        %v5420 = vpack.c.b16 %v5091, %v5084
        %v5421 = vpack.c.b16 %v5092, %v5085
        %v5422 = vpack.c.b16 %v5093, %v5086
        %v5423 = vpack.c.b16 %v5094, %v5087
        %v5424 = vpack.c.b16 %v5095, %v5088
        %v5425 = vpack.c.b16 %v5096, %v5089
        %v5426 = vpack.c.b16 %v5104, %v5097
        %v5427 = vpack.c.b16 %v5105, %v5098
        %v5428 = vpack.c.b16 %v5106, %v5099
        %v5429 = vpack.c.b16 %v5107, %v5100
        %v5430 = vpack.c.b16 %v5108, %v5101
        %v5431 = vpack.c.b16 %v5109, %v5102
        %v5432 = vpack.c.b16 %v5110, %v5103
        %v5433 = vpack.c.b16 %v5118, %v5111
        %v5434 = vpack.c.b16 %v5119, %v5112
        %v5435 = vpack.c.b16 %v5120, %v5113
        %v5436 = vpack.c.b16 %v5121, %v5114
        %v5437 = vpack.c.b16 %v5122, %v5115
        %v5438 = vpack.c.b16 %v5123, %v5116
        %v5439 = vpack.c.b16 %v5124, %v5117
        %v5440 = vpack.c.b16 %v5132, %v5125
        %v5441 = vpack.c.b16 %v5133, %v5126
        %v5442 = vpack.c.b16 %v5134, %v5127
        %v5443 = vpack.c.b16 %v5135, %v5128
        %v5444 = vpack.c.b16 %v5136, %v5129
        %v5445 = vpack.c.b16 %v5137, %v5130
        %v5446 = vpack.c.b16 %v5138, %v5131
        %v5447 = vpack.c.b16 %v5146, %v5139
        %v5448 = vpack.c.b16 %v5147, %v5140
        %v5449 = vpack.c.b16 %v5148, %v5141
        %v5450 = vpack.c.b16 %v5149, %v5142
        %v5451 = vpack.c.b16 %v5150, %v5143
        %v5452 = vpack.c.b16 %v5151, %v5144
        %v5453 = vpack.c.b16 %v5152, %v5145
        %v5454 = vpack.c.b16 %v5160, %v5153
        %v5455 = vpack.c.b16 %v5161, %v5154
        %v5456 = vpack.c.b16 %v5162, %v5155
        %v5457 = vpack.c.b16 %v5163, %v5156
        %v5458 = vpack.c.b16 %v5164, %v5157
        %v5459 = vpack.c.b16 %v5165, %v5158
        %v5460 = vpack.c.b16 %v5166, %v5159
        %v5461 = vpack.c.b16 %v5174, %v5167
        %v5462 = vpack.c.b16 %v5175, %v5168
        %v5463 = vpack.c.b16 %v5176, %v5169
        %v5464 = vpack.c.b16 %v5177, %v5170
        %v5465 = vpack.c.b16 %v5178, %v5171
        %v5466 = vpack.c.b16 %v5179, %v5172
        %v5467 = vpack.c.b16 %v5180, %v5173
        %v5468 = vpack.c.b16 %v5188, %v5181
        %v5469 = vpack.c.b16 %v5189, %v5182
        %v5470 = vpack.c.b16 %v5190, %v5183
        %v5471 = vpack.c.b16 %v5191, %v5184
        %v5472 = vpack.c.b16 %v5192, %v5185
        %v5473 = vpack.c.b16 %v5193, %v5186
        %v5474 = vpack.c.b16 %v5194, %v5187
        %v5475 = vpack.c.b16 %v5202, %v5195
        %v5476 = vpack.c.b16 %v5203, %v5196
        %v5477 = vpack.c.b16 %v5204, %v5197
        %v5478 = vpack.c.b16 %v5205, %v5198
        %v5479 = vpack.c.b16 %v5206, %v5199
        %v5480 = vpack.c.b16 %v5207, %v5200
        %v5481 = vpack.c.b16 %v5208, %v5201
        %v5482 = vpack.c.b16 %v5216, %v5209
        %v5483 = vpack.c.b16 %v5217, %v5210
        %v5484 = vpack.c.b16 %v5218, %v5211
        %v5485 = vpack.c.b16 %v5219, %v5212
        %v5486 = vpack.c.b16 %v5220, %v5213
        %v5487 = vpack.c.b16 %v5221, %v5214
        %v5488 = vpack.c.b16 %v5222, %v5215
        %v5489 = vpack.c.b16 %v5230, %v5223
        %v5490 = vpack.c.b16 %v5231, %v5224
        %v5491 = vpack.c.b16 %v5232, %v5225
        %v5492 = vpack.c.b16 %v5233, %v5226
        %v5493 = vpack.c.b16 %v5234, %v5227
        %v5494 = vpack.c.b16 %v5235, %v5228
        %v5495 = vpack.c.b16 %v5236, %v5229
        %v5496 = vpack.c.b16 %v5244, %v5237
        %v5497 = vpack.c.b16 %v5245, %v5238
        %v5498 = vpack.c.b16 %v5246, %v5239
        %v5499 = vpack.c.b16 %v5247, %v5240
        %v5500 = vpack.c.b16 %v5248, %v5241
        %v5501 = vpack.c.b16 %v5249, %v5242
        %v5502 = vpack.c.b16 %v5250, %v5243
        %v5503 = vpack.c.b16 %v5258, %v5251
        %v5504 = vpack.c.b16 %v5259, %v5252
        %v5505 = vpack.c.b16 %v5260, %v5253
        %v5506 = vpack.c.b16 %v5261, %v5254
        %v5507 = vpack.c.b16 %v5262, %v5255
        %v5508 = vpack.c.b16 %v5263, %v5256
        %v5509 = vpack.c.b16 %v5264, %v5257
        %v5510 = vpack.c.b16 %v5272, %v5265
        %v5511 = vpack.c.b16 %v5273, %v5266
        %v5512 = vpack.c.b16 %v5274, %v5267
        %v5513 = vpack.c.b16 %v5275, %v5268
        %v5514 = vpack.c.b16 %v5276, %v5269
        %v5515 = vpack.c.b16 %v5277, %v5270
        %v5516 = vpack.c.b16 %v5278, %v5271
        %v5517 = vpack.c.b16 %v5286, %v5279
        %v5518 = vpack.c.b16 %v5287, %v5280
        %v5519 = vpack.c.b16 %v5288, %v5281
        %v5520 = vpack.c.b16 %v5289, %v5282
        %v5521 = vpack.c.b16 %v5290, %v5283
        %v5522 = vpack.c.b16 %v5291, %v5284
        %v5523 = vpack.c.b16 %v5292, %v5285
        %v5524 = vpack.c.b16 %v5300, %v5293
        %v5525 = vpack.c.b16 %v5301, %v5294
        %v5526 = vpack.c.b16 %v5302, %v5295
        %v5527 = vpack.c.b16 %v5303, %v5296
        %v5528 = vpack.c.b16 %v5304, %v5297
        %v5529 = vpack.c.b16 %v5305, %v5298
        %v5530 = vpack.c.b16 %v5306, %v5299
        %5755 = vmatprep.subr.bf16.mxu0 %v5308
        %5756 = vmatpush1.bf16.msra.mxu0 %v5307
        %5757 = vmatprep.subr.bf16.mxu0 %v5315
        %5758 = vmatpush1.bf16.msra.mxu0 %v5314
        %5759 = vmatprep.subr.bf16.mxu0 %v5322
        %5760 = vmatpush1.bf16.msra.mxu0 %v5321
        %5761 = vmatprep.subr.bf16.mxu0 %v5329
        %5762 = vmatpush1.bf16.msra.mxu0 %v5328
        %5763 = vmatprep.subr.bf16.mxu0 %v5336
        %5764 = vmatpush1.bf16.msra.mxu0 %v5335
        %5765 = vmatprep.subr.bf16.mxu0 %v5343
        %5766 = vmatpush1.bf16.msra.mxu0 %v5342
        %5767 = vmatprep.subr.bf16.mxu0 %v5350
        %5768 = vmatpush1.bf16.msra.mxu0 %v5349
        %5769 = vmatprep.subr.bf16.mxu0 %v5357
        %5770 = vmatpush1.bf16.msra.mxu0 %v5356
        %5771 = vmatprep.subr.bf16.mxu0 %v5364
        %5772 = vmatpush1.bf16.msra.mxu0 %v5363
        %5773 = vmatprep.subr.bf16.mxu0 %v5371
        %5774 = vmatpush1.bf16.msra.mxu0 %v5370
        %5775 = vmatprep.subr.bf16.mxu0 %v5378
        %5776 = vmatpush1.bf16.msra.mxu0 %v5377
        %5777 = vmatprep.subr.bf16.mxu0 %v5385
        %5778 = vmatpush1.bf16.msra.mxu0 %v5384
        %5779 = vmatprep.subr.bf16.mxu0 %v5392
        %5780 = vmatpush1.bf16.msra.mxu0 %v5391
        %5781 = vmatprep.subr.bf16.mxu0 %v5399
        %5782 = vmatpush1.bf16.msra.mxu0 %v5398
        %5783 = vmatprep.subr.bf16.mxu0 %v5406
        %5784 = vmatpush1.bf16.msra.mxu0 %v5405
        %5785 = vmatprep.subr.bf16.mxu0 %v5413
        %5786 = vmatpush1.bf16.msra.mxu0 %v5412
        %5787 = vmatprep.mubr.bf16.mxu0 %v4303
        %5788 = vmatmul.mubr.bf16.gmra.mrb[0].mxu0 %v4302
        %v5789 = vpop.f32.mrb[0].mxu0
        %v5790 = vadd.f32 %v4571, %v5789
        %v5791 = vpop.f32.mrb[0].mxu0
        %v5792 = vadd.f32 %v4575, %v5791
        %v5793 = vpop.f32.mrb[0].mxu0
        %v5794 = vadd.f32 %v4571, %v5793
        %v5795 = vpop.f32.mrb[0].mxu0
        %v5796 = vadd.f32 %v4575, %v5795
        %5797 = vmatprep.mubr.bf16.mxu0 %v4307
        %5798 = vmatmul.mubr.bf16.gmra.mrb[0].mxu0 %v4306
        %v5799 = vpop.f32.mrb[0].mxu0
        %v5800 = vadd.f32 %v4571, %v5799
        %v5801 = vpop.f32.mrb[0].mxu0
        %v5802 = vadd.f32 %v4575, %v5801
        %v5803 = vpop.f32.mrb[0].mxu0
        %v5804 = vadd.f32 %v4571, %v5803
        %v5805 = vpop.f32.mrb[0].mxu0
        %v5806 = vadd.f32 %v4575, %v5805
        %5807 = vdwg.mxu0
        %5808 = vmatprep.subr.bf16.mxu0 %v5420
        %5809 = vmatpush1.bf16.msra.mxu0 %v5419
        %5810 = vmatprep.subr.bf16.mxu0 %v5427
        %5811 = vmatpush1.bf16.msra.mxu0 %v5426
        %5812 = vmatprep.subr.bf16.mxu0 %v5434
        %5813 = vmatpush1.bf16.msra.mxu0 %v5433
        %5814 = vmatprep.subr.bf16.mxu0 %v5441
        %5815 = vmatpush1.bf16.msra.mxu0 %v5440
        %5816 = vmatprep.subr.bf16.mxu0 %v5448
        %5817 = vmatpush1.bf16.msra.mxu0 %v5447
        %5818 = vmatprep.subr.bf16.mxu0 %v5455
        %5819 = vmatpush1.bf16.msra.mxu0 %v5454
        %5820 = vmatprep.subr.bf16.mxu0 %v5462
        %5821 = vmatpush1.bf16.msra.mxu0 %v5461
        %5822 = vmatprep.subr.bf16.mxu0 %v5469
        %5823 = vmatpush1.bf16.msra.mxu0 %v5468
        %5824 = vmatprep.subr.bf16.mxu0 %v5476
        %5825 = vmatpush1.bf16.msra.mxu0 %v5475
        %5826 = vmatprep.subr.bf16.mxu0 %v5483
        %5827 = vmatpush1.bf16.msra.mxu0 %v5482
        %5828 = vmatprep.subr.bf16.mxu0 %v5490
        %5829 = vmatpush1.bf16.msra.mxu0 %v5489
        %5830 = vmatprep.subr.bf16.mxu0 %v5497
        %5831 = vmatpush1.bf16.msra.mxu0 %v5496
        %5832 = vmatprep.subr.bf16.mxu0 %v5504
        %5833 = vmatpush1.bf16.msra.mxu0 %v5503
        %5834 = vmatprep.subr.bf16.mxu0 %v5511
        %5835 = vmatpush1.bf16.msra.mxu0 %v5510
        %5836 = vmatprep.subr.bf16.mxu0 %v5518
        %5837 = vmatpush1.bf16.msra.mxu0 %v5517
        %5838 = vmatprep.subr.bf16.mxu0 %v5525
        %5839 = vmatpush1.bf16.msra.mxu0 %v5524
        %5840 = vmatprep.mubr.bf16.mxu0 %v4305
        %5841 = vmatmul.mubr.bf16.gmra.mrb[0].mxu0 %v4304
        %v5842 = vpop.f32.mrb[0].mxu0
        %v5843 = vadd.f32 %v5790, %v5842
        %v5844 = vpop.f32.mrb[0].mxu0
        %v5845 = vadd.f32 %v5792, %v5844
        %v5846 = vpop.f32.mrb[0].mxu0
        %v5847 = vadd.f32 %v5794, %v5846
        %v5848 = vpop.f32.mrb[0].mxu0
        %v5849 = vadd.f32 %v5796, %v5848
        %5850 = vmatprep.mubr.bf16.mxu0 %v4309
        %5851 = vmatmul.mubr.bf16.gmra.mrb[0].mxu0 %v4308
        %v5852 = vpop.f32.mrb[0].mxu0
        %v5853 = vadd.f32 %v5800, %v5852
        %v5854 = vpop.f32.mrb[0].mxu0
        %v5855 = vadd.f32 %v5802, %v5854
        %v5856 = vpop.f32.mrb[0].mxu0
        %v5857 = vadd.f32 %v5804, %v5856
        %v5858 = vpop.f32.mrb[0].mxu0
        %v5859 = vadd.f32 %v5806, %v5858
        %5860 = vdwg.mxu0
        %5861 = vmatprep.subr.bf16.mxu0 %v5310
        %5862 = vmatpush1.bf16.msra.mxu0 %v5309
        %5863 = vmatprep.subr.bf16.mxu0 %v5317
        %5864 = vmatpush1.bf16.msra.mxu0 %v5316
        %5865 = vmatprep.subr.bf16.mxu0 %v5324
        %5866 = vmatpush1.bf16.msra.mxu0 %v5323
        %5867 = vmatprep.subr.bf16.mxu0 %v5331
        %5868 = vmatpush1.bf16.msra.mxu0 %v5330
        %5869 = vmatprep.subr.bf16.mxu0 %v5338
        %5870 = vmatpush1.bf16.msra.mxu0 %v5337
        %5871 = vmatprep.subr.bf16.mxu0 %v5345
        %5872 = vmatpush1.bf16.msra.mxu0 %v5344
        %5873 = vmatprep.subr.bf16.mxu0 %v5352
        %5874 = vmatpush1.bf16.msra.mxu0 %v5351
        %5875 = vmatprep.subr.bf16.mxu0 %v5359
        %5876 = vmatpush1.bf16.msra.mxu0 %v5358
        %5877 = vmatprep.subr.bf16.mxu0 %v5366
        %5878 = vmatpush1.bf16.msra.mxu0 %v5365
        %5879 = vmatprep.subr.bf16.mxu0 %v5373
        %5880 = vmatpush1.bf16.msra.mxu0 %v5372
        %5881 = vmatprep.subr.bf16.mxu0 %v5380
        %5882 = vmatpush1.bf16.msra.mxu0 %v5379
        %5883 = vmatprep.subr.bf16.mxu0 %v5387
        %5884 = vmatpush1.bf16.msra.mxu0 %v5386
        %5885 = vmatprep.subr.bf16.mxu0 %v5394
        %5886 = vmatpush1.bf16.msra.mxu0 %v5393
        %5887 = vmatprep.subr.bf16.mxu0 %v5401
        %5888 = vmatpush1.bf16.msra.mxu0 %v5400
        %5889 = vmatprep.subr.bf16.mxu0 %v5408
        %5890 = vmatpush1.bf16.msra.mxu0 %v5407
        %5891 = vmatprep.subr.bf16.mxu0 %v5415
        %5892 = vmatpush1.bf16.msra.mxu0 %v5414
        %5893 = vmatprep.mubr.bf16.mxu0 %v4303
        %5894 = vmatmul.mubr.bf16.gmra.mrb[0].mxu0 %v4302
        %v5895 = vpop.f32.mrb[0].mxu0
        %v5896 = vadd.f32 %v4579, %v5895
        %v5897 = vpop.f32.mrb[0].mxu0
        %v5898 = vadd.f32 %v4583, %v5897
        %v5899 = vpop.f32.mrb[0].mxu0
        %v5900 = vadd.f32 %v4579, %v5899
        %v5901 = vpop.f32.mrb[0].mxu0
        %v5902 = vadd.f32 %v4583, %v5901
        %5903 = vmatprep.mubr.bf16.mxu0 %v4307
        %5904 = vmatmul.mubr.bf16.gmra.mrb[0].mxu0 %v4306
        %v5905 = vpop.f32.mrb[0].mxu0
        %v5906 = vadd.f32 %v4579, %v5905
        %v5907 = vpop.f32.mrb[0].mxu0
        %v5908 = vadd.f32 %v4583, %v5907
        %v5909 = vpop.f32.mrb[0].mxu0
        %v5910 = vadd.f32 %v4579, %v5909
        %v5911 = vpop.f32.mrb[0].mxu0
        %v5912 = vadd.f32 %v4583, %v5911
        %5913 = vdwg.mxu0
        %5914 = vmatprep.subr.bf16.mxu0 %v5422
        %5915 = vmatpush1.bf16.msra.mxu0 %v5421
        %5916 = vmatprep.subr.bf16.mxu0 %v5429
        %5917 = vmatpush1.bf16.msra.mxu0 %v5428
        %5918 = vmatprep.subr.bf16.mxu0 %v5436
        %5919 = vmatpush1.bf16.msra.mxu0 %v5435
        %5920 = vmatprep.subr.bf16.mxu0 %v5443
        %5921 = vmatpush1.bf16.msra.mxu0 %v5442
        %5922 = vmatprep.subr.bf16.mxu0 %v5450
        %5923 = vmatpush1.bf16.msra.mxu0 %v5449
        %5924 = vmatprep.subr.bf16.mxu0 %v5457
        %5925 = vmatpush1.bf16.msra.mxu0 %v5456
        %5926 = vmatprep.subr.bf16.mxu0 %v5464
        %5927 = vmatpush1.bf16.msra.mxu0 %v5463
        %5928 = vmatprep.subr.bf16.mxu0 %v5471
        %5929 = vmatpush1.bf16.msra.mxu0 %v5470
        %5930 = vmatprep.subr.bf16.mxu0 %v5478
        %5931 = vmatpush1.bf16.msra.mxu0 %v5477
        %5932 = vmatprep.subr.bf16.mxu0 %v5485
        %5933 = vmatpush1.bf16.msra.mxu0 %v5484
        %5934 = vmatprep.subr.bf16.mxu0 %v5492
        %5935 = vmatpush1.bf16.msra.mxu0 %v5491
        %5936 = vmatprep.subr.bf16.mxu0 %v5499
        %5937 = vmatpush1.bf16.msra.mxu0 %v5498
        %5938 = vmatprep.subr.bf16.mxu0 %v5506
        %5939 = vmatpush1.bf16.msra.mxu0 %v5505
        %5940 = vmatprep.subr.bf16.mxu0 %v5513
        %5941 = vmatpush1.bf16.msra.mxu0 %v5512
        %5942 = vmatprep.subr.bf16.mxu0 %v5520
        %5943 = vmatpush1.bf16.msra.mxu0 %v5519
        %5944 = vmatprep.subr.bf16.mxu0 %v5527
        %5945 = vmatpush1.bf16.msra.mxu0 %v5526
        %5946 = vmatprep.mubr.bf16.mxu0 %v4305
        %5947 = vmatmul.mubr.bf16.gmra.mrb[0].mxu0 %v4304
        %v5948 = vpop.f32.mrb[0].mxu0
        %v5949 = vadd.f32 %v5896, %v5948
        %v5950 = vpop.f32.mrb[0].mxu0
        %v5951 = vadd.f32 %v5898, %v5950
        %v5952 = vpop.f32.mrb[0].mxu0
        %v5953 = vadd.f32 %v5900, %v5952
        %v5954 = vpop.f32.mrb[0].mxu0
        %v5955 = vadd.f32 %v5902, %v5954
        %5956 = vmatprep.mubr.bf16.mxu0 %v4309
        %5957 = vmatmul.mubr.bf16.gmra.mrb[0].mxu0 %v4308
        %v5958 = vpop.f32.mrb[0].mxu0
        %v5959 = vadd.f32 %v5906, %v5958
        %v5960 = vpop.f32.mrb[0].mxu0
        %v5961 = vadd.f32 %v5908, %v5960
        %v5962 = vpop.f32.mrb[0].mxu0
        %v5963 = vadd.f32 %v5910, %v5962
        %v5964 = vpop.f32.mrb[0].mxu0
        %v5965 = vadd.f32 %v5912, %v5964
        %5966 = vdwg.mxu0
        %5967 = vmatprep.subr.bf16.mxu0 %v5312
        %5968 = vmatpush1.bf16.msra.mxu0 %v5311
        %5969 = vmatprep.subr.bf16.mxu0 %v5319
        %5970 = vmatpush1.bf16.msra.mxu0 %v5318
        %5971 = vmatprep.subr.bf16.mxu0 %v5326
        %5972 = vmatpush1.bf16.msra.mxu0 %v5325
        %5973 = vmatprep.subr.bf16.mxu0 %v5333
        %5974 = vmatpush1.bf16.msra.mxu0 %v5332
        %5975 = vmatprep.subr.bf16.mxu0 %v5340
        %5976 = vmatpush1.bf16.msra.mxu0 %v5339
        %5977 = vmatprep.subr.bf16.mxu0 %v5347
        %5978 = vmatpush1.bf16.msra.mxu0 %v5346
        %5979 = vmatprep.subr.bf16.mxu0 %v5354
        %5980 = vmatpush1.bf16.msra.mxu0 %v5353
        %5981 = vmatprep.subr.bf16.mxu0 %v5361
        %5982 = vmatpush1.bf16.msra.mxu0 %v5360
        %5983 = vmatprep.subr.bf16.mxu0 %v5368
        %5984 = vmatpush1.bf16.msra.mxu0 %v5367
        %5985 = vmatprep.subr.bf16.mxu0 %v5375
        %5986 = vmatpush1.bf16.msra.mxu0 %v5374
        %5987 = vmatprep.subr.bf16.mxu0 %v5382
        %5988 = vmatpush1.bf16.msra.mxu0 %v5381
        %5989 = vmatprep.subr.bf16.mxu0 %v5389
        %5990 = vmatpush1.bf16.msra.mxu0 %v5388
        %5991 = vmatprep.subr.bf16.mxu0 %v5396
        %5992 = vmatpush1.bf16.msra.mxu0 %v5395
        %5993 = vmatprep.subr.bf16.mxu0 %v5403
        %5994 = vmatpush1.bf16.msra.mxu0 %v5402
        %5995 = vmatprep.subr.bf16.mxu0 %v5410
        %5996 = vmatpush1.bf16.msra.mxu0 %v5409
        %5997 = vmatprep.subr.bf16.mxu0 %v5417
        %5998 = vmatpush1.bf16.msra.mxu0 %v5416
        %5999 = vmatprep.mubr.bf16.mxu0 %v4303
        %6000 = vmatmul.mubr.bf16.gmra.mrb[0].mxu0 %v4302
        %v6001 = vpop.f32.mrb[0].mxu0
        %v6002 = vadd.f32 %v4587, %v6001
        %v6003 = vpop.f32.mrb[0].mxu0
        %v6004 = vadd.f32 %v4591, %v6003
        %v6005 = vpop.f32.mrb[0].mxu0
        %v6006 = vadd.f32 %v4587, %v6005
        %v6007 = vpop.f32.mrb[0].mxu0
        %v6008 = vadd.f32 %v4591, %v6007
        %6009 = vmatprep.mubr.bf16.mxu0 %v4307
        %6010 = vmatmul.mubr.bf16.gmra.mrb[0].mxu0 %v4306
        %v6011 = vpop.f32.mrb[0].mxu0
        %v6012 = vadd.f32 %v4587, %v6011
        %v6013 = vpop.f32.mrb[0].mxu0
        %v6014 = vadd.f32 %v4591, %v6013
        %v6015 = vpop.f32.mrb[0].mxu0
        %v6016 = vadd.f32 %v4587, %v6015
        %v6017 = vpop.f32.mrb[0].mxu0
        %v6018 = vadd.f32 %v4591, %v6017
        %6019 = vdwg.mxu0
        %6020 = vmatprep.subr.bf16.mxu0 %v5424
        %6021 = vmatpush1.bf16.msra.mxu0 %v5423
        %6022 = vmatprep.subr.bf16.mxu0 %v5431
        %6023 = vmatpush1.bf16.msra.mxu0 %v5430
        %6024 = vmatprep.subr.bf16.mxu0 %v5438
        %6025 = vmatpush1.bf16.msra.mxu0 %v5437
        %6026 = vmatprep.subr.bf16.mxu0 %v5445
        %6027 = vmatpush1.bf16.msra.mxu0 %v5444
        %6028 = vmatprep.subr.bf16.mxu0 %v5452
        %6029 = vmatpush1.bf16.msra.mxu0 %v5451
        %6030 = vmatprep.subr.bf16.mxu0 %v5459
        %6031 = vmatpush1.bf16.msra.mxu0 %v5458
        %6032 = vmatprep.subr.bf16.mxu0 %v5466
        %6033 = vmatpush1.bf16.msra.mxu0 %v5465
        %6034 = vmatprep.subr.bf16.mxu0 %v5473
        %6035 = vmatpush1.bf16.msra.mxu0 %v5472
        %6036 = vmatprep.subr.bf16.mxu0 %v5480
        %6037 = vmatpush1.bf16.msra.mxu0 %v5479
        %6038 = vmatprep.subr.bf16.mxu0 %v5487
        %6039 = vmatpush1.bf16.msra.mxu0 %v5486
        %6040 = vmatprep.subr.bf16.mxu0 %v5494
        %6041 = vmatpush1.bf16.msra.mxu0 %v5493
        %6042 = vmatprep.subr.bf16.mxu0 %v5501
        %6043 = vmatpush1.bf16.msra.mxu0 %v5500
        %6044 = vmatprep.subr.bf16.mxu0 %v5508
        %6045 = vmatpush1.bf16.msra.mxu0 %v5507
        %6046 = vmatprep.subr.bf16.mxu0 %v5515
        %6047 = vmatpush1.bf16.msra.mxu0 %v5514
        %6048 = vmatprep.subr.bf16.mxu0 %v5522
        %6049 = vmatpush1.bf16.msra.mxu0 %v5521
        %6050 = vmatprep.subr.bf16.mxu0 %v5529
        %6051 = vmatpush1.bf16.msra.mxu0 %v5528
        %6052 = vmatprep.mubr.bf16.mxu0 %v4305
        %6053 = vmatmul.mubr.bf16.gmra.mrb[0].mxu0 %v4304
        %v6054 = vpop.f32.mrb[0].mxu0
        %v6055 = vadd.f32 %v6002, %v6054
        %v6056 = vpop.f32.mrb[0].mxu0
        %v6057 = vadd.f32 %v6004, %v6056
        %v6058 = vpop.f32.mrb[0].mxu0
        %v6059 = vadd.f32 %v6006, %v6058
        %v6060 = vpop.f32.mrb[0].mxu0
        %v6061 = vadd.f32 %v6008, %v6060
        %6062 = vmatprep.mubr.bf16.mxu0 %v4309
        %6063 = vmatmul.mubr.bf16.gmra.mrb[0].mxu0 %v4308
        %v6064 = vpop.f32.mrb[0].mxu0
        %v6065 = vadd.f32 %v6012, %v6064
        %v6066 = vpop.f32.mrb[0].mxu0
        %v6067 = vadd.f32 %v6014, %v6066
        %v6068 = vpop.f32.mrb[0].mxu0
        %v6069 = vadd.f32 %v6016, %v6068
        %v6070 = vpop.f32.mrb[0].mxu0
        %v6071 = vadd.f32 %v6018, %v6070
        %6072 = vdwg.mxu0
        %6073 = vmatprep.subr.bf16.mxu0 0
        %6074 = vmatpush1.bf16.msra.mxu0 %v5313
        %6075 = vmatprep.subr.bf16.mxu0 0
        %6076 = vmatpush1.bf16.msra.mxu0 %v5320
        %6077 = vmatprep.subr.bf16.mxu0 0
        %6078 = vmatpush1.bf16.msra.mxu0 %v5327
        %6079 = vmatprep.subr.bf16.mxu0 0
        %6080 = vmatpush1.bf16.msra.mxu0 %v5334
        %6081 = vmatprep.subr.bf16.mxu0 0
        %6082 = vmatpush1.bf16.msra.mxu0 %v5341
        %6083 = vmatprep.subr.bf16.mxu0 0
        %6084 = vmatpush1.bf16.msra.mxu0 %v5348
        %6085 = vmatprep.subr.bf16.mxu0 0
        %6086 = vmatpush1.bf16.msra.mxu0 %v5355
        %6087 = vmatprep.subr.bf16.mxu0 0
        %6088 = vmatpush1.bf16.msra.mxu0 %v5362
        %6089 = vmatprep.subr.bf16.mxu0 0
        %6090 = vmatpush1.bf16.msra.mxu0 %v5369
        %6091 = vmatprep.subr.bf16.mxu0 0
        %6092 = vmatpush1.bf16.msra.mxu0 %v5376
        %6093 = vmatprep.subr.bf16.mxu0 0
        %6094 = vmatpush1.bf16.msra.mxu0 %v5383
        %6095 = vmatprep.subr.bf16.mxu0 0
        %6096 = vmatpush1.bf16.msra.mxu0 %v5390
        %6097 = vmatprep.subr.bf16.mxu0 0
        %6098 = vmatpush1.bf16.msra.mxu0 %v5397
        %6099 = vmatprep.subr.bf16.mxu0 0
        %6100 = vmatpush1.bf16.msra.mxu0 %v5404
        %6101 = vmatprep.subr.bf16.mxu0 0
        %6102 = vmatpush1.bf16.msra.mxu0 %v5411
        %6103 = vmatprep.subr.bf16.mxu0 0
        %6104 = vmatpush1.bf16.msra.mxu0 %v5418
        %6105 = vmatprep.mubr.bf16.mxu0 %v4303
        %6106 = vmatmul.mubr.bf16.gmra.mrb[0].mxu0 %v4302
        %v6107 = vpop.f32.mrb[0].mxu0
        %v6108 = vadd.f32 %v4595, %v6107
        %v6109 = vpop.f32.mrb[0].mxu0
        %v6110 = vpop.f32.mrb[0].mxu0
        %v6111 = vadd.f32 %v4595, %v6110
        %v6112 = vpop.f32.mrb[0].mxu0
        %6113 = vmatprep.mubr.bf16.mxu0 %v4307
        %6114 = vmatmul.mubr.bf16.gmra.mrb[0].mxu0 %v4306
        %v6115 = vpop.f32.mrb[0].mxu0
        %v6116 = vadd.f32 %v4595, %v6115
        %v6117 = vpop.f32.mrb[0].mxu0
        %v6118 = vpop.f32.mrb[0].mxu0
        %v6119 = vadd.f32 %v4595, %v6118
        %v6120 = vpop.f32.mrb[0].mxu0
        %6121 = vdwg.mxu0
        %6122 = vmatprep.subr.bf16.mxu0 0
        %6123 = vmatpush1.bf16.msra.mxu0 %v5425
        %6124 = vmatprep.subr.bf16.mxu0 0
        %6125 = vmatpush1.bf16.msra.mxu0 %v5432
        %6126 = vmatprep.subr.bf16.mxu0 0
        %6127 = vmatpush1.bf16.msra.mxu0 %v5439
        %6128 = vmatprep.subr.bf16.mxu0 0
        %6129 = vmatpush1.bf16.msra.mxu0 %v5446
        %6130 = vmatprep.subr.bf16.mxu0 0
        %6131 = vmatpush1.bf16.msra.mxu0 %v5453
        %6132 = vmatprep.subr.bf16.mxu0 0
        %6133 = vmatpush1.bf16.msra.mxu0 %v5460
        %6134 = vmatprep.subr.bf16.mxu0 0
        %6135 = vmatpush1.bf16.msra.mxu0 %v5467
        %6136 = vmatprep.subr.bf16.mxu0 0
        %6137 = vmatpush1.bf16.msra.mxu0 %v5474
        %6138 = vmatprep.subr.bf16.mxu0 0
        %6139 = vmatpush1.bf16.msra.mxu0 %v5481
        %6140 = vmatprep.subr.bf16.mxu0 0
        %6141 = vmatpush1.bf16.msra.mxu0 %v5488
        %6142 = vmatprep.subr.bf16.mxu0 0
        %6143 = vmatpush1.bf16.msra.mxu0 %v5495
        %6144 = vmatprep.subr.bf16.mxu0 0
        %6145 = vmatpush1.bf16.msra.mxu0 %v5502
        %6146 = vmatprep.subr.bf16.mxu0 0
        %6147 = vmatpush1.bf16.msra.mxu0 %v5509
        %6148 = vmatprep.subr.bf16.mxu0 0
        %6149 = vmatpush1.bf16.msra.mxu0 %v5516
        %6150 = vmatprep.subr.bf16.mxu0 0
        %6151 = vmatpush1.bf16.msra.mxu0 %v5523
        %6152 = vmatprep.subr.bf16.mxu0 0
        %6153 = vmatpush1.bf16.msra.mxu0 %v5530
        %6154 = vmatprep.mubr.bf16.mxu0 %v4305
        %6155 = vmatmul.mubr.bf16.gmra.mrb[0].mxu0 %v4304
        %v6156 = vpop.f32.mrb[0].mxu0
        %v6157 = vadd.f32 %v6108, %v6156
        %v6158 = vpop.f32.mrb[0].mxu0
        %v6159 = vpop.f32.mrb[0].mxu0
        %v6160 = vadd.f32 %v6111, %v6159
        %v6161 = vpop.f32.mrb[0].mxu0
        %6162 = vmatprep.mubr.bf16.mxu0 %v4309
        %6163 = vmatmul.mubr.bf16.gmra.mrb[0].mxu0 %v4308
        %v6164 = vpop.f32.mrb[0].mxu0
        %v6165 = vadd.f32 %v6116, %v6164
        %v6166 = vpop.f32.mrb[0].mxu0
        %v6167 = vpop.f32.mrb[0].mxu0
        %v6168 = vadd.f32 %v6119, %v6167
        %v6169 = vpop.f32.mrb[0].mxu0
        %6170 = vdwg.mxu0
        %v6171 = vxor.u32 %v5843, 2147483648
        %v6172 = vxor.u32 %v5845, 2147483648
        %v6173 = vxor.u32 %v5949, 2147483648
        %v6174 = vxor.u32 %v5951, 2147483648
        %v6175 = vxor.u32 %v6055, 2147483648
        %v6176 = vxor.u32 %v6057, 2147483648
        %v6177 = vxor.u32 %v6157, 2147483648
        %v6178 = vxor.u32 %v5847, 2147483648
        %v6179 = vxor.u32 %v5849, 2147483648
        %v6180 = vxor.u32 %v5953, 2147483648
        %v6181 = vxor.u32 %v5955, 2147483648
        %v6182 = vxor.u32 %v6059, 2147483648
        %v6183 = vxor.u32 %v6061, 2147483648
        %v6184 = vxor.u32 %v6160, 2147483648
        %v6185 = vxor.u32 %v5853, 2147483648
        %v6186 = vxor.u32 %v5855, 2147483648
        %v6187 = vxor.u32 %v5959, 2147483648
        %v6188 = vxor.u32 %v5961, 2147483648
        %v6189 = vxor.u32 %v6065, 2147483648
        %v6190 = vxor.u32 %v6067, 2147483648
        %v6191 = vxor.u32 %v6165, 2147483648
        %v6192 = vxor.u32 %v5857, 2147483648
        %v6193 = vxor.u32 %v5859, 2147483648
        %v6194 = vxor.u32 %v5963, 2147483648
        %v6195 = vxor.u32 %v5965, 2147483648
        %v6196 = vxor.u32 %v6069, 2147483648
        %v6197 = vxor.u32 %v6071, 2147483648
        %v6198 = vxor.u32 %v6168, 2147483648
        %v6199 = vmul.f32 %v6171, 1.442695
        %v6200 = vpow.pop %v6199
        %v6201 = vmul.f32 %v6172, 1.442695
        %v6202 = vpow.pop %v6201
        %v6203 = vmul.f32 %v6173, 1.442695
        %v6204 = vpow.pop %v6203
        %v6205 = vmul.f32 %v6174, 1.442695
        %v6206 = vpow.pop %v6205
        %v6207 = vmul.f32 %v6175, 1.442695
        %v6208 = vpow.pop %v6207
        %v6209 = vmul.f32 %v6176, 1.442695
        %v6210 = vpow.pop %v6209
        %v6211 = vmul.f32 %v6177, 1.442695
        %v6212 = vpow.pop %v6211
        %v6213 = vmul.f32 %v6178, 1.442695
        %v6214 = vpow.pop %v6213
        %v6215 = vmul.f32 %v6179, 1.442695
        %v6216 = vpow.pop %v6215
        %v6217 = vmul.f32 %v6180, 1.442695
        %v6218 = vpow.pop %v6217
        %v6219 = vmul.f32 %v6181, 1.442695
        %v6220 = vpow.pop %v6219
        %v6221 = vmul.f32 %v6182, 1.442695
        %v6222 = vpow.pop %v6221
        %v6223 = vmul.f32 %v6183, 1.442695
        %v6224 = vpow.pop %v6223
        %v6225 = vmul.f32 %v6184, 1.442695
        %v6226 = vpow.pop %v6225
        %v6227 = vmul.f32 %v6185, 1.442695
        %v6228 = vpow.pop %v6227
        %v6229 = vmul.f32 %v6186, 1.442695
        %v6230 = vpow.pop %v6229
        %v6231 = vmul.f32 %v6187, 1.442695
        %v6232 = vpow.pop %v6231
        %v6233 = vmul.f32 %v6188, 1.442695
        %v6234 = vpow.pop %v6233
        %v6235 = vmul.f32 %v6189, 1.442695
        %v6236 = vpow.pop %v6235
        %v6237 = vmul.f32 %v6190, 1.442695
        %v6238 = vpow.pop %v6237
        %v6239 = vmul.f32 %v6191, 1.442695
        %v6240 = vpow.pop %v6239
        %v6241 = vmul.f32 %v6192, 1.442695
        %v6242 = vpow.pop %v6241
        %v6243 = vmul.f32 %v6193, 1.442695
        %v6244 = vpow.pop %v6243
        %v6245 = vmul.f32 %v6194, 1.442695
        %v6246 = vpow.pop %v6245
        %v6247 = vmul.f32 %v6195, 1.442695
        %v6248 = vpow.pop %v6247
        %v6249 = vmul.f32 %v6196, 1.442695
        %v6250 = vpow.pop %v6249
        %v6251 = vmul.f32 %v6197, 1.442695
        %v6252 = vpow.pop %v6251
        %v6253 = vmul.f32 %v6198, 1.442695
        %v6254 = vpow.pop %v6253
        %v6255 = vadd.f32 %v6200, 1.0
        %v6256 = vadd.f32 %v6202, 1.0
        %v6257 = vadd.f32 %v6204, 1.0
        %v6258 = vadd.f32 %v6206, 1.0
        %v6259 = vadd.f32 %v6208, 1.0
        %v6260 = vadd.f32 %v6210, 1.0
        %v6261 = vadd.f32 %v6212, 1.0
        %v6262 = vadd.f32 %v6214, 1.0
        %v6263 = vadd.f32 %v6216, 1.0
        %v6264 = vadd.f32 %v6218, 1.0
        %v6265 = vadd.f32 %v6220, 1.0
        %v6266 = vadd.f32 %v6222, 1.0
        %v6267 = vadd.f32 %v6224, 1.0
        %v6268 = vadd.f32 %v6226, 1.0
        %v6269 = vadd.f32 %v6228, 1.0
        %v6270 = vadd.f32 %v6230, 1.0
        %v6271 = vadd.f32 %v6232, 1.0
        %v6272 = vadd.f32 %v6234, 1.0
        %v6273 = vadd.f32 %v6236, 1.0
        %v6274 = vadd.f32 %v6238, 1.0
        %v6275 = vadd.f32 %v6240, 1.0
        %v6276 = vadd.f32 %v6242, 1.0
        %v6277 = vadd.f32 %v6244, 1.0
        %v6278 = vadd.f32 %v6246, 1.0
        %v6279 = vadd.f32 %v6248, 1.0
        %v6280 = vadd.f32 %v6250, 1.0
        %v6281 = vadd.f32 %v6252, 1.0
        %v6282 = vadd.f32 %v6254, 1.0
        %v6283 = vrcp.pop %v6255
        %v6284 = vmul.f32 1.0, %v6283
        %v6285 = vrcp.pop %v6256
        %v6286 = vmul.f32 1.0, %v6285
        %v6287 = vrcp.pop %v6257
        %v6288 = vmul.f32 1.0, %v6287
        %v6289 = vrcp.pop %v6258
        %v6290 = vmul.f32 1.0, %v6289
        %v6291 = vrcp.pop %v6259
        %v6292 = vmul.f32 1.0, %v6291
        %v6293 = vrcp.pop %v6260
        %v6294 = vmul.f32 1.0, %v6293
        %v6295 = vrcp.pop %v6261
        %v6296 = vmul.f32 1.0, %v6295
        %v6297 = vrcp.pop %v6262
        %v6298 = vmul.f32 1.0, %v6297
        %v6299 = vrcp.pop %v6263
        %v6300 = vmul.f32 1.0, %v6299
        %v6301 = vrcp.pop %v6264
        %v6302 = vmul.f32 1.0, %v6301
        %v6303 = vrcp.pop %v6265
        %v6304 = vmul.f32 1.0, %v6303
        %v6305 = vrcp.pop %v6266
        %v6306 = vmul.f32 1.0, %v6305
        %v6307 = vrcp.pop %v6267
        %v6308 = vmul.f32 1.0, %v6307
        %v6309 = vrcp.pop %v6268
        %v6310 = vmul.f32 1.0, %v6309
        %v6311 = vrcp.pop %v6269
        %v6312 = vmul.f32 1.0, %v6311
        %v6313 = vrcp.pop %v6270
        %v6314 = vmul.f32 1.0, %v6313
        %v6315 = vrcp.pop %v6271
        %v6316 = vmul.f32 1.0, %v6315
        %v6317 = vrcp.pop %v6272
        %v6318 = vmul.f32 1.0, %v6317
        %v6319 = vrcp.pop %v6273
        %v6320 = vmul.f32 1.0, %v6319
        %v6321 = vrcp.pop %v6274
        %v6322 = vmul.f32 1.0, %v6321
        %v6323 = vrcp.pop %v6275
        %v6324 = vmul.f32 1.0, %v6323
        %v6325 = vrcp.pop %v6276
        %v6326 = vmul.f32 1.0, %v6325
        %v6327 = vrcp.pop %v6277
        %v6328 = vmul.f32 1.0, %v6327
        %v6329 = vrcp.pop %v6278
        %v6330 = vmul.f32 1.0, %v6329
        %v6331 = vrcp.pop %v6279
        %v6332 = vmul.f32 1.0, %v6331
        %v6333 = vrcp.pop %v6280
        %v6334 = vmul.f32 1.0, %v6333
        %v6335 = vrcp.pop %v6281
        %v6336 = vmul.f32 1.0, %v6335
        %v6337 = vrcp.pop %v6282
        %v6338 = vmul.f32 1.0, %v6337
        %v6339 = vpack.c.bf16 %v6298, %v6284
        %v6340 = vpack.c.bf16 %v6300, %v6286
        %v6341 = vpack.c.bf16 %v6302, %v6288
        %v6342 = vpack.c.bf16 %v6304, %v6290
        %v6343 = vpack.c.bf16 %v6306, %v6292
        %v6344 = vpack.c.bf16 %v6308, %v6294
        %v6345 = vpack.c.bf16 %v6310, %v6296
        %v6346 = vpack.c.bf16 %v6326, %v6312
        %v6347 = vpack.c.bf16 %v6328, %v6314
        %v6348 = vpack.c.bf16 %v6330, %v6316
        %v6349 = vpack.c.bf16 %v6332, %v6318
        %v6350 = vpack.c.bf16 %v6334, %v6320
        %v6351 = vpack.c.bf16 %v6336, %v6322
        %v6352 = vpack.c.bf16 %v6338, %v6324
        %v6367 = vunpack.c.l.b16 %v6339
        %v6368 = vunpack.c.l.b16 %v6340
        %v6369 = vunpack.c.l.b16 %v6341
        %v6370 = vunpack.c.l.b16 %v6342
        %v6371 = vunpack.c.l.b16 %v6343
        %v6372 = vunpack.c.l.b16 %v6344
        %v6373 = vunpack.c.l.b16 %v6345
        %v6374 = vunpack.c.h.b16 %v6339
        %v6375 = vunpack.c.h.b16 %v6340
        %v6376 = vunpack.c.h.b16 %v6341
        %v6377 = vunpack.c.h.b16 %v6342
        %v6378 = vunpack.c.h.b16 %v6343
        %v6379 = vunpack.c.h.b16 %v6344
        %v6380 = vunpack.c.h.b16 %v6345
        %v6381 = vunpack.c.l.b16 %v6346
        %v6382 = vunpack.c.l.b16 %v6347
        %v6383 = vunpack.c.l.b16 %v6348
        %v6384 = vunpack.c.l.b16 %v6349
        %v6385 = vunpack.c.l.b16 %v6350
        %v6386 = vunpack.c.l.b16 %v6351
        %v6387 = vunpack.c.l.b16 %v6352
        %v6388 = vunpack.c.h.b16 %v6346
        %v6389 = vunpack.c.h.b16 %v6347
        %v6390 = vunpack.c.h.b16 %v6348
        %v6391 = vunpack.c.h.b16 %v6349
        %v6392 = vunpack.c.h.b16 %v6350
        %v6393 = vunpack.c.h.b16 %v6351
        %v6394 = vunpack.c.h.b16 %v6352
        %v6395 = vpack.c.b16 %v6368, %v6367
        %v6396 = vpack.c.b16 %v6370, %v6369
        %v6397 = vpack.c.b16 %v6372, %v6371
        %v6398 = vpack.c.b16 %v6373, %v6373
        %v6399 = vpack.c.b16 %v6375, %v6374
        %v6400 = vpack.c.b16 %v6377, %v6376
        %v6401 = vpack.c.b16 %v6379, %v6378
        %v6402 = vpack.c.b16 %v6380, %v6380
        %v6403 = vpack.c.b16 %v6382, %v6381
        %v6404 = vpack.c.b16 %v6384, %v6383
        %v6405 = vpack.c.b16 %v6386, %v6385
        %v6406 = vpack.c.b16 %v6387, %v6387
        %v6407 = vpack.c.b16 %v6389, %v6388
        %v6408 = vpack.c.b16 %v6391, %v6390
        %v6409 = vpack.c.b16 %v6393, %v6392
        %v6410 = vpack.c.b16 %v6394, %v6394
        %6427 = vst [vmem:[%s734] sm:$0xff] %v6395
        %6428 = vst [vmem:[%s734 + $0x8] sm:$0xff] %v6396
        %6429 = vst [vmem:[%s734 + $0x10] sm:$0xff] %v6397
        %6430 = vst [vmem:[%s734 + $0x18] sm:$0xf] %v6398
        %6431 = vst [vmem:[%s734 + $0x1c] sm:$0xff] %v6399
        %6432 = vst [vmem:[%s734 + $0x24] sm:$0xff] %v6400
        %6433 = vst [vmem:[%s734 + $0x2c] sm:$0xff] %v6401
        %6434 = vst [vmem:[%s734 + $0x34] sm:$0xf] %v6402
        %6435 = vst [vmem:[%s734 + $0x38] sm:$0xff] %v6403
        %6436 = vst [vmem:[%s734 + $0x40] sm:$0xff] %v6404
        %6437 = vst [vmem:[%s734 + $0x48] sm:$0xff] %v6405
        %6438 = vst [vmem:[%s734 + $0x50] sm:$0xf] %v6406
        %6439 = vst [vmem:[%s734 + $0x54] sm:$0xff] %v6407
        %6440 = vst [vmem:[%s734 + $0x5c] sm:$0xff] %v6408
        %6441 = vst [vmem:[%s734 + $0x64] sm:$0xff] %v6409
        %6442 = vst [vmem:[%s734 + $0x6c] sm:$0xf] %v6410
        %s6443 = sand.u32 %s414, 1
        %s6444 = scalar_lea.sflag [#allocation4], %s6443
        %s6445 = sand.u32 %s414, 1
        %s6446 = smul.addr %s6445, 32
        %s6447 = scalar_lea.vmem [#allocation19], %s6446
        %s6448 = sand.u32 %s440, 1
        %s6449 = scalar_lea.sflag [#allocation21], %s6448
        %s6450 = sand.u32 %s440, 1
        %s6451 = smul.addr %s6450, 112
        %s6452 = scalar_lea.vmem [#allocation20], %s6451
        // Predicated region
        $region129: #{tpu_custom_call.1} parent=87 // pred_check
          %p6453 = pneg %p424
        $region130: #{tpu_custom_call.1} parent=87 // pred_check_branch
          %6455 = sbr.rel (%p6453) target = $region132
        $region131: #{tpu_custom_call.1} parent=87 // pred_region
          %s6456 = smul.u32 4, %s44
          %s6458 = ssub.s32 512, 512
          %6459 = vsyncadd %s6444, %s6458
          %s6460 = smul.addr %s6456, 128
          %s6461 = scalar_lea.hbm %s17, %s6460
          %s6462 = sshll.u32 %s6447, 4
          %s6463 = int_to_ptr.vmem [resolvable:$true] %s6462
          %6468 = dma.vmem_to_hbm [thread:$0]  %s6463, 512, %s6461, %s6444, 128, 128, 8
        $region132: #{tpu_custom_call.1} parent=87 // pred_fallthru
          _
        // Predicated region
        $region133: #{tpu_custom_call.1} parent=87 // pred_check
          %p6469 = pneg %p450
        $region134: #{tpu_custom_call.1} parent=87 // pred_check_branch
          %6471 = sbr.rel (%p6469) target = $region136
        $region135: #{tpu_custom_call.1} parent=87 // pred_region
          %s6472 = smul.u32 4, %s44
          %s6474 = ssub.s32 1792, 1792
          %6475 = vsyncadd %s6449, %s6474
          %s6476 = smul.addr %s6472, 7
          %s6477 = smul.addr %s6476, 64
          %s6478 = scalar_lea.hbm %s18, %s6477
          %s6479 = sshll.u32 %s6452, 4
          %s6480 = int_to_ptr.vmem [resolvable:$true] %s6479
          %6485 = dma.vmem_to_hbm [thread:$0]  %s6480, 1792, %s6478, %s6449, 448, 448, 28
        $region136: #{tpu_custom_call.1} parent=87 // pred_fallthru
          _
      $region88: #{tpu_custom_call.1} parent=5 // pred_fallthru
        _
      %p6486 = scmp.le.s32.totalorder 2, %s39
      // Predicated region
      $region137: #{tpu_custom_call.1} parent=5 // pred_check
        %p6487 = pneg %p6486
      $region138: #{tpu_custom_call.1} parent=5 // pred_check_branch
        %6489 = sbr.rel (%p6487) target = $region140
      $region139: #{tpu_custom_call.1} parent=5 // pred_region
        %s6490 = ssub.s32 %s39, 2
        // Predicated region
        $region141: #{tpu_custom_call.1} parent=139 // pred_check
          %p6491 = pneg %p430
        $region142: #{tpu_custom_call.1} parent=139 // pred_check_branch
          %6493 = sbr.rel (%p6491) target = $region144
        $region143: #{tpu_custom_call.1} parent=139 // pred_region
          %s6494 = sand.u32 %s415, 1
          %s6495 = scalar_lea.sflag [#allocation4], %s6494
          %s6496 = sand.u32 %s415, 1
          %s6497 = smul.addr %s6496, 32
          %s6498 = scalar_lea.vmem [#allocation19], %s6497
          %6499 = dma.done %s6495, 512
        $region144: #{tpu_custom_call.1} parent=139 // pred_fallthru
          _
        // Predicated region
        $region145: #{tpu_custom_call.1} parent=139 // pred_check
          %p6500 = pneg %p456
        $region146: #{tpu_custom_call.1} parent=139 // pred_check_branch
          %6502 = sbr.rel (%p6500) target = $region148
        $region147: #{tpu_custom_call.1} parent=139 // pred_region
          %s6503 = sand.u32 %s441, 1
          %s6504 = scalar_lea.sflag [#allocation21], %s6503
          %s6505 = sand.u32 %s441, 1
          %s6506 = smul.addr %s6505, 112
          %s6507 = scalar_lea.vmem [#allocation20], %s6506
          %6508 = dma.done %s6504, 1792
        $region148: #{tpu_custom_call.1} parent=139 // pred_fallthru
          _
      $region140: #{tpu_custom_call.1} parent=5 // pred_fallthru
        _
    $region6: #{tpu_custom_call.1} parent=1 // loop_footer
      %s43 = sadd.s32 1, %s39
    $region7: #{tpu_custom_call.1} parent=1 // loop_footer_branch
      %38 = sbr.rel target = $region3
    $region8: #{tpu_custom_call.1} parent=1 // loop_exit
      _
    %6509 = vsyncpa [#allocation3], 1
    %s6510 = scalar_lea.sflag [#allocation3], 1
    %6511 = vsyncpa %s6510, 1
    %6512 = vsyncpa [#allocation6], 1
    %6513 = vsyncpa [#allocation9], 1
    %6514 = vsyncpa [#allocation12], 1
    %6515 = vsyncpa [#allocation15], 1
    %6516 = vsyncpa [#allocation18], 1
    %6517 = vsyncpa [#allocation4], 1
    %s6518 = scalar_lea.sflag [#allocation4], 1
    %6519 = vsyncpa %s6518, 1
    %6520 = vsyncpa [#allocation21], 1
    %s6521 = scalar_lea.sflag [#allocation21], 1
    %6522 = vsyncpa %s6521, 1

</llo_original>
